<compile_context>
chip_gen: v7x
topology: tpu7x:2x2x1
jax: 0.10.0
libtpu: 0.0.40
codegen_flags: <defaults>
</compile_context>

<pallas_src>
import jax
import jax.numpy as jnp
from jax.experimental import pallas as pl
from jax.experimental.pallas import tpu as pltpu


def _round_up(x, m):
    return (x + m - 1) // m * m


def _make_lstm_kernel(T, Tc, Bt, I_pad, H_pad, compute_dtype, need_mask):
    """Builds the recurrent kernel (closes over static shape params)."""

    def kernel(x_ref, wih_ref, whh_ref, b_ref, out_ref, xg_scr, h_scr, c_scr):
        chunk = pl.program_id(1)

        @pl.when(chunk == 0)
        def _init():
            h_scr[...] = jnp.zeros_like(h_scr)
            c_scr[...] = jnp.zeros_like(c_scr)

        # ---- chunk-level input projection: ONE batched MXU matmul for all Tc steps,
        # bias folded here (not on the per-step serial path). Rows are time-major, so
        # step s owns the contiguous, sublane-aligned rows [s*Bt, (s+1)*Bt). ------------
        x_chunk = x_ref[...].reshape(Tc * Bt, I_pad)          # free view (Bt%8==0, I_pad%128==0)
        xg_scr[...] = (
            jnp.dot(x_chunk, wih_ref[...], preferred_element_type=jnp.float32)
            + b_ref[...]
        )

        def step(s, carry):
            h, c = carry
            row = pl.multiple_of(s * Bt, Bt)                  # sublane-aligned dynamic slice
            x_gates = xg_scr[pl.ds(row, Bt), :]               # (Bt, 4*H_pad) precomputed
            gates = x_gates + jnp.dot(
                h.astype(compute_dtype), whh_ref[...],
                preferred_element_type=jnp.float32)
            # gate layout (i, f, o, g): three contiguous sigmoid gates + one tanh gate,
            # each starting on a 128-lane boundary (H_pad multiple of 128).
            sig = jax.nn.sigmoid(gates[:, 0:3 * H_pad])
            i_g = sig[:, 0 * H_pad:1 * H_pad]
            f_g = sig[:, 1 * H_pad:2 * H_pad]
            o_g = sig[:, 2 * H_pad:3 * H_pad]
            g_g = jnp.tanh(gates[:, 3 * H_pad:4 * H_pad])
            c_new = f_g * c + i_g * g_g
            h_new = o_g * jnp.tanh(c_new)
            if need_mask:  # ragged last chunk only: freeze state on padded timesteps
                valid = (chunk * Tc + s) < T
                c_new = jnp.where(valid, c_new, c)
                h_new = jnp.where(valid, h_new, h)
            return h_new, c_new

        # Tc <= 16 by construction -> always fully unroll (LLO scheduling visibility).
        h, c = jax.lax.fori_loop(0, Tc, step, (h_scr[...], c_scr[...]), unroll=True)
        h_scr[...] = h
        c_scr[...] = c

        @pl.when(chunk == pl.num_programs(1) - 1)
        def _finalize():
            out_ref[...] = h.astype(out_ref.dtype)            # lane-dense (Bt, H_pad) store

    return kernel


def lstm_regressor_pallas(x, params, *, time_chunk=16, compute_dtype=jnp.bfloat16):
    """x: [B, T, I] float32 (batch_first, like the PyTorch module). Returns [B, O]."""
    B, T, I = x.shape
    assert T >= 1
    H = params["w_hh"].shape[0] // 4

    # ---- tiling ---------------------------------------------------------------------
    Bt = min(_round_up(B, 32), 256)          # batch tile: fills MXU rows, bf16 sublane-packed
    B_pad = _round_up(B, Bt)
    nb = B_pad // Bt
    I_pad = _round_up(I, 128)
    H_pad = _round_up(H, 128)                # lane-aligned gate blocks

    # time chunk: keep Tc*Bt <= ~512 rows; prefer a divisor of T so no per-step masking.
    tc_cap = max(1, 512 // Bt)
    tc_req = max(1, min(time_chunk, tc_cap, T))
    tc_div = max(d for d in range(1, tc_req + 1) if T % d == 0)
    if tc_div >= max(1, tc_req // 2):
        Tc, need_mask = tc_div, False
    else:
        Tc, need_mask = tc_req, True
    n_chunks = pl.cdiv(T, Tc)
    T_pad = n_chunks * Tc

    # ---- weight prep: PyTorch gate order (i, f, g, o) -> kernel order (i, f, o, g),
    # gate k placed at cols [k*H_pad, k*H_pad + H). ------------------------------------
    GATE_SRC = (0, 1, 3, 2)

    def place_gates(w_t):                    # (K, 4H) f32 -> (K, 4*H_pad) f32
        K = w_t.shape[0]
        out = jnp.zeros((K, 4 * H_pad), jnp.float32)
        for k, src in enumerate(GATE_SRC):
            out = out.at[:, k * H_pad:k * H_pad + H].set(w_t[:, src * H:(src + 1) * H])
        return out

    w_ih_t = place_gates(params["w_ih"].T.astype(jnp.float32))          # (I, 4*H_pad)
    w_ih_t = jnp.pad(w_ih_t, ((0, I_pad - I), (0, 0))).astype(compute_dtype)
    w_hh_t = place_gates(params["w_hh"].T.astype(jnp.float32))          # (H, 4*H_pad)
    w_hh_t = jnp.pad(w_hh_t, ((0, H_pad - H), (0, 0))).astype(compute_dtype)
    bias = place_gates((params["b_ih"] + params["b_hh"])
                       .astype(jnp.float32).reshape(1, 4 * H))           # (1, 4*H_pad) f32

    # ---- x layout: single time-major transpose + pad; chunk split is a free reshape. --
    x_tm = jnp.transpose(x, (1, 0, 2)).astype(jnp.float32)               # (T, B, I)
    x_tm = jnp.pad(x_tm, ((0, T_pad - T), (0, B_pad - B), (0, I_pad - I)))
    x_blk = x_tm.reshape(n_chunks, Tc, B_pad, I_pad).astype(compute_dtype)

    kernel = _make_lstm_kernel(T, Tc, Bt, I_pad, H_pad, compute_dtype, need_mask)

    grid_spec = pltpu.PrefetchScalarGridSpec(
        num_scalar_prefetch=0,
        grid=(nb, n_chunks),                 # (parallel batch blocks, sequential time)
        in_specs=[
            pl.BlockSpec((pl.Squeezed(), Tc, Bt, I_pad),
                         lambda b, c: (c, 0, b, 0)),                     # x chunk
            pl.BlockSpec((I_pad, 4 * H_pad), lambda b, c: (0, 0),
                         pipeline_mode=pl.Buffered(1)),                  # W_ih^T (resident)
            pl.BlockSpec((H_pad, 4 * H_pad), lambda b, c: (0, 0),
                         pipeline_mode=pl.Buffered(1)),                  # W_hh^T (resident)
            pl.BlockSpec((1, 4 * H_pad), lambda b, c: (0, 0)),           # bias (f32)
        ],
        out_specs=pl.BlockSpec((Bt, H_pad), lambda b, c: (b, 0)),        # h_T
        scratch_shapes=[
            pltpu.VMEM((Tc * Bt, 4 * H_pad), jnp.float32),   # precomputed gate inputs
            pltpu.VMEM((Bt, H_pad), jnp.float32),            # h state (f32)
            pltpu.VMEM((Bt, H_pad), jnp.float32),            # c state (f32)
        ],
    )

    # ---- VMEM budget from the actual footprint (weights single-buffered, x/out x2). ---
    bpe = jnp.dtype(compute_dtype).itemsize
    vmem_bytes = (
        2 * Tc * Bt * I_pad * bpe            # x chunk (double-buffered)
        + I_pad * 4 * H_pad * bpe            # W_ih (single-buffered)
        + H_pad * 4 * H_pad * bpe            # W_hh (single-buffered)
        + 2 * 4 * H_pad * 4                  # bias
        + 2 * Bt * H_pad * 4                 # out (double-buffered)
        + Tc * Bt * 4 * H_pad * 4            # xg_scr
        + 2 * Bt * H_pad * 4                 # h, c state
    )
    vmem_limit = int(min(max(int(vmem_bytes * 1.5) + (1 << 20), 8 << 20), 64 << 20))

    h_T = pl.pallas_call(
        kernel,
        out_shape=jax.ShapeDtypeStruct((B_pad, H_pad), jnp.float32),
        grid_spec=grid_spec,
        compiler_params=pltpu.CompilerParams(
            dimension_semantics=("parallel", "arbitrary"),
            vmem_limit_bytes=vmem_limit),
    )(x_blk, w_ih_t, w_hh_t, bias)

    # Final FC on last hidden state: O is tiny (1); keep it in XLA so the kernel
    # output stays lane-dense and the kernel drops two operands.
    h_last = h_T[:B, :H]
    return h_last @ params["w_fc"].T.astype(jnp.float32) + params["b_fc"]


def lstm_regressor_ref(x, params):
    """Pure-JAX reference matching torch.nn.LSTM + Linear semantics."""
    B, T, I = x.shape
    H = params["w_hh"].shape[0] // 4
    w_ih_t = params["w_ih"].T
    w_hh_t = params["w_hh"].T
    bias = params["b_ih"] + params["b_hh"]

    def step(carry, x_t):
        h, c = carry
        gates = x_t @ w_ih_t + h @ w_hh_t + bias
        i = jax.nn.sigmoid(gates[:, 0:H])
        f = jax.nn.sigmoid(gates[:, H:2 * H])
        g = jnp.tanh(gates[:, 2 * H:3 * H])
        o = jax.nn.sigmoid(gates[:, 3 * H:4 * H])
        c = f * c + i * g
        h = o * jnp.tanh(c)
        return (h, c), None

    h0 = jnp.zeros((B, H), jnp.float32)
    c0 = jnp.zeros((B, H), jnp.float32)
    (hT, _), _ = jax.lax.scan(step, (h0, c0), jnp.transpose(x, (1, 0, 2)))
    return hT @ params["w_fc"].T + params["b_fc"]


def init_params(key, input_size, hidden_size, output_size):
    """Deterministic init mirroring PyTorch LSTM/Linear shapes (uniform +/- 1/sqrt(H))."""
    ks = jax.random.split(key, 6)
    k = 1.0 / jnp.sqrt(hidden_size)
    u = lambda kk, shape, bound: jax.random.uniform(
        kk, shape, jnp.float32, minval=-bound, maxval=bound)
    kf = 1.0 / jnp.sqrt(hidden_size)  # fc fan_in = hidden_size
    return {
        "w_ih": u(ks[0], (4 * hidden_size, input_size), k),
        "w_hh": u(ks[1], (4 * hidden_size, hidden_size), k),
        "b_ih": u(ks[2], (4 * hidden_size,), k),
        "b_hh": u(ks[3], (4 * hidden_size,), k),
        "w_fc": u(ks[4], (output_size, hidden_size), kf),
        "b_fc": u(ks[5], (output_size,), kf),
    }


if __name__ == "__main__":
    B, T, I, H, O = 2, 8, 16, 32, 1
    key = jax.random.PRNGKey(0)
    kx, kp = jax.random.split(key)
    x = jax.random.normal(kx, (B, T, I), jnp.float32)
    params = init_params(kp, I, H, O)

    ref = lstm_regressor_ref(x, params)

    # f32 matmul operands (exact vs reference)
    out_f32 = jax.block_until_ready(
        lstm_regressor_pallas(x, params, compute_dtype=jnp.float32))
    assert out_f32.shape == (B, O)
    assert jnp.allclose(out_f32, ref, atol=1e-5, rtol=1e-5), (out_f32, ref)

    # default path: bf16 matmul operands, f32 state/accumulation -> small drift
    out_bf16 = jax.block_until_ready(lstm_regressor_pallas(x, params))
    assert out_bf16.shape == (B, O)
    assert jnp.allclose(out_bf16, ref, atol=5e-2, rtol=5e-2), (out_bf16, ref)

    print("KERNEL_OK")
</pallas_src>

<mosaic_0001>
module attributes {stable_mosaic.version = 11 : i64} {
  func.func @kernel(%arg0: i32, %arg1: i32, %arg2: memref<1x8x32x128xf32, #tpu.memory_space<vmem>>, %arg3: memref<128x512xf32, #tpu.memory_space<vmem>>, %arg4: memref<128x512xf32, #tpu.memory_space<vmem>>, %arg5: memref<1x512xf32, #tpu.memory_space<vmem>>, %arg6: memref<32x128xf32, #tpu.memory_space<vmem>>, %arg7: memref<256x512xf32, #tpu.memory_space<vmem>>, %arg8: memref<32x128xf32, #tpu.memory_space<vmem>>, %arg9: memref<32x128xf32, #tpu.memory_space<vmem>>) attributes {dimension_semantics = [#tpu.dimension_semantics<parallel>, #tpu.dimension_semantics<arbitrary>], iteration_bounds = array<i64: 1, 1>, scalar_prefetch = 0 : i64, scratch_operands = 3 : i64, tpu.core_type = #tpu.core_type<tc>, window_params = [{transform_indices = @transform_0, window_bounds = array<i64: 1, 8, 32, 128>}, {pipeline_mode = #tpu.pipeline_mode<synchronous>, transform_indices = @transform_1, window_bounds = array<i64: 128, 512>}, {pipeline_mode = #tpu.pipeline_mode<synchronous>, transform_indices = @transform_2, window_bounds = array<i64: 128, 512>}, {pipeline_mode = #tpu.pipeline_mode<synchronous>, transform_indices = @transform_3, window_bounds = array<i64: 1, 512>}, {transform_indices = @transform_4, window_bounds = array<i64: 32, 128>}]} {
    %c0_i32 = arith.constant 0 : i32
    %0 = arith.cmpi eq, %arg1, %c0_i32 : i32
    %1 = arith.extui %0 : i1 to i32
    %c0_i32_0 = arith.constant 0 : i32
    %2 = arith.cmpi ne, %1, %c0_i32_0 : i32
    scf.if %2 {
      %cst_68 = arith.constant 0.000000e+00 : f32
      %203 = vector.broadcast %cst_68 : f32 to vector<32x128xf32>
      %c0_69 = arith.constant 0 : index
      %c0_70 = arith.constant 0 : index
      %204 = vector.load %arg8[%c0_69, %c0_70] : memref<32x128xf32, #tpu.memory_space<vmem>>, vector<32x128xf32>
      tpu.vector_store %arg8[%c0_69, %c0_70], %203 {strides = array<i32>} : memref<32x128xf32, #tpu.memory_space<vmem>>, vector<32x128xf32>,
      %cst_71 = arith.constant 0.000000e+00 : f32
      %205 = vector.broadcast %cst_71 : f32 to vector<32x128xf32>
      %c0_72 = arith.constant 0 : index
      %c0_73 = arith.constant 0 : index
      %206 = vector.load %arg9[%c0_72, %c0_73] : memref<32x128xf32, #tpu.memory_space<vmem>>, vector<32x128xf32>
      tpu.vector_store %arg9[%c0_72, %c0_73], %205 {strides = array<i32>} : memref<32x128xf32, #tpu.memory_space<vmem>>, vector<32x128xf32>,
    } else {
    }
    %c0 = arith.constant 0 : index
    %c0_1 = arith.constant 0 : index
    %c0_2 = arith.constant 0 : index
    %c0_3 = arith.constant 0 : index
    %3 = vector.load %arg2[%c0, %c0_1, %c0_2, %c0_3] : memref<1x8x32x128xf32, #tpu.memory_space<vmem>>, vector<1x8x32x128xf32>
    %4 = vector.shape_cast %3 : vector<1x8x32x128xf32> to vector<8x32x128xf32>
    %5 = vector.shape_cast %4 : vector<8x32x128xf32> to vector<256x128xf32>
    %c0_4 = arith.constant 0 : index
    %c0_5 = arith.constant 0 : index
    %6 = vector.load %arg3[%c0_4, %c0_5] : memref<128x512xf32, #tpu.memory_space<vmem>>, vector<128x512xf32>
    %cst = arith.constant dense<0.000000e+00> : vector<256x512xf32>
    %7 = tpu.matmul %5, %6, %cst {dimension_numbers = #tpu.dot_dimension_numbers<[1], [0], [0], [1], [0, 0, 1, 1], [], []>} : vector<256x128xf32>, vector<128x512xf32>, vector<256x512xf32> -> vector<256x512xf32>
    %c0_6 = arith.constant 0 : index
    %c0_7 = arith.constant 0 : index
    %8 = vector.load %arg5[%c0_6, %c0_7] : memref<1x512xf32, #tpu.memory_space<vmem>>, vector<1x512xf32>
    %9 = vector.broadcast %8 : vector<1x512xf32> to vector<256x512xf32>
    %10 = arith.addf %7, %9 : vector<256x512xf32>
    %c0_8 = arith.constant 0 : index
    %c0_9 = arith.constant 0 : index
    %11 = vector.load %arg7[%c0_8, %c0_9] : memref<256x512xf32, #tpu.memory_space<vmem>>, vector<256x512xf32>
    tpu.vector_store %arg7[%c0_8, %c0_9], %10 {strides = array<i32>} : memref<256x512xf32, #tpu.memory_space<vmem>>, vector<256x512xf32>,
    %c0_10 = arith.constant 0 : index
    %c0_11 = arith.constant 0 : index
    %12 = vector.load %arg8[%c0_10, %c0_11] : memref<32x128xf32, #tpu.memory_space<vmem>>, vector<32x128xf32>
    %c0_12 = arith.constant 0 : index
    %c0_13 = arith.constant 0 : index
    %13 = vector.load %arg9[%c0_12, %c0_13] : memref<32x128xf32, #tpu.memory_space<vmem>>, vector<32x128xf32>
    %c0_i32_14 = arith.constant 0 : i32
    %c32_i32 = arith.constant 32 : i32
    %14 = arith.muli %c0_i32_14, %c32_i32 : i32
    %15 = tpu.assume_multiple %14, 32 : i32
    %16 = arith.index_cast %15 : i32 to index
    %c0_15 = arith.constant 0 : index
    %17 = vector.load %arg7[%16, %c0_15] : memref<256x512xf32, #tpu.memory_space<vmem>>, vector<32x512xf32>
    %c0_16 = arith.constant 0 : index
    %c0_17 = arith.constant 0 : index
    %18 = vector.load %arg4[%c0_16, %c0_17] : memref<128x512xf32, #tpu.memory_space<vmem>>, vector<128x512xf32>
    %cst_18 = arith.constant dense<0.000000e+00> : vector<32x512xf32>
    %19 = tpu.matmul %12, %18, %cst_18 {dimension_numbers = #tpu.dot_dimension_numbers<[1], [0], [0], [1], [0, 0, 1, 1], [], []>} : vector<32x128xf32>, vector<128x512xf32>, vector<32x512xf32> -> vector<32x512xf32>
    %20 = arith.addf %17, %19 : vector<32x512xf32>
    %21 = vector.extract_strided_slice %20 {offsets = [0, 0], sizes = [32, 384], strides = [1, 1]} : vector<32x512xf32> to vector<32x384xf32>
    %22 = arith.negf %21 : vector<32x384xf32>
    %23 = math.exp %22 : vector<32x384xf32>
    %cst_19 = arith.constant 1.000000e+00 : f32
    %24 = vector.broadcast %cst_19 : f32 to vector<32x384xf32>
    %25 = arith.addf %24, %23 : vector<32x384xf32>
    %26 = arith.divf %24, %25 : vector<32x384xf32>
    %27 = vector.extract_strided_slice %26 {offsets = [0, 0], sizes = [32, 128], strides = [1, 1]} : vector<32x384xf32> to vector<32x128xf32>
    %28 = vector.extract_strided_slice %26 {offsets = [0, 128], sizes = [32, 128], strides = [1, 1]} : vector<32x384xf32> to vector<32x128xf32>
    %29 = vector.extract_strided_slice %26 {offsets = [0, 256], sizes = [32, 128], strides = [1, 1]} : vector<32x384xf32> to vector<32x128xf32>
    %30 = vector.extract_strided_slice %20 {offsets = [0, 384], sizes = [32, 128], strides = [1, 1]} : vector<32x512xf32> to vector<32x128xf32>
    %31 = math.tanh %30 : vector<32x128xf32>
    %32 = arith.mulf %28, %13 : vector<32x128xf32>
    %33 = arith.mulf %27, %31 : vector<32x128xf32>
    %34 = arith.addf %32, %33 : vector<32x128xf32>
    %35 = math.tanh %34 : vector<32x128xf32>
    %36 = arith.mulf %29, %35 : vector<32x128xf32>
    %c1_i32 = arith.constant 1 : i32
    %c32_i32_20 = arith.constant 32 : i32
    %37 = arith.muli %c1_i32, %c32_i32_20 : i32
    %38 = tpu.assume_multiple %37, 32 : i32
    %39 = arith.index_cast %38 : i32 to index
    %c0_21 = arith.constant 0 : index
    %40 = vector.load %arg7[%39, %c0_21] : memref<256x512xf32, #tpu.memory_space<vmem>>, vector<32x512xf32>
    %c0_22 = arith.constant 0 : index
    %c0_23 = arith.constant 0 : index
    %41 = vector.load %arg4[%c0_22, %c0_23] : memref<128x512xf32, #tpu.memory_space<vmem>>, vector<128x512xf32>
    %cst_24 = arith.constant dense<0.000000e+00> : vector<32x512xf32>
    %42 = tpu.matmul %36, %41, %cst_24 {dimension_numbers = #tpu.dot_dimension_numbers<[1], [0], [0], [1], [0, 0, 1, 1], [], []>} : vector<32x128xf32>, vector<128x512xf32>, vector<32x512xf32> -> vector<32x512xf32>
    %43 = arith.addf %40, %42 : vector<32x512xf32>
    %44 = vector.extract_strided_slice %43 {offsets = [0, 0], sizes = [32, 384], strides = [1, 1]} : vector<32x512xf32> to vector<32x384xf32>
    %45 = arith.negf %44 : vector<32x384xf32>
    %46 = math.exp %45 : vector<32x384xf32>
    %cst_25 = arith.constant 1.000000e+00 : f32
    %47 = vector.broadcast %cst_25 : f32 to vector<32x384xf32>
    %48 = arith.addf %47, %46 : vector<32x384xf32>
    %49 = arith.divf %47, %48 : vector<32x384xf32>
    %50 = vector.extract_strided_slice %49 {offsets = [0, 0], sizes = [32, 128], strides = [1, 1]} : vector<32x384xf32> to vector<32x128xf32>
    %51 = vector.extract_strided_slice %49 {offsets = [0, 128], sizes = [32, 128], strides = [1, 1]} : vector<32x384xf32> to vector<32x128xf32>
    %52 = vector.extract_strided_slice %49 {offsets = [0, 256], sizes = [32, 128], strides = [1, 1]} : vector<32x384xf32> to vector<32x128xf32>
    %53 = vector.extract_strided_slice %43 {offsets = [0, 384], sizes = [32, 128], strides = [1, 1]} : vector<32x512xf32> to vector<32x128xf32>
    %54 = math.tanh %53 : vector<32x128xf32>
    %55 = arith.mulf %51, %34 : vector<32x128xf32>
    %56 = arith.mulf %50, %54 : vector<32x128xf32>
    %57 = arith.addf %55, %56 : vector<32x128xf32>
    %58 = math.tanh %57 : vector<32x128xf32>
    %59 = arith.mulf %52, %58 : vector<32x128xf32>
    %c2_i32 = arith.constant 2 : i32
    %c32_i32_26 = arith.constant 32 : i32
    %60 = arith.muli %c2_i32, %c32_i32_26 : i32
    %61 = tpu.assume_multiple %60, 32 : i32
    %62 = arith.index_cast %61 : i32 to index
    %c0_27 = arith.constant 0 : index
    %63 = vector.load %arg7[%62, %c0_27] : memref<256x512xf32, #tpu.memory_space<vmem>>, vector<32x512xf32>
    %c0_28 = arith.constant 0 : index
    %c0_29 = arith.constant 0 : index
    %64 = vector.load %arg4[%c0_28, %c0_29] : memref<128x512xf32, #tpu.memory_space<vmem>>, vector<128x512xf32>
    %cst_30 = arith.constant dense<0.000000e+00> : vector<32x512xf32>
    %65 = tpu.matmul %59, %64, %cst_30 {dimension_numbers = #tpu.dot_dimension_numbers<[1], [0], [0], [1], [0, 0, 1, 1], [], []>} : vector<32x128xf32>, vector<128x512xf32>, vector<32x512xf32> -> vector<32x512xf32>
    %66 = arith.addf %63, %65 : vector<32x512xf32>
    %67 = vector.extract_strided_slice %66 {offsets = [0, 0], sizes = [32, 384], strides = [1, 1]} : vector<32x512xf32> to vector<32x384xf32>
    %68 = arith.negf %67 : vector<32x384xf32>
    %69 = math.exp %68 : vector<32x384xf32>
    %cst_31 = arith.constant 1.000000e+00 : f32
    %70 = vector.broadcast %cst_31 : f32 to vector<32x384xf32>
    %71 = arith.addf %70, %69 : vector<32x384xf32>
    %72 = arith.divf %70, %71 : vector<32x384xf32>
    %73 = vector.extract_strided_slice %72 {offsets = [0, 0], sizes = [32, 128], strides = [1, 1]} : vector<32x384xf32> to vector<32x128xf32>
    %74 = vector.extract_strided_slice %72 {offsets = [0, 128], sizes = [32, 128], strides = [1, 1]} : vector<32x384xf32> to vector<32x128xf32>
    %75 = vector.extract_strided_slice %72 {offsets = [0, 256], sizes = [32, 128], strides = [1, 1]} : vector<32x384xf32> to vector<32x128xf32>
    %76 = vector.extract_strided_slice %66 {offsets = [0, 384], sizes = [32, 128], strides = [1, 1]} : vector<32x512xf32> to vector<32x128xf32>
    %77 = math.tanh %76 : vector<32x128xf32>
    %78 = arith.mulf %74, %57 : vector<32x128xf32>
    %79 = arith.mulf %73, %77 : vector<32x128xf32>
    %80 = arith.addf %78, %79 : vector<32x128xf32>
    %81 = math.tanh %80 : vector<32x128xf32>
    %82 = arith.mulf %75, %81 : vector<32x128xf32>
    %c3_i32 = arith.constant 3 : i32
    %c32_i32_32 = arith.constant 32 : i32
    %83 = arith.muli %c3_i32, %c32_i32_32 : i32
    %84 = tpu.assume_multiple %83, 32 : i32
    %85 = arith.index_cast %84 : i32 to index
    %c0_33 = arith.constant 0 : index
    %86 = vector.load %arg7[%85, %c0_33] : memref<256x512xf32, #tpu.memory_space<vmem>>, vector<32x512xf32>
    %c0_34 = arith.constant 0 : index
    %c0_35 = arith.constant 0 : index
    %87 = vector.load %arg4[%c0_34, %c0_35] : memref<128x512xf32, #tpu.memory_space<vmem>>, vector<128x512xf32>
    %cst_36 = arith.constant dense<0.000000e+00> : vector<32x512xf32>
    %88 = tpu.matmul %82, %87, %cst_36 {dimension_numbers = #tpu.dot_dimension_numbers<[1], [0], [0], [1], [0, 0, 1, 1], [], []>} : vector<32x128xf32>, vector<128x512xf32>, vector<32x512xf32> -> vector<32x512xf32>
    %89 = arith.addf %86, %88 : vector<32x512xf32>
    %90 = vector.extract_strided_slice %89 {offsets = [0, 0], sizes = [32, 384], strides = [1, 1]} : vector<32x512xf32> to vector<32x384xf32>
    %91 = arith.negf %90 : vector<32x384xf32>
    %92 = math.exp %91 : vector<32x384xf32>
    %cst_37 = arith.constant 1.000000e+00 : f32
    %93 = vector.broadcast %cst_37 : f32 to vector<32x384xf32>
    %94 = arith.addf %93, %92 : vector<32x384xf32>
    %95 = arith.divf %93, %94 : vector<32x384xf32>
    %96 = vector.extract_strided_slice %95 {offsets = [0, 0], sizes = [32, 128], strides = [1, 1]} : vector<32x384xf32> to vector<32x128xf32>
    %97 = vector.extract_strided_slice %95 {offsets = [0, 128], sizes = [32, 128], strides = [1, 1]} : vector<32x384xf32> to vector<32x128xf32>
    %98 = vector.extract_strided_slice %95 {offsets = [0, 256], sizes = [32, 128], strides = [1, 1]} : vector<32x384xf32> to vector<32x128xf32>
    %99 = vector.extract_strided_slice %89 {offsets = [0, 384], sizes = [32, 128], strides = [1, 1]} : vector<32x512xf32> to vector<32x128xf32>
    %100 = math.tanh %99 : vector<32x128xf32>
    %101 = arith.mulf %97, %80 : vector<32x128xf32>
    %102 = arith.mulf %96, %100 : vector<32x128xf32>
    %103 = arith.addf %101, %102 : vector<32x128xf32>
    %104 = math.tanh %103 : vector<32x128xf32>
    %105 = arith.mulf %98, %104 : vector<32x128xf32>
    %c4_i32 = arith.constant 4 : i32
    %c32_i32_38 = arith.constant 32 : i32
    %106 = arith.muli %c4_i32, %c32_i32_38 : i32
    %107 = tpu.assume_multiple %106, 32 : i32
    %108 = arith.index_cast %107 : i32 to index
    %c0_39 = arith.constant 0 : index
    %109 = vector.load %arg7[%108, %c0_39] : memref<256x512xf32, #tpu.memory_space<vmem>>, vector<32x512xf32>
    %c0_40 = arith.constant 0 : index
    %c0_41 = arith.constant 0 : index
    %110 = vector.load %arg4[%c0_40, %c0_41] : memref<128x512xf32, #tpu.memory_space<vmem>>, vector<128x512xf32>
    %cst_42 = arith.constant dense<0.000000e+00> : vector<32x512xf32>
    %111 = tpu.matmul %105, %110, %cst_42 {dimension_numbers = #tpu.dot_dimension_numbers<[1], [0], [0], [1], [0, 0, 1, 1], [], []>} : vector<32x128xf32>, vector<128x512xf32>, vector<32x512xf32> -> vector<32x512xf32>
    %112 = arith.addf %109, %111 : vector<32x512xf32>
    %113 = vector.extract_strided_slice %112 {offsets = [0, 0], sizes = [32, 384], strides = [1, 1]} : vector<32x512xf32> to vector<32x384xf32>
    %114 = arith.negf %113 : vector<32x384xf32>
    %115 = math.exp %114 : vector<32x384xf32>
    %cst_43 = arith.constant 1.000000e+00 : f32
    %116 = vector.broadcast %cst_43 : f32 to vector<32x384xf32>
    %117 = arith.addf %116, %115 : vector<32x384xf32>
    %118 = arith.divf %116, %117 : vector<32x384xf32>
    %119 = vector.extract_strided_slice %118 {offsets = [0, 0], sizes = [32, 128], strides = [1, 1]} : vector<32x384xf32> to vector<32x128xf32>
    %120 = vector.extract_strided_slice %118 {offsets = [0, 128], sizes = [32, 128], strides = [1, 1]} : vector<32x384xf32> to vector<32x128xf32>
    %121 = vector.extract_strided_slice %118 {offsets = [0, 256], sizes = [32, 128], strides = [1, 1]} : vector<32x384xf32> to vector<32x128xf32>
    %122 = vector.extract_strided_slice %112 {offsets = [0, 384], sizes = [32, 128], strides = [1, 1]} : vector<32x512xf32> to vector<32x128xf32>
    %123 = math.tanh %122 : vector<32x128xf32>
    %124 = arith.mulf %120, %103 : vector<32x128xf32>
    %125 = arith.mulf %119, %123 : vector<32x128xf32>
    %126 = arith.addf %124, %125 : vector<32x128xf32>
    %127 = math.tanh %126 : vector<32x128xf32>
    %128 = arith.mulf %121, %127 : vector<32x128xf32>
    %c5_i32 = arith.constant 5 : i32
    %c32_i32_44 = arith.constant 32 : i32
    %129 = arith.muli %c5_i32, %c32_i32_44 : i32
    %130 = tpu.assume_multiple %129, 32 : i32
    %131 = arith.index_cast %130 : i32 to index
    %c0_45 = arith.constant 0 : index
    %132 = vector.load %arg7[%131, %c0_45] : memref<256x512xf32, #tpu.memory_space<vmem>>, vector<32x512xf32>
    %c0_46 = arith.constant 0 : index
    %c0_47 = arith.constant 0 : index
    %133 = vector.load %arg4[%c0_46, %c0_47] : memref<128x512xf32, #tpu.memory_space<vmem>>, vector<128x512xf32>
    %cst_48 = arith.constant dense<0.000000e+00> : vector<32x512xf32>
    %134 = tpu.matmul %128, %133, %cst_48 {dimension_numbers = #tpu.dot_dimension_numbers<[1], [0], [0], [1], [0, 0, 1, 1], [], []>} : vector<32x128xf32>, vector<128x512xf32>, vector<32x512xf32> -> vector<32x512xf32>
    %135 = arith.addf %132, %134 : vector<32x512xf32>
    %136 = vector.extract_strided_slice %135 {offsets = [0, 0], sizes = [32, 384], strides = [1, 1]} : vector<32x512xf32> to vector<32x384xf32>
    %137 = arith.negf %136 : vector<32x384xf32>
    %138 = math.exp %137 : vector<32x384xf32>
    %cst_49 = arith.constant 1.000000e+00 : f32
    %139 = vector.broadcast %cst_49 : f32 to vector<32x384xf32>
    %140 = arith.addf %139, %138 : vector<32x384xf32>
    %141 = arith.divf %139, %140 : vector<32x384xf32>
    %142 = vector.extract_strided_slice %141 {offsets = [0, 0], sizes = [32, 128], strides = [1, 1]} : vector<32x384xf32> to vector<32x128xf32>
    %143 = vector.extract_strided_slice %141 {offsets = [0, 128], sizes = [32, 128], strides = [1, 1]} : vector<32x384xf32> to vector<32x128xf32>
    %144 = vector.extract_strided_slice %141 {offsets = [0, 256], sizes = [32, 128], strides = [1, 1]} : vector<32x384xf32> to vector<32x128xf32>
    %145 = vector.extract_strided_slice %135 {offsets = [0, 384], sizes = [32, 128], strides = [1, 1]} : vector<32x512xf32> to vector<32x128xf32>
    %146 = math.tanh %145 : vector<32x128xf32>
    %147 = arith.mulf %143, %126 : vector<32x128xf32>
    %148 = arith.mulf %142, %146 : vector<32x128xf32>
    %149 = arith.addf %147, %148 : vector<32x128xf32>
    %150 = math.tanh %149 : vector<32x128xf32>
    %151 = arith.mulf %144, %150 : vector<32x128xf32>
    %c6_i32 = arith.constant 6 : i32
    %c32_i32_50 = arith.constant 32 : i32
    %152 = arith.muli %c6_i32, %c32_i32_50 : i32
    %153 = tpu.assume_multiple %152, 32 : i32
    %154 = arith.index_cast %153 : i32 to index
    %c0_51 = arith.constant 0 : index
    %155 = vector.load %arg7[%154, %c0_51] : memref<256x512xf32, #tpu.memory_space<vmem>>, vector<32x512xf32>
    %c0_52 = arith.constant 0 : index
    %c0_53 = arith.constant 0 : index
    %156 = vector.load %arg4[%c0_52, %c0_53] : memref<128x512xf32, #tpu.memory_space<vmem>>, vector<128x512xf32>
    %cst_54 = arith.constant dense<0.000000e+00> : vector<32x512xf32>
    %157 = tpu.matmul %151, %156, %cst_54 {dimension_numbers = #tpu.dot_dimension_numbers<[1], [0], [0], [1], [0, 0, 1, 1], [], []>} : vector<32x128xf32>, vector<128x512xf32>, vector<32x512xf32> -> vector<32x512xf32>
    %158 = arith.addf %155, %157 : vector<32x512xf32>
    %159 = vector.extract_strided_slice %158 {offsets = [0, 0], sizes = [32, 384], strides = [1, 1]} : vector<32x512xf32> to vector<32x384xf32>
    %160 = arith.negf %159 : vector<32x384xf32>
    %161 = math.exp %160 : vector<32x384xf32>
    %cst_55 = arith.constant 1.000000e+00 : f32
    %162 = vector.broadcast %cst_55 : f32 to vector<32x384xf32>
    %163 = arith.addf %162, %161 : vector<32x384xf32>
    %164 = arith.divf %162, %163 : vector<32x384xf32>
    %165 = vector.extract_strided_slice %164 {offsets = [0, 0], sizes = [32, 128], strides = [1, 1]} : vector<32x384xf32> to vector<32x128xf32>
    %166 = vector.extract_strided_slice %164 {offsets = [0, 128], sizes = [32, 128], strides = [1, 1]} : vector<32x384xf32> to vector<32x128xf32>
    %167 = vector.extract_strided_slice %164 {offsets = [0, 256], sizes = [32, 128], strides = [1, 1]} : vector<32x384xf32> to vector<32x128xf32>
    %168 = vector.extract_strided_slice %158 {offsets = [0, 384], sizes = [32, 128], strides = [1, 1]} : vector<32x512xf32> to vector<32x128xf32>
    %169 = math.tanh %168 : vector<32x128xf32>
    %170 = arith.mulf %166, %149 : vector<32x128xf32>
    %171 = arith.mulf %165, %169 : vector<32x128xf32>
    %172 = arith.addf %170, %171 : vector<32x128xf32>
    %173 = math.tanh %172 : vector<32x128xf32>
    %174 = arith.mulf %167, %173 : vector<32x128xf32>
    %c7_i32 = arith.constant 7 : i32
    %c32_i32_56 = arith.constant 32 : i32
    %175 = arith.muli %c7_i32, %c32_i32_56 : i32
    %176 = tpu.assume_multiple %175, 32 : i32
    %177 = arith.index_cast %176 : i32 to index
    %c0_57 = arith.constant 0 : index
    %178 = vector.load %arg7[%177, %c0_57] : memref<256x512xf32, #tpu.memory_space<vmem>>, vector<32x512xf32>
    %c0_58 = arith.constant 0 : index
    %c0_59 = arith.constant 0 : index
    %179 = vector.load %arg4[%c0_58, %c0_59] : memref<128x512xf32, #tpu.memory_space<vmem>>, vector<128x512xf32>
    %cst_60 = arith.constant dense<0.000000e+00> : vector<32x512xf32>
    %180 = tpu.matmul %174, %179, %cst_60 {dimension_numbers = #tpu.dot_dimension_numbers<[1], [0], [0], [1], [0, 0, 1, 1], [], []>} : vector<32x128xf32>, vector<128x512xf32>, vector<32x512xf32> -> vector<32x512xf32>
    %181 = arith.addf %178, %180 : vector<32x512xf32>
    %182 = vector.extract_strided_slice %181 {offsets = [0, 0], sizes = [32, 384], strides = [1, 1]} : vector<32x512xf32> to vector<32x384xf32>
    %183 = arith.negf %182 : vector<32x384xf32>
    %184 = math.exp %183 : vector<32x384xf32>
    %cst_61 = arith.constant 1.000000e+00 : f32
    %185 = vector.broadcast %cst_61 : f32 to vector<32x384xf32>
    %186 = arith.addf %185, %184 : vector<32x384xf32>
    %187 = arith.divf %185, %186 : vector<32x384xf32>
    %188 = vector.extract_strided_slice %187 {offsets = [0, 0], sizes = [32, 128], strides = [1, 1]} : vector<32x384xf32> to vector<32x128xf32>
    %189 = vector.extract_strided_slice %187 {offsets = [0, 128], sizes = [32, 128], strides = [1, 1]} : vector<32x384xf32> to vector<32x128xf32>
    %190 = vector.extract_strided_slice %187 {offsets = [0, 256], sizes = [32, 128], strides = [1, 1]} : vector<32x384xf32> to vector<32x128xf32>
    %191 = vector.extract_strided_slice %181 {offsets = [0, 384], sizes = [32, 128], strides = [1, 1]} : vector<32x512xf32> to vector<32x128xf32>
    %192 = math.tanh %191 : vector<32x128xf32>
    %193 = arith.mulf %189, %172 : vector<32x128xf32>
    %194 = arith.mulf %188, %192 : vector<32x128xf32>
    %195 = arith.addf %193, %194 : vector<32x128xf32>
    %196 = math.tanh %195 : vector<32x128xf32>
    %197 = arith.mulf %190, %196 : vector<32x128xf32>
    %c8_i32 = arith.constant 8 : i32
    %c0_62 = arith.constant 0 : index
    %c0_63 = arith.constant 0 : index
    %198 = vector.load %arg8[%c0_62, %c0_63] : memref<32x128xf32, #tpu.memory_space<vmem>>, vector<32x128xf32>
    tpu.vector_store %arg8[%c0_62, %c0_63], %197 {strides = array<i32>} : memref<32x128xf32, #tpu.memory_space<vmem>>, vector<32x128xf32>,
    %c0_64 = arith.constant 0 : index
    %c0_65 = arith.constant 0 : index
    %199 = vector.load %arg9[%c0_64, %c0_65] : memref<32x128xf32, #tpu.memory_space<vmem>>, vector<32x128xf32>
    tpu.vector_store %arg9[%c0_64, %c0_65], %195 {strides = array<i32>} : memref<32x128xf32, #tpu.memory_space<vmem>>, vector<32x128xf32>,
    %c0_i32_66 = arith.constant 0 : i32
    %200 = arith.cmpi eq, %arg1, %c0_i32_66 : i32
    %201 = arith.extui %200 : i1 to i32
    %c0_i32_67 = arith.constant 0 : i32
    %202 = arith.cmpi ne, %201, %c0_i32_67 : i32
    scf.if %202 {
      %c0_68 = arith.constant 0 : index
      %c0_69 = arith.constant 0 : index
      %203 = vector.load %arg6[%c0_68, %c0_69] : memref<32x128xf32, #tpu.memory_space<vmem>>, vector<32x128xf32>
      tpu.vector_store %arg6[%c0_68, %c0_69], %197 {strides = array<i32>} : memref<32x128xf32, #tpu.memory_space<vmem>>, vector<32x128xf32>,
    } else {
    }
    return
  }
  func.func @transform_0(%arg0: i32, %arg1: i32) -> (i32, i32, i32, i32) {
    %c0_i32 = arith.constant 0 : i32
    %c0_i32_0 = arith.constant 0 : i32
    %c0_i32_1 = arith.constant 0 : i32
    return %arg1, %c0_i32, %arg0, %c0_i32_0 : i32, i32, i32, i32
  }
  func.func @transform_1(%arg0: i32, %arg1: i32) -> (i32, i32) {
    %c0_i32 = arith.constant 0 : i32
    %c0_i32_0 = arith.constant 0 : i32
    %c0_i32_1 = arith.constant 0 : i32
    return %c0_i32, %c0_i32_0 : i32, i32
  }
  func.func @transform_2(%arg0: i32, %arg1: i32) -> (i32, i32) {
    %c0_i32 = arith.constant 0 : i32
    %c0_i32_0 = arith.constant 0 : i32
    %c0_i32_1 = arith.constant 0 : i32
    return %c0_i32, %c0_i32_0 : i32, i32
  }
  func.func @transform_3(%arg0: i32, %arg1: i32) -> (i32, i32) {
    %c0_i32 = arith.constant 0 : i32
    %c0_i32_0 = arith.constant 0 : i32
    %c0_i32_1 = arith.constant 0 : i32
    return %c0_i32, %c0_i32_0 : i32, i32
  }
  func.func @transform_4(%arg0: i32, %arg1: i32) -> (i32, i32) {
    %c0_i32 = arith.constant 0 : i32
    %c0_i32_0 = arith.constant 0 : i32
    return %arg0, %c0_i32 : i32, i32
  }
}

</mosaic_0001>

<llo_original>
// kernel: tpu_custom_call.1
$region0: #{tpu_custom_call.1}
  #allocation0 [shape = 'u32[]', space=smem, size = 0x4, offset = 0x4, fixed_abs, tag = 'smem constant byte address 0x4 - core index']
  #allocation1 [shape = 'u32[144,128]{1,0:T(1,128)}', space=vmem, size = 0x12000, scoped, tag = 'internal scratch']
  #allocation2 [shape = 'f32[256,512]{1,0:T(8,128)}', space=vmem, size = 0x80000, scoped, tag = 'scratch operand']
  #allocation3 [shape = 'f32[32,128]{1,0:T(8,128)}', space=vmem, size = 0x4000, scoped, tag = 'scratch operand']
  #allocation4 [shape = 'f32[32,128]{1,0:T(8,128)}', space=vmem, size = 0x4000, scoped, tag = 'scratch operand']
  %s0 = inlined_call_operand.hbm [shape: f32[1,8,32,128], index: 0, kind: input, shape index: {}]
  %s1 = inlined_call_operand.hbm [shape: f32[128,512], index: 1, kind: input, shape index: {}]
  %s2 = inlined_call_operand.hbm [shape: f32[128,512], index: 2, kind: input, shape index: {}]
  %s3 = inlined_call_operand.vmem [shape: f32[1,512], index: 3, kind: input, shape index: {}]
  %s4 = inlined_call_operand.hbm [shape: f32[32,128], index: 4, kind: output, shape index: {}]
  %s5 = sld [smem:[#allocation0]]
  $region46: #{tpu_custom_call.1} parent=0
    _
  %s7 = ssub.s32 1, %s5
  %s8 = scalar_select 0, %s7, %s5
  $region1: #{tpu_custom_call.1} parent=0
    #allocation5 [shape = 'u8[131072]{0}', space=vmem, size = 0x20000, scoped, tag = 'input window, operand 0, single buffered']
    #allocation6 [shape = 's32[1]{0}', space=sflag, size = 0x4, scoped, tag = 'scoped memory for tpu_custom_call.1']
    #allocation7 [shape = 's32[1]{0}', space=sflag, size = 0x4, scoped, tag = 'scoped memory for tpu_custom_call.1']
    #allocation8 [shape = 'u8[262144]{0}', space=vmem, size = 0x40000, scoped, tag = 'input window, operand 1, single buffered']
    #allocation9 [shape = 's32[1]{0}', space=sflag, size = 0x4, scoped, tag = 'scoped memory for tpu_custom_call.1']
    #allocation10 [shape = 'u8[262144]{0}', space=vmem, size = 0x40000, scoped, tag = 'input window, operand 2, single buffered']
    #allocation11 [shape = 'u8[16384]{0}', space=vmem, size = 0x4000, scoped, tag = 'output window, operand 0, single buffered']
    %9 = vsyncpa [#allocation6], 0
    %10 = vsyncpa [#allocation9], 0
    %11 = vsyncpa [#allocation7], 0
    // Predicated region
    $region2: #{tpu_custom_call.1} parent=1 // pred_check
      _
    $region3: #{tpu_custom_call.1} parent=1 // pred_check_branch
      %13 = sbr.rel (0) target = $region5
    $region4: #{tpu_custom_call.1} parent=1 // pred_region
      %s15 = ssub.s32 4096, 4096
      %16 = vsyncadd [#allocation6], %s15
      %s17 = sshll.u32 [#allocation5], 4
      %s18 = int_to_ptr.vmem [resolvable:$true] %s17
      %23 = dma.hbm_to_vmem [thread:$0]  %s0, 4096, %s18, [#allocation6], 128, 128, 8
    $region5: #{tpu_custom_call.1} parent=1 // pred_fallthru
      _
    // Predicated region
    $region6: #{tpu_custom_call.1} parent=1 // pred_check
      _
    $region7: #{tpu_custom_call.1} parent=1 // pred_check_branch
      %25 = sbr.rel (0) target = $region9
    $region8: #{tpu_custom_call.1} parent=1 // pred_region
      %s27 = ssub.s32 8192, 8192
      %28 = vsyncadd [#allocation9], %s27
      %s29 = sshll.u32 [#allocation8], 4
      %s30 = int_to_ptr.vmem [resolvable:$true] %s29
      %35 = dma.hbm_to_vmem [thread:$0]  %s1, 8192, %s30, [#allocation9], 512, 512, 32
    $region9: #{tpu_custom_call.1} parent=1 // pred_fallthru
      _
    // Predicated region
    $region10: #{tpu_custom_call.1} parent=1 // pred_check
      _
    $region11: #{tpu_custom_call.1} parent=1 // pred_check_branch
      %37 = sbr.rel (0) target = $region13
    $region12: #{tpu_custom_call.1} parent=1 // pred_region
      %s39 = ssub.s32 8192, 8192
      %40 = vsyncadd [#allocation9], %s39
      %s41 = sshll.u32 [#allocation10], 4
      %s42 = int_to_ptr.vmem [resolvable:$true] %s41
      %47 = dma.hbm_to_vmem [thread:$0]  %s2, 8192, %s42, [#allocation9], 512, 512, 32
    $region13: #{tpu_custom_call.1} parent=1 // pred_fallthru
      _
    // Predicated region
    $region14: #{tpu_custom_call.1} parent=1 // pred_check
      _
    $region15: #{tpu_custom_call.1} parent=1 // pred_check_branch
      %49 = sbr.rel (0) target = $region17
    $region16: #{tpu_custom_call.1} parent=1 // pred_region
      _
    $region17: #{tpu_custom_call.1} parent=1 // pred_fallthru
      _
    // Predicated region
    $region18: #{tpu_custom_call.1} parent=1 // pred_check
      _
    $region19: #{tpu_custom_call.1} parent=1 // pred_check_branch
      %51 = sbr.rel (0) target = $region21
    $region20: #{tpu_custom_call.1} parent=1 // pred_region
      %52 = dma.done [#allocation6], 4096
    $region21: #{tpu_custom_call.1} parent=1 // pred_fallthru
      _
    // Predicated region
    $region22: #{tpu_custom_call.1} parent=1 // pred_check
      _
    $region23: #{tpu_custom_call.1} parent=1 // pred_check_branch
      %54 = sbr.rel (0) target = $region25
    $region24: #{tpu_custom_call.1} parent=1 // pred_region
      %55 = dma.done [#allocation9], 8192
    $region25: #{tpu_custom_call.1} parent=1 // pred_fallthru
      _
    // Predicated region
    $region26: #{tpu_custom_call.1} parent=1 // pred_check
      _
    $region27: #{tpu_custom_call.1} parent=1 // pred_check_branch
      %57 = sbr.rel (0) target = $region29
    $region28: #{tpu_custom_call.1} parent=1 // pred_region
      %58 = dma.done [#allocation9], 8192
    $region29: #{tpu_custom_call.1} parent=1 // pred_fallthru
      _
    %p59 = scmp.eq.s32.totalorder 0, 0
    // Predicated region
    $region30: #{tpu_custom_call.1} parent=1 // pred_check
      %p60 = pneg %p59
    $region31: #{tpu_custom_call.1} parent=1 // pred_check_branch
      %62 = sbr.rel (%p60) target = $region33
    $region32: #{tpu_custom_call.1} parent=1 // pred_region
      %63 = vst [vmem:[#allocation3] sm:$0xff] 0.0
      %64 = vst [vmem:[#allocation3 + $0x8] sm:$0xff] 0.0
      %65 = vst [vmem:[#allocation3 + $0x10] sm:$0xff] 0.0
      %66 = vst [vmem:[#allocation3 + $0x18] sm:$0xff] 0.0
      %67 = vst [vmem:[#allocation4] sm:$0xff] 0.0
      %68 = vst [vmem:[#allocation4 + $0x8] sm:$0xff] 0.0
      %69 = vst [vmem:[#allocation4 + $0x10] sm:$0xff] 0.0
      %70 = vst [vmem:[#allocation4 + $0x18] sm:$0xff] 0.0
    $region33: #{tpu_custom_call.1} parent=1 // pred_fallthru
      _
    %v71 = vld [vmem:[#allocation5] sm:$0xff]
    %v72 = vld [vmem:[#allocation5 + $0x8] sm:$0xff]
    %v73 = vld [vmem:[#allocation5 + $0x10] sm:$0xff]
    %v74 = vld [vmem:[#allocation5 + $0x18] sm:$0xff]
    %v75 = vld [vmem:[#allocation5 + $0x20] sm:$0xff]
    %v76 = vld [vmem:[#allocation5 + $0x28] sm:$0xff]
    %v77 = vld [vmem:[#allocation5 + $0x30] sm:$0xff]
    %v78 = vld [vmem:[#allocation5 + $0x38] sm:$0xff]
    %v79 = vld [vmem:[#allocation5 + $0x40] sm:$0xff]
    %v80 = vld [vmem:[#allocation5 + $0x48] sm:$0xff]
    %v81 = vld [vmem:[#allocation5 + $0x50] sm:$0xff]
    %v82 = vld [vmem:[#allocation5 + $0x58] sm:$0xff]
    %v83 = vld [vmem:[#allocation5 + $0x60] sm:$0xff]
    %v84 = vld [vmem:[#allocation5 + $0x68] sm:$0xff]
    %v85 = vld [vmem:[#allocation5 + $0x70] sm:$0xff]
    %v86 = vld [vmem:[#allocation5 + $0x78] sm:$0xff]
    %v87 = vld [vmem:[#allocation5 + $0x80] sm:$0xff]
    %v88 = vld [vmem:[#allocation5 + $0x88] sm:$0xff]
    %v89 = vld [vmem:[#allocation5 + $0x90] sm:$0xff]
    %v90 = vld [vmem:[#allocation5 + $0x98] sm:$0xff]
    %v91 = vld [vmem:[#allocation5 + $0xa0] sm:$0xff]
    %v92 = vld [vmem:[#allocation5 + $0xa8] sm:$0xff]
    %v93 = vld [vmem:[#allocation5 + $0xb0] sm:$0xff]
    %v94 = vld [vmem:[#allocation5 + $0xb8] sm:$0xff]
    %v95 = vld [vmem:[#allocation5 + $0xc0] sm:$0xff]
    %v96 = vld [vmem:[#allocation5 + $0xc8] sm:$0xff]
    %v97 = vld [vmem:[#allocation5 + $0xd0] sm:$0xff]
    %v98 = vld [vmem:[#allocation5 + $0xd8] sm:$0xff]
    %v99 = vld [vmem:[#allocation5 + $0xe0] sm:$0xff]
    %v100 = vld [vmem:[#allocation5 + $0xe8] sm:$0xff]
    %v101 = vld [vmem:[#allocation5 + $0xf0] sm:$0xff]
    %v102 = vld [vmem:[#allocation5 + $0xf8] sm:$0xff]
    %v103 = vld [vmem:[#allocation8] sm:$0xff]
    %v104 = vld [vmem:[#allocation8 + $0x8] sm:$0xff]
    %v105 = vld [vmem:[#allocation8 + $0x10] sm:$0xff]
    %v106 = vld [vmem:[#allocation8 + $0x18] sm:$0xff]
    %v107 = vld [vmem:[#allocation8 + $0x20] sm:$0xff]
    %v108 = vld [vmem:[#allocation8 + $0x28] sm:$0xff]
    %v109 = vld [vmem:[#allocation8 + $0x30] sm:$0xff]
    %v110 = vld [vmem:[#allocation8 + $0x38] sm:$0xff]
    %v111 = vld [vmem:[#allocation8 + $0x40] sm:$0xff]
    %v112 = vld [vmem:[#allocation8 + $0x48] sm:$0xff]
    %v113 = vld [vmem:[#allocation8 + $0x50] sm:$0xff]
    %v114 = vld [vmem:[#allocation8 + $0x58] sm:$0xff]
    %v115 = vld [vmem:[#allocation8 + $0x60] sm:$0xff]
    %v116 = vld [vmem:[#allocation8 + $0x68] sm:$0xff]
    %v117 = vld [vmem:[#allocation8 + $0x70] sm:$0xff]
    %v118 = vld [vmem:[#allocation8 + $0x78] sm:$0xff]
    %v119 = vld [vmem:[#allocation8 + $0x80] sm:$0xff]
    %v120 = vld [vmem:[#allocation8 + $0x88] sm:$0xff]
    %v121 = vld [vmem:[#allocation8 + $0x90] sm:$0xff]
    %v122 = vld [vmem:[#allocation8 + $0x98] sm:$0xff]
    %v123 = vld [vmem:[#allocation8 + $0xa0] sm:$0xff]
    %v124 = vld [vmem:[#allocation8 + $0xa8] sm:$0xff]
    %v125 = vld [vmem:[#allocation8 + $0xb0] sm:$0xff]
    %v126 = vld [vmem:[#allocation8 + $0xb8] sm:$0xff]
    %v127 = vld [vmem:[#allocation8 + $0xc0] sm:$0xff]
    %v128 = vld [vmem:[#allocation8 + $0xc8] sm:$0xff]
    %v129 = vld [vmem:[#allocation8 + $0xd0] sm:$0xff]
    %v130 = vld [vmem:[#allocation8 + $0xd8] sm:$0xff]
    %v131 = vld [vmem:[#allocation8 + $0xe0] sm:$0xff]
    %v132 = vld [vmem:[#allocation8 + $0xe8] sm:$0xff]
    %v133 = vld [vmem:[#allocation8 + $0xf0] sm:$0xff]
    %v134 = vld [vmem:[#allocation8 + $0xf8] sm:$0xff]
    %v135 = vld [vmem:[#allocation8 + $0x100] sm:$0xff]
    %v136 = vld [vmem:[#allocation8 + $0x108] sm:$0xff]
    %v137 = vld [vmem:[#allocation8 + $0x110] sm:$0xff]
    %v138 = vld [vmem:[#allocation8 + $0x118] sm:$0xff]
    %v139 = vld [vmem:[#allocation8 + $0x120] sm:$0xff]
    %v140 = vld [vmem:[#allocation8 + $0x128] sm:$0xff]
    %v141 = vld [vmem:[#allocation8 + $0x130] sm:$0xff]
    %v142 = vld [vmem:[#allocation8 + $0x138] sm:$0xff]
    %v143 = vld [vmem:[#allocation8 + $0x140] sm:$0xff]
    %v144 = vld [vmem:[#allocation8 + $0x148] sm:$0xff]
    %v145 = vld [vmem:[#allocation8 + $0x150] sm:$0xff]
    %v146 = vld [vmem:[#allocation8 + $0x158] sm:$0xff]
    %v147 = vld [vmem:[#allocation8 + $0x160] sm:$0xff]
    %v148 = vld [vmem:[#allocation8 + $0x168] sm:$0xff]
    %v149 = vld [vmem:[#allocation8 + $0x170] sm:$0xff]
    %v150 = vld [vmem:[#allocation8 + $0x178] sm:$0xff]
    %v151 = vld [vmem:[#allocation8 + $0x180] sm:$0xff]
    %v152 = vld [vmem:[#allocation8 + $0x188] sm:$0xff]
    %v153 = vld [vmem:[#allocation8 + $0x190] sm:$0xff]
    %v154 = vld [vmem:[#allocation8 + $0x198] sm:$0xff]
    %v155 = vld [vmem:[#allocation8 + $0x1a0] sm:$0xff]
    %v156 = vld [vmem:[#allocation8 + $0x1a8] sm:$0xff]
    %v157 = vld [vmem:[#allocation8 + $0x1b0] sm:$0xff]
    %v158 = vld [vmem:[#allocation8 + $0x1b8] sm:$0xff]
    %v159 = vld [vmem:[#allocation8 + $0x1c0] sm:$0xff]
    %v160 = vld [vmem:[#allocation8 + $0x1c8] sm:$0xff]
    %v161 = vld [vmem:[#allocation8 + $0x1d0] sm:$0xff]
    %v162 = vld [vmem:[#allocation8 + $0x1d8] sm:$0xff]
    %v163 = vld [vmem:[#allocation8 + $0x1e0] sm:$0xff]
    %v164 = vld [vmem:[#allocation8 + $0x1e8] sm:$0xff]
    %v165 = vld [vmem:[#allocation8 + $0x1f0] sm:$0xff]
    %v166 = vld [vmem:[#allocation8 + $0x1f8] sm:$0xff]
    %v167 = vld [vmem:[%s3] sm:$0xf]
    %v169 = vlaneseq
    %v170 = vshrl.u32 %v169, 7
    %v171 = vsub.s32 0, %v170
    %v172 = vrot.slane %v167, %v171
    %v173 = vlaneseq
    %v174 = vshrl.u32 %v173, 7
    %v175 = vsub.s32 1, %v174
    %v176 = vrot.slane %v167, %v175
    %v177 = vlaneseq
    %v178 = vshrl.u32 %v177, 7
    %v179 = vsub.s32 2, %v178
    %v180 = vrot.slane %v167, %v179
    %v181 = vlaneseq
    %v182 = vshrl.u32 %v181, 7
    %v183 = vsub.s32 3, %v182
    %v184 = vrot.slane %v167, %v183
    %189 = vmatprep.subr.mxu0 %v104
    %190 = vmatpush1.msra.mxu0 %v103
    %191 = vmatprep.subr.mxu0 %v108
    %192 = vmatpush1.msra.mxu0 %v107
    %193 = vmatprep.subr.mxu0 %v112
    %194 = vmatpush1.msra.mxu0 %v111
    %195 = vmatprep.subr.mxu0 %v116
    %196 = vmatpush1.msra.mxu0 %v115
    %197 = vmatprep.subr.mxu0 %v120
    %198 = vmatpush1.msra.mxu0 %v119
    %199 = vmatprep.subr.mxu0 %v124
    %200 = vmatpush1.msra.mxu0 %v123
    %201 = vmatprep.subr.mxu0 %v128
    %202 = vmatpush1.msra.mxu0 %v127
    %203 = vmatprep.subr.mxu0 %v132
    %204 = vmatpush1.msra.mxu0 %v131
    %205 = vmatprep.subr.mxu0 %v136
    %206 = vmatpush1.msra.mxu0 %v135
    %207 = vmatprep.subr.mxu0 %v140
    %208 = vmatpush1.msra.mxu0 %v139
    %209 = vmatprep.subr.mxu0 %v144
    %210 = vmatpush1.msra.mxu0 %v143
    %211 = vmatprep.subr.mxu0 %v148
    %212 = vmatpush1.msra.mxu0 %v147
    %213 = vmatprep.subr.mxu0 %v152
    %214 = vmatpush1.msra.mxu0 %v151
    %215 = vmatprep.subr.mxu0 %v156
    %216 = vmatpush1.msra.mxu0 %v155
    %217 = vmatprep.subr.mxu0 %v160
    %218 = vmatpush1.msra.mxu0 %v159
    %219 = vmatprep.subr.mxu0 %v164
    %220 = vmatpush1.msra.mxu0 %v163
    %221 = vmatprep.subr.mxu0 0.0
    %222 = vmatpush1.msra.mxu0 0.0
    %223 = vmatprep.subr.mxu0 0.0
    %224 = vmatpush1.msra.mxu0 0.0
    %225 = vmatprep.subr.mxu0 0.0
    %226 = vmatpush1.msra.mxu0 0.0
    %227 = vmatprep.subr.mxu0 0.0
    %228 = vmatpush1.msra.mxu0 0.0
    %229 = vmatprep.subr.mxu0 0.0
    %230 = vmatpush1.msra.mxu0 0.0
    %231 = vmatprep.subr.mxu0 0.0
    %232 = vmatpush1.msra.mxu0 0.0
    %233 = vmatprep.subr.mxu0 0.0
    %234 = vmatpush1.msra.mxu0 0.0
    %235 = vmatprep.subr.mxu0 0.0
    %236 = vmatpush1.msra.mxu0 0.0
    %237 = vmatprep.subr.mxu0 0.0
    %238 = vmatpush1.msra.mxu0 0.0
    %239 = vmatprep.subr.mxu0 0.0
    %240 = vmatpush1.msra.mxu0 0.0
    %241 = vmatprep.subr.mxu0 0.0
    %242 = vmatpush1.msra.mxu0 0.0
    %243 = vmatprep.subr.mxu0 0.0
    %244 = vmatpush1.msra.mxu0 0.0
    %245 = vmatprep.subr.mxu0 0.0
    %246 = vmatpush1.msra.mxu0 0.0
    %247 = vmatprep.subr.mxu0 0.0
    %248 = vmatpush1.msra.mxu0 0.0
    %249 = vmatprep.subr.mxu0 0.0
    %250 = vmatpush1.msra.mxu0 0.0
    %251 = vmatprep.subr.mxu0 0.0
    %252 = vmatpush1.msra.mxu0 0.0
    %253 = vmatprep.mubr.f32.mxu0 0.0
    %254 = vmatmul.mubr.f32.gmra.mrb[0].mxu0 %v71
    %v255 = vpop.f32.mrb[0].mxu0
    %v256 = vadd.f32 %v172, %v255
    %v257 = vpop.f32.mrb[0].mxu0
    %v258 = vadd.f32 %v176, %v257
    %259 = vmatprep.mubr.f32.mxu0 0.0
    %260 = vmatmul.mubr.f32.gmra.mrb[0].mxu0 %v72
    %v261 = vpop.f32.mrb[0].mxu0
    %v262 = vadd.f32 %v172, %v261
    %v263 = vpop.f32.mrb[0].mxu0
    %v264 = vadd.f32 %v176, %v263
    %265 = vmatprep.mubr.f32.mxu0 0.0
    %266 = vmatmul.mubr.f32.gmra.mrb[0].mxu0 %v73
    %v267 = vpop.f32.mrb[0].mxu0
    %v268 = vadd.f32 %v172, %v267
    %v269 = vpop.f32.mrb[0].mxu0
    %v270 = vadd.f32 %v176, %v269
    %271 = vmatprep.mubr.f32.mxu0 0.0
    %272 = vmatmul.mubr.f32.gmra.mrb[0].mxu0 %v74
    %v273 = vpop.f32.mrb[0].mxu0
    %v274 = vadd.f32 %v172, %v273
    %v275 = vpop.f32.mrb[0].mxu0
    %v276 = vadd.f32 %v176, %v275
    %277 = vmatprep.mubr.f32.mxu0 0.0
    %278 = vmatmul.mubr.f32.gmra.mrb[0].mxu0 %v75
    %v279 = vpop.f32.mrb[0].mxu0
    %v280 = vadd.f32 %v172, %v279
    %v281 = vpop.f32.mrb[0].mxu0
    %v282 = vadd.f32 %v176, %v281
    %283 = vmatprep.mubr.f32.mxu0 0.0
    %284 = vmatmul.mubr.f32.gmra.mrb[0].mxu0 %v76
    %v285 = vpop.f32.mrb[0].mxu0
    %v286 = vadd.f32 %v172, %v285
    %v287 = vpop.f32.mrb[0].mxu0
    %v288 = vadd.f32 %v176, %v287
    %289 = vmatprep.mubr.f32.mxu0 0.0
    %290 = vmatmul.mubr.f32.gmra.mrb[0].mxu0 %v77
    %v291 = vpop.f32.mrb[0].mxu0
    %v292 = vadd.f32 %v172, %v291
    %v293 = vpop.f32.mrb[0].mxu0
    %v294 = vadd.f32 %v176, %v293
    %295 = vmatprep.mubr.f32.mxu0 0.0
    %296 = vmatmul.mubr.f32.gmra.mrb[0].mxu0 %v78
    %v297 = vpop.f32.mrb[0].mxu0
    %v298 = vadd.f32 %v172, %v297
    %v299 = vpop.f32.mrb[0].mxu0
    %v300 = vadd.f32 %v176, %v299
    %301 = vmatprep.mubr.f32.mxu0 0.0
    %302 = vmatmul.mubr.f32.gmra.mrb[0].mxu0 %v79
    %v303 = vpop.f32.mrb[0].mxu0
    %v304 = vadd.f32 %v172, %v303
    %v305 = vpop.f32.mrb[0].mxu0
    %v306 = vadd.f32 %v176, %v305
    %307 = vmatprep.mubr.f32.mxu0 0.0
    %308 = vmatmul.mubr.f32.gmra.mrb[0].mxu0 %v80
    %v309 = vpop.f32.mrb[0].mxu0
    %v310 = vadd.f32 %v172, %v309
    %v311 = vpop.f32.mrb[0].mxu0
    %v312 = vadd.f32 %v176, %v311
    %313 = vmatprep.mubr.f32.mxu0 0.0
    %314 = vmatmul.mubr.f32.gmra.mrb[0].mxu0 %v81
    %v315 = vpop.f32.mrb[0].mxu0
    %v316 = vadd.f32 %v172, %v315
    %v317 = vpop.f32.mrb[0].mxu0
    %v318 = vadd.f32 %v176, %v317
    %319 = vmatprep.mubr.f32.mxu0 0.0
    %320 = vmatmul.mubr.f32.gmra.mrb[0].mxu0 %v82
    %v321 = vpop.f32.mrb[0].mxu0
    %v322 = vadd.f32 %v172, %v321
    %v323 = vpop.f32.mrb[0].mxu0
    %v324 = vadd.f32 %v176, %v323
    %325 = vmatprep.mubr.f32.mxu0 0.0
    %326 = vmatmul.mubr.f32.gmra.mrb[0].mxu0 %v83
    %v327 = vpop.f32.mrb[0].mxu0
    %v328 = vadd.f32 %v172, %v327
    %v329 = vpop.f32.mrb[0].mxu0
    %v330 = vadd.f32 %v176, %v329
    %331 = vmatprep.mubr.f32.mxu0 0.0
    %332 = vmatmul.mubr.f32.gmra.mrb[0].mxu0 %v84
    %v333 = vpop.f32.mrb[0].mxu0
    %v334 = vadd.f32 %v172, %v333
    %v335 = vpop.f32.mrb[0].mxu0
    %v336 = vadd.f32 %v176, %v335
    %337 = vmatprep.mubr.f32.mxu0 0.0
    %338 = vmatmul.mubr.f32.gmra.mrb[0].mxu0 %v85
    %v339 = vpop.f32.mrb[0].mxu0
    %v340 = vadd.f32 %v172, %v339
    %v341 = vpop.f32.mrb[0].mxu0
    %v342 = vadd.f32 %v176, %v341
    %343 = vmatprep.mubr.f32.mxu0 0.0
    %344 = vmatmul.mubr.f32.gmra.mrb[0].mxu0 %v86
    %v345 = vpop.f32.mrb[0].mxu0
    %v346 = vadd.f32 %v172, %v345
    %v347 = vpop.f32.mrb[0].mxu0
    %v348 = vadd.f32 %v176, %v347
    %349 = vmatprep.mubr.f32.mxu0 0.0
    %350 = vmatmul.mubr.f32.gmra.mrb[0].mxu0 %v87
    %v351 = vpop.f32.mrb[0].mxu0
    %v352 = vadd.f32 %v172, %v351
    %v353 = vpop.f32.mrb[0].mxu0
    %v354 = vadd.f32 %v176, %v353
    %355 = vmatprep.mubr.f32.mxu0 0.0
    %356 = vmatmul.mubr.f32.gmra.mrb[0].mxu0 %v88
    %v357 = vpop.f32.mrb[0].mxu0
    %v358 = vadd.f32 %v172, %v357
    %v359 = vpop.f32.mrb[0].mxu0
    %v360 = vadd.f32 %v176, %v359
    %361 = vmatprep.mubr.f32.mxu0 0.0
    %362 = vmatmul.mubr.f32.gmra.mrb[0].mxu0 %v89
    %v363 = vpop.f32.mrb[0].mxu0
    %v364 = vadd.f32 %v172, %v363
    %v365 = vpop.f32.mrb[0].mxu0
    %v366 = vadd.f32 %v176, %v365
    %367 = vmatprep.mubr.f32.mxu0 0.0
    %368 = vmatmul.mubr.f32.gmra.mrb[0].mxu0 %v90
    %v369 = vpop.f32.mrb[0].mxu0
    %v370 = vadd.f32 %v172, %v369
    %v371 = vpop.f32.mrb[0].mxu0
    %v372 = vadd.f32 %v176, %v371
    %373 = vmatprep.mubr.f32.mxu0 0.0
    %374 = vmatmul.mubr.f32.gmra.mrb[0].mxu0 %v91
    %v375 = vpop.f32.mrb[0].mxu0
    %v376 = vadd.f32 %v172, %v375
    %v377 = vpop.f32.mrb[0].mxu0
    %v378 = vadd.f32 %v176, %v377
    %379 = vmatprep.mubr.f32.mxu0 0.0
    %380 = vmatmul.mubr.f32.gmra.mrb[0].mxu0 %v92
    %v381 = vpop.f32.mrb[0].mxu0
    %v382 = vadd.f32 %v172, %v381
    %v383 = vpop.f32.mrb[0].mxu0
    %v384 = vadd.f32 %v176, %v383
    %385 = vmatprep.mubr.f32.mxu0 0.0
    %386 = vmatmul.mubr.f32.gmra.mrb[0].mxu0 %v93
    %v387 = vpop.f32.mrb[0].mxu0
    %v388 = vadd.f32 %v172, %v387
    %v389 = vpop.f32.mrb[0].mxu0
    %v390 = vadd.f32 %v176, %v389
    %391 = vmatprep.mubr.f32.mxu0 0.0
    %392 = vmatmul.mubr.f32.gmra.mrb[0].mxu0 %v94
    %v393 = vpop.f32.mrb[0].mxu0
    %v394 = vadd.f32 %v172, %v393
    %v395 = vpop.f32.mrb[0].mxu0
    %v396 = vadd.f32 %v176, %v395
    %397 = vmatprep.mubr.f32.mxu0 0.0
    %398 = vmatmul.mubr.f32.gmra.mrb[0].mxu0 %v95
    %v399 = vpop.f32.mrb[0].mxu0
    %v400 = vadd.f32 %v172, %v399
    %v401 = vpop.f32.mrb[0].mxu0
    %v402 = vadd.f32 %v176, %v401
    %403 = vmatprep.mubr.f32.mxu0 0.0
    %404 = vmatmul.mubr.f32.gmra.mrb[0].mxu0 %v96
    %v405 = vpop.f32.mrb[0].mxu0
    %v406 = vadd.f32 %v172, %v405
    %v407 = vpop.f32.mrb[0].mxu0
    %v408 = vadd.f32 %v176, %v407
    %409 = vmatprep.mubr.f32.mxu0 0.0
    %410 = vmatmul.mubr.f32.gmra.mrb[0].mxu0 %v97
    %v411 = vpop.f32.mrb[0].mxu0
    %v412 = vadd.f32 %v172, %v411
    %v413 = vpop.f32.mrb[0].mxu0
    %v414 = vadd.f32 %v176, %v413
    %415 = vmatprep.mubr.f32.mxu0 0.0
    %416 = vmatmul.mubr.f32.gmra.mrb[0].mxu0 %v98
    %v417 = vpop.f32.mrb[0].mxu0
    %v418 = vadd.f32 %v172, %v417
    %v419 = vpop.f32.mrb[0].mxu0
    %v420 = vadd.f32 %v176, %v419
    %421 = vmatprep.mubr.f32.mxu0 0.0
    %422 = vmatmul.mubr.f32.gmra.mrb[0].mxu0 %v99
    %v423 = vpop.f32.mrb[0].mxu0
    %v424 = vadd.f32 %v172, %v423
    %v425 = vpop.f32.mrb[0].mxu0
    %v426 = vadd.f32 %v176, %v425
    %427 = vmatprep.mubr.f32.mxu0 0.0
    %428 = vmatmul.mubr.f32.gmra.mrb[0].mxu0 %v100
    %v429 = vpop.f32.mrb[0].mxu0
    %v430 = vadd.f32 %v172, %v429
    %v431 = vpop.f32.mrb[0].mxu0
    %v432 = vadd.f32 %v176, %v431
    %433 = vmatprep.mubr.f32.mxu0 0.0
    %434 = vmatmul.mubr.f32.gmra.mrb[0].mxu0 %v101
    %v435 = vpop.f32.mrb[0].mxu0
    %v436 = vadd.f32 %v172, %v435
    %v437 = vpop.f32.mrb[0].mxu0
    %v438 = vadd.f32 %v176, %v437
    %439 = vmatprep.mubr.f32.mxu0 0.0
    %440 = vmatmul.mubr.f32.gmra.mrb[0].mxu0 %v102
    %v441 = vpop.f32.mrb[0].mxu0
    %v442 = vadd.f32 %v172, %v441
    %v443 = vpop.f32.mrb[0].mxu0
    %v444 = vadd.f32 %v176, %v443
    %445 = vdwg.mxu0
    %446 = vmatprep.subr.mxu0 %v106
    %447 = vmatpush1.msra.mxu0 %v105
    %448 = vmatprep.subr.mxu0 %v110
    %449 = vmatpush1.msra.mxu0 %v109
    %450 = vmatprep.subr.mxu0 %v114
    %451 = vmatpush1.msra.mxu0 %v113
    %452 = vmatprep.subr.mxu0 %v118
    %453 = vmatpush1.msra.mxu0 %v117
    %454 = vmatprep.subr.mxu0 %v122
    %455 = vmatpush1.msra.mxu0 %v121
    %456 = vmatprep.subr.mxu0 %v126
    %457 = vmatpush1.msra.mxu0 %v125
    %458 = vmatprep.subr.mxu0 %v130
    %459 = vmatpush1.msra.mxu0 %v129
    %460 = vmatprep.subr.mxu0 %v134
    %461 = vmatpush1.msra.mxu0 %v133
    %462 = vmatprep.subr.mxu0 %v138
    %463 = vmatpush1.msra.mxu0 %v137
    %464 = vmatprep.subr.mxu0 %v142
    %465 = vmatpush1.msra.mxu0 %v141
    %466 = vmatprep.subr.mxu0 %v146
    %467 = vmatpush1.msra.mxu0 %v145
    %468 = vmatprep.subr.mxu0 %v150
    %469 = vmatpush1.msra.mxu0 %v149
    %470 = vmatprep.subr.mxu0 %v154
    %471 = vmatpush1.msra.mxu0 %v153
    %472 = vmatprep.subr.mxu0 %v158
    %473 = vmatpush1.msra.mxu0 %v157
    %474 = vmatprep.subr.mxu0 %v162
    %475 = vmatpush1.msra.mxu0 %v161
    %476 = vmatprep.subr.mxu0 %v166
    %477 = vmatpush1.msra.mxu0 %v165
    %478 = vmatprep.subr.mxu0 0.0
    %479 = vmatpush1.msra.mxu0 0.0
    %480 = vmatprep.subr.mxu0 0.0
    %481 = vmatpush1.msra.mxu0 0.0
    %482 = vmatprep.subr.mxu0 0.0
    %483 = vmatpush1.msra.mxu0 0.0
    %484 = vmatprep.subr.mxu0 0.0
    %485 = vmatpush1.msra.mxu0 0.0
    %486 = vmatprep.subr.mxu0 0.0
    %487 = vmatpush1.msra.mxu0 0.0
    %488 = vmatprep.subr.mxu0 0.0
    %489 = vmatpush1.msra.mxu0 0.0
    %490 = vmatprep.subr.mxu0 0.0
    %491 = vmatpush1.msra.mxu0 0.0
    %492 = vmatprep.subr.mxu0 0.0
    %493 = vmatpush1.msra.mxu0 0.0
    %494 = vmatprep.subr.mxu0 0.0
    %495 = vmatpush1.msra.mxu0 0.0
    %496 = vmatprep.subr.mxu0 0.0
    %497 = vmatpush1.msra.mxu0 0.0
    %498 = vmatprep.subr.mxu0 0.0
    %499 = vmatpush1.msra.mxu0 0.0
    %500 = vmatprep.subr.mxu0 0.0
    %501 = vmatpush1.msra.mxu0 0.0
    %502 = vmatprep.subr.mxu0 0.0
    %503 = vmatpush1.msra.mxu0 0.0
    %504 = vmatprep.subr.mxu0 0.0
    %505 = vmatpush1.msra.mxu0 0.0
    %506 = vmatprep.subr.mxu0 0.0
    %507 = vmatpush1.msra.mxu0 0.0
    %508 = vmatprep.subr.mxu0 0.0
    %509 = vmatpush1.msra.mxu0 0.0
    %510 = vmatprep.mubr.f32.mxu0 0.0
    %511 = vmatmul.mubr.f32.gmra.mrb[0].mxu0 %v71
    %v512 = vpop.f32.mrb[0].mxu0
    %v513 = vadd.f32 %v180, %v512
    %v514 = vpop.f32.mrb[0].mxu0
    %v515 = vadd.f32 %v184, %v514
    %516 = vmatprep.mubr.f32.mxu0 0.0
    %517 = vmatmul.mubr.f32.gmra.mrb[0].mxu0 %v72
    %v518 = vpop.f32.mrb[0].mxu0
    %v519 = vadd.f32 %v180, %v518
    %v520 = vpop.f32.mrb[0].mxu0
    %v521 = vadd.f32 %v184, %v520
    %522 = vmatprep.mubr.f32.mxu0 0.0
    %523 = vmatmul.mubr.f32.gmra.mrb[0].mxu0 %v73
    %v524 = vpop.f32.mrb[0].mxu0
    %v525 = vadd.f32 %v180, %v524
    %v526 = vpop.f32.mrb[0].mxu0
    %v527 = vadd.f32 %v184, %v526
    %528 = vmatprep.mubr.f32.mxu0 0.0
    %529 = vmatmul.mubr.f32.gmra.mrb[0].mxu0 %v74
    %v530 = vpop.f32.mrb[0].mxu0
    %v531 = vadd.f32 %v180, %v530
    %v532 = vpop.f32.mrb[0].mxu0
    %v533 = vadd.f32 %v184, %v532
    %534 = vmatprep.mubr.f32.mxu0 0.0
    %535 = vmatmul.mubr.f32.gmra.mrb[0].mxu0 %v75
    %v536 = vpop.f32.mrb[0].mxu0
    %v537 = vadd.f32 %v180, %v536
    %v538 = vpop.f32.mrb[0].mxu0
    %v539 = vadd.f32 %v184, %v538
    %540 = vmatprep.mubr.f32.mxu0 0.0
    %541 = vmatmul.mubr.f32.gmra.mrb[0].mxu0 %v76
    %v542 = vpop.f32.mrb[0].mxu0
    %v543 = vadd.f32 %v180, %v542
    %v544 = vpop.f32.mrb[0].mxu0
    %v545 = vadd.f32 %v184, %v544
    %546 = vmatprep.mubr.f32.mxu0 0.0
    %547 = vmatmul.mubr.f32.gmra.mrb[0].mxu0 %v77
    %v548 = vpop.f32.mrb[0].mxu0
    %v549 = vadd.f32 %v180, %v548
    %v550 = vpop.f32.mrb[0].mxu0
    %v551 = vadd.f32 %v184, %v550
    %552 = vmatprep.mubr.f32.mxu0 0.0
    %553 = vmatmul.mubr.f32.gmra.mrb[0].mxu0 %v78
    %v554 = vpop.f32.mrb[0].mxu0
    %v555 = vadd.f32 %v180, %v554
    %v556 = vpop.f32.mrb[0].mxu0
    %v557 = vadd.f32 %v184, %v556
    %558 = vmatprep.mubr.f32.mxu0 0.0
    %559 = vmatmul.mubr.f32.gmra.mrb[0].mxu0 %v79
    %v560 = vpop.f32.mrb[0].mxu0
    %v561 = vadd.f32 %v180, %v560
    %v562 = vpop.f32.mrb[0].mxu0
    %v563 = vadd.f32 %v184, %v562
    %564 = vmatprep.mubr.f32.mxu0 0.0
    %565 = vmatmul.mubr.f32.gmra.mrb[0].mxu0 %v80
    %v566 = vpop.f32.mrb[0].mxu0
    %v567 = vadd.f32 %v180, %v566
    %v568 = vpop.f32.mrb[0].mxu0
    %v569 = vadd.f32 %v184, %v568
    %570 = vmatprep.mubr.f32.mxu0 0.0
    %571 = vmatmul.mubr.f32.gmra.mrb[0].mxu0 %v81
    %v572 = vpop.f32.mrb[0].mxu0
    %v573 = vadd.f32 %v180, %v572
    %v574 = vpop.f32.mrb[0].mxu0
    %v575 = vadd.f32 %v184, %v574
    %576 = vmatprep.mubr.f32.mxu0 0.0
    %577 = vmatmul.mubr.f32.gmra.mrb[0].mxu0 %v82
    %v578 = vpop.f32.mrb[0].mxu0
    %v579 = vadd.f32 %v180, %v578
    %v580 = vpop.f32.mrb[0].mxu0
    %v581 = vadd.f32 %v184, %v580
    %582 = vmatprep.mubr.f32.mxu0 0.0
    %583 = vmatmul.mubr.f32.gmra.mrb[0].mxu0 %v83
    %v584 = vpop.f32.mrb[0].mxu0
    %v585 = vadd.f32 %v180, %v584
    %v586 = vpop.f32.mrb[0].mxu0
    %v587 = vadd.f32 %v184, %v586
    %588 = vmatprep.mubr.f32.mxu0 0.0
    %589 = vmatmul.mubr.f32.gmra.mrb[0].mxu0 %v84
    %v590 = vpop.f32.mrb[0].mxu0
    %v591 = vadd.f32 %v180, %v590
    %v592 = vpop.f32.mrb[0].mxu0
    %v593 = vadd.f32 %v184, %v592
    %594 = vmatprep.mubr.f32.mxu0 0.0
    %595 = vmatmul.mubr.f32.gmra.mrb[0].mxu0 %v85
    %v596 = vpop.f32.mrb[0].mxu0
    %v597 = vadd.f32 %v180, %v596
    %v598 = vpop.f32.mrb[0].mxu0
    %v599 = vadd.f32 %v184, %v598
    %600 = vmatprep.mubr.f32.mxu0 0.0
    %601 = vmatmul.mubr.f32.gmra.mrb[0].mxu0 %v86
    %v602 = vpop.f32.mrb[0].mxu0
    %v603 = vadd.f32 %v180, %v602
    %v604 = vpop.f32.mrb[0].mxu0
    %v605 = vadd.f32 %v184, %v604
    %606 = vmatprep.mubr.f32.mxu0 0.0
    %607 = vmatmul.mubr.f32.gmra.mrb[0].mxu0 %v87
    %v608 = vpop.f32.mrb[0].mxu0
    %v609 = vadd.f32 %v180, %v608
    %v610 = vpop.f32.mrb[0].mxu0
    %v611 = vadd.f32 %v184, %v610
    %612 = vmatprep.mubr.f32.mxu0 0.0
    %613 = vmatmul.mubr.f32.gmra.mrb[0].mxu0 %v88
    %v614 = vpop.f32.mrb[0].mxu0
    %v615 = vadd.f32 %v180, %v614
    %v616 = vpop.f32.mrb[0].mxu0
    %v617 = vadd.f32 %v184, %v616
    %618 = vmatprep.mubr.f32.mxu0 0.0
    %619 = vmatmul.mubr.f32.gmra.mrb[0].mxu0 %v89
    %v620 = vpop.f32.mrb[0].mxu0
    %v621 = vadd.f32 %v180, %v620
    %v622 = vpop.f32.mrb[0].mxu0
    %v623 = vadd.f32 %v184, %v622
    %624 = vmatprep.mubr.f32.mxu0 0.0
    %625 = vmatmul.mubr.f32.gmra.mrb[0].mxu0 %v90
    %v626 = vpop.f32.mrb[0].mxu0
    %v627 = vadd.f32 %v180, %v626
    %v628 = vpop.f32.mrb[0].mxu0
    %v629 = vadd.f32 %v184, %v628
    %630 = vmatprep.mubr.f32.mxu0 0.0
    %631 = vmatmul.mubr.f32.gmra.mrb[0].mxu0 %v91
    %v632 = vpop.f32.mrb[0].mxu0
    %v633 = vadd.f32 %v180, %v632
    %v634 = vpop.f32.mrb[0].mxu0
    %v635 = vadd.f32 %v184, %v634
    %636 = vmatprep.mubr.f32.mxu0 0.0
    %637 = vmatmul.mubr.f32.gmra.mrb[0].mxu0 %v92
    %v638 = vpop.f32.mrb[0].mxu0
    %v639 = vadd.f32 %v180, %v638
    %v640 = vpop.f32.mrb[0].mxu0
    %v641 = vadd.f32 %v184, %v640
    %642 = vmatprep.mubr.f32.mxu0 0.0
    %643 = vmatmul.mubr.f32.gmra.mrb[0].mxu0 %v93
    %v644 = vpop.f32.mrb[0].mxu0
    %v645 = vadd.f32 %v180, %v644
    %v646 = vpop.f32.mrb[0].mxu0
    %v647 = vadd.f32 %v184, %v646
    %648 = vmatprep.mubr.f32.mxu0 0.0
    %649 = vmatmul.mubr.f32.gmra.mrb[0].mxu0 %v94
    %v650 = vpop.f32.mrb[0].mxu0
    %v651 = vadd.f32 %v180, %v650
    %v652 = vpop.f32.mrb[0].mxu0
    %v653 = vadd.f32 %v184, %v652
    %654 = vmatprep.mubr.f32.mxu0 0.0
    %655 = vmatmul.mubr.f32.gmra.mrb[0].mxu0 %v95
    %v656 = vpop.f32.mrb[0].mxu0
    %v657 = vadd.f32 %v180, %v656
    %v658 = vpop.f32.mrb[0].mxu0
    %v659 = vadd.f32 %v184, %v658
    %660 = vmatprep.mubr.f32.mxu0 0.0
    %661 = vmatmul.mubr.f32.gmra.mrb[0].mxu0 %v96
    %v662 = vpop.f32.mrb[0].mxu0
    %v663 = vadd.f32 %v180, %v662
    %v664 = vpop.f32.mrb[0].mxu0
    %v665 = vadd.f32 %v184, %v664
    %666 = vmatprep.mubr.f32.mxu0 0.0
    %667 = vmatmul.mubr.f32.gmra.mrb[0].mxu0 %v97
    %v668 = vpop.f32.mrb[0].mxu0
    %v669 = vadd.f32 %v180, %v668
    %v670 = vpop.f32.mrb[0].mxu0
    %v671 = vadd.f32 %v184, %v670
    %672 = vmatprep.mubr.f32.mxu0 0.0
    %673 = vmatmul.mubr.f32.gmra.mrb[0].mxu0 %v98
    %v674 = vpop.f32.mrb[0].mxu0
    %v675 = vadd.f32 %v180, %v674
    %v676 = vpop.f32.mrb[0].mxu0
    %v677 = vadd.f32 %v184, %v676
    %678 = vmatprep.mubr.f32.mxu0 0.0
    %679 = vmatmul.mubr.f32.gmra.mrb[0].mxu0 %v99
    %v680 = vpop.f32.mrb[0].mxu0
    %v681 = vadd.f32 %v180, %v680
    %v682 = vpop.f32.mrb[0].mxu0
    %v683 = vadd.f32 %v184, %v682
    %684 = vmatprep.mubr.f32.mxu0 0.0
    %685 = vmatmul.mubr.f32.gmra.mrb[0].mxu0 %v100
    %v686 = vpop.f32.mrb[0].mxu0
    %v687 = vadd.f32 %v180, %v686
    %v688 = vpop.f32.mrb[0].mxu0
    %v689 = vadd.f32 %v184, %v688
    %690 = vmatprep.mubr.f32.mxu0 0.0
    %691 = vmatmul.mubr.f32.gmra.mrb[0].mxu0 %v101
    %v692 = vpop.f32.mrb[0].mxu0
    %v693 = vadd.f32 %v180, %v692
    %v694 = vpop.f32.mrb[0].mxu0
    %v695 = vadd.f32 %v184, %v694
    %696 = vmatprep.mubr.f32.mxu0 0.0
    %697 = vmatmul.mubr.f32.gmra.mrb[0].mxu0 %v102
    %v698 = vpop.f32.mrb[0].mxu0
    %v699 = vadd.f32 %v180, %v698
    %v700 = vpop.f32.mrb[0].mxu0
    %v701 = vadd.f32 %v184, %v700
    %702 = vdwg.mxu0
    %703 = vst [vmem:[#allocation2] sm:$0xff] %v256
    %704 = vst [vmem:[#allocation2 + $0x8] sm:$0xff] %v258
    %705 = vst [vmem:[#allocation2 + $0x10] sm:$0xff] %v513
    %706 = vst [vmem:[#allocation2 + $0x18] sm:$0xff] %v515
    %707 = vst [vmem:[#allocation2 + $0x20] sm:$0xff] %v262
    %708 = vst [vmem:[#allocation2 + $0x28] sm:$0xff] %v264
    %709 = vst [vmem:[#allocation2 + $0x30] sm:$0xff] %v519
    %710 = vst [vmem:[#allocation2 + $0x38] sm:$0xff] %v521
    %711 = vst [vmem:[#allocation2 + $0x40] sm:$0xff] %v268
    %712 = vst [vmem:[#allocation2 + $0x48] sm:$0xff] %v270
    %713 = vst [vmem:[#allocation2 + $0x50] sm:$0xff] %v525
    %714 = vst [vmem:[#allocation2 + $0x58] sm:$0xff] %v527
    %715 = vst [vmem:[#allocation2 + $0x60] sm:$0xff] %v274
    %716 = vst [vmem:[#allocation2 + $0x68] sm:$0xff] %v276
    %717 = vst [vmem:[#allocation2 + $0x70] sm:$0xff] %v531
    %718 = vst [vmem:[#allocation2 + $0x78] sm:$0xff] %v533
    %719 = vst [vmem:[#allocation2 + $0x80] sm:$0xff] %v280
    %720 = vst [vmem:[#allocation2 + $0x88] sm:$0xff] %v282
    %721 = vst [vmem:[#allocation2 + $0x90] sm:$0xff] %v537
    %722 = vst [vmem:[#allocation2 + $0x98] sm:$0xff] %v539
    %723 = vst [vmem:[#allocation2 + $0xa0] sm:$0xff] %v286
    %724 = vst [vmem:[#allocation2 + $0xa8] sm:$0xff] %v288
    %725 = vst [vmem:[#allocation2 + $0xb0] sm:$0xff] %v543
    %726 = vst [vmem:[#allocation2 + $0xb8] sm:$0xff] %v545
    %727 = vst [vmem:[#allocation2 + $0xc0] sm:$0xff] %v292
    %728 = vst [vmem:[#allocation2 + $0xc8] sm:$0xff] %v294
    %729 = vst [vmem:[#allocation2 + $0xd0] sm:$0xff] %v549
    %730 = vst [vmem:[#allocation2 + $0xd8] sm:$0xff] %v551
    %731 = vst [vmem:[#allocation2 + $0xe0] sm:$0xff] %v298
    %732 = vst [vmem:[#allocation2 + $0xe8] sm:$0xff] %v300
    %733 = vst [vmem:[#allocation2 + $0xf0] sm:$0xff] %v555
    %734 = vst [vmem:[#allocation2 + $0xf8] sm:$0xff] %v557
    %735 = vst [vmem:[#allocation2 + $0x100] sm:$0xff] %v304
    %736 = vst [vmem:[#allocation2 + $0x108] sm:$0xff] %v306
    %737 = vst [vmem:[#allocation2 + $0x110] sm:$0xff] %v561
    %738 = vst [vmem:[#allocation2 + $0x118] sm:$0xff] %v563
    %739 = vst [vmem:[#allocation2 + $0x120] sm:$0xff] %v310
    %740 = vst [vmem:[#allocation2 + $0x128] sm:$0xff] %v312
    %741 = vst [vmem:[#allocation2 + $0x130] sm:$0xff] %v567
    %742 = vst [vmem:[#allocation2 + $0x138] sm:$0xff] %v569
    %743 = vst [vmem:[#allocation2 + $0x140] sm:$0xff] %v316
    %744 = vst [vmem:[#allocation2 + $0x148] sm:$0xff] %v318
    %745 = vst [vmem:[#allocation2 + $0x150] sm:$0xff] %v573
    %746 = vst [vmem:[#allocation2 + $0x158] sm:$0xff] %v575
    %747 = vst [vmem:[#allocation2 + $0x160] sm:$0xff] %v322
    %748 = vst [vmem:[#allocation2 + $0x168] sm:$0xff] %v324
    %749 = vst [vmem:[#allocation2 + $0x170] sm:$0xff] %v579
    %750 = vst [vmem:[#allocation2 + $0x178] sm:$0xff] %v581
    %751 = vst [vmem:[#allocation2 + $0x180] sm:$0xff] %v328
    %752 = vst [vmem:[#allocation2 + $0x188] sm:$0xff] %v330
    %753 = vst [vmem:[#allocation2 + $0x190] sm:$0xff] %v585
    %754 = vst [vmem:[#allocation2 + $0x198] sm:$0xff] %v587
    %755 = vst [vmem:[#allocation2 + $0x1a0] sm:$0xff] %v334
    %756 = vst [vmem:[#allocation2 + $0x1a8] sm:$0xff] %v336
    %757 = vst [vmem:[#allocation2 + $0x1b0] sm:$0xff] %v591
    %758 = vst [vmem:[#allocation2 + $0x1b8] sm:$0xff] %v593
    %759 = vst [vmem:[#allocation2 + $0x1c0] sm:$0xff] %v340
    %760 = vst [vmem:[#allocation2 + $0x1c8] sm:$0xff] %v342
    %761 = vst [vmem:[#allocation2 + $0x1d0] sm:$0xff] %v597
    %762 = vst [vmem:[#allocation2 + $0x1d8] sm:$0xff] %v599
    %763 = vst [vmem:[#allocation2 + $0x1e0] sm:$0xff] %v346
    %764 = vst [vmem:[#allocation2 + $0x1e8] sm:$0xff] %v348
    %765 = vst [vmem:[#allocation2 + $0x1f0] sm:$0xff] %v603
    %766 = vst [vmem:[#allocation2 + $0x1f8] sm:$0xff] %v605
    %767 = vst [vmem:[#allocation2 + $0x200] sm:$0xff] %v352
    %768 = vst [vmem:[#allocation2 + $0x208] sm:$0xff] %v354
    %769 = vst [vmem:[#allocation2 + $0x210] sm:$0xff] %v609
    %770 = vst [vmem:[#allocation2 + $0x218] sm:$0xff] %v611
    %771 = vst [vmem:[#allocation2 + $0x220] sm:$0xff] %v358
    %772 = vst [vmem:[#allocation2 + $0x228] sm:$0xff] %v360
    %773 = vst [vmem:[#allocation2 + $0x230] sm:$0xff] %v615
    %774 = vst [vmem:[#allocation2 + $0x238] sm:$0xff] %v617
    %775 = vst [vmem:[#allocation2 + $0x240] sm:$0xff] %v364
    %776 = vst [vmem:[#allocation2 + $0x248] sm:$0xff] %v366
    %777 = vst [vmem:[#allocation2 + $0x250] sm:$0xff] %v621
    %778 = vst [vmem:[#allocation2 + $0x258] sm:$0xff] %v623
    %779 = vst [vmem:[#allocation2 + $0x260] sm:$0xff] %v370
    %780 = vst [vmem:[#allocation2 + $0x268] sm:$0xff] %v372
    %781 = vst [vmem:[#allocation2 + $0x270] sm:$0xff] %v627
    %782 = vst [vmem:[#allocation2 + $0x278] sm:$0xff] %v629
    %783 = vst [vmem:[#allocation2 + $0x280] sm:$0xff] %v376
    %784 = vst [vmem:[#allocation2 + $0x288] sm:$0xff] %v378
    %785 = vst [vmem:[#allocation2 + $0x290] sm:$0xff] %v633
    %786 = vst [vmem:[#allocation2 + $0x298] sm:$0xff] %v635
    %787 = vst [vmem:[#allocation2 + $0x2a0] sm:$0xff] %v382
    %788 = vst [vmem:[#allocation2 + $0x2a8] sm:$0xff] %v384
    %789 = vst [vmem:[#allocation2 + $0x2b0] sm:$0xff] %v639
    %790 = vst [vmem:[#allocation2 + $0x2b8] sm:$0xff] %v641
    %791 = vst [vmem:[#allocation2 + $0x2c0] sm:$0xff] %v388
    %792 = vst [vmem:[#allocation2 + $0x2c8] sm:$0xff] %v390
    %793 = vst [vmem:[#allocation2 + $0x2d0] sm:$0xff] %v645
    %794 = vst [vmem:[#allocation2 + $0x2d8] sm:$0xff] %v647
    %795 = vst [vmem:[#allocation2 + $0x2e0] sm:$0xff] %v394
    %796 = vst [vmem:[#allocation2 + $0x2e8] sm:$0xff] %v396
    %797 = vst [vmem:[#allocation2 + $0x2f0] sm:$0xff] %v651
    %798 = vst [vmem:[#allocation2 + $0x2f8] sm:$0xff] %v653
    %799 = vst [vmem:[#allocation2 + $0x300] sm:$0xff] %v400
    %800 = vst [vmem:[#allocation2 + $0x308] sm:$0xff] %v402
    %801 = vst [vmem:[#allocation2 + $0x310] sm:$0xff] %v657
    %802 = vst [vmem:[#allocation2 + $0x318] sm:$0xff] %v659
    %803 = vst [vmem:[#allocation2 + $0x320] sm:$0xff] %v406
    %804 = vst [vmem:[#allocation2 + $0x328] sm:$0xff] %v408
    %805 = vst [vmem:[#allocation2 + $0x330] sm:$0xff] %v663
    %806 = vst [vmem:[#allocation2 + $0x338] sm:$0xff] %v665
    %807 = vst [vmem:[#allocation2 + $0x340] sm:$0xff] %v412
    %808 = vst [vmem:[#allocation2 + $0x348] sm:$0xff] %v414
    %809 = vst [vmem:[#allocation2 + $0x350] sm:$0xff] %v669
    %810 = vst [vmem:[#allocation2 + $0x358] sm:$0xff] %v671
    %811 = vst [vmem:[#allocation2 + $0x360] sm:$0xff] %v418
    %812 = vst [vmem:[#allocation2 + $0x368] sm:$0xff] %v420
    %813 = vst [vmem:[#allocation2 + $0x370] sm:$0xff] %v675
    %814 = vst [vmem:[#allocation2 + $0x378] sm:$0xff] %v677
    %815 = vst [vmem:[#allocation2 + $0x380] sm:$0xff] %v424
    %816 = vst [vmem:[#allocation2 + $0x388] sm:$0xff] %v426
    %817 = vst [vmem:[#allocation2 + $0x390] sm:$0xff] %v681
    %818 = vst [vmem:[#allocation2 + $0x398] sm:$0xff] %v683
    %819 = vst [vmem:[#allocation2 + $0x3a0] sm:$0xff] %v430
    %820 = vst [vmem:[#allocation2 + $0x3a8] sm:$0xff] %v432
    %821 = vst [vmem:[#allocation2 + $0x3b0] sm:$0xff] %v687
    %822 = vst [vmem:[#allocation2 + $0x3b8] sm:$0xff] %v689
    %823 = vst [vmem:[#allocation2 + $0x3c0] sm:$0xff] %v436
    %824 = vst [vmem:[#allocation2 + $0x3c8] sm:$0xff] %v438
    %825 = vst [vmem:[#allocation2 + $0x3d0] sm:$0xff] %v693
    %826 = vst [vmem:[#allocation2 + $0x3d8] sm:$0xff] %v695
    %827 = vst [vmem:[#allocation2 + $0x3e0] sm:$0xff] %v442
    %828 = vst [vmem:[#allocation2 + $0x3e8] sm:$0xff] %v444
    %829 = vst [vmem:[#allocation2 + $0x3f0] sm:$0xff] %v699
    %830 = vst [vmem:[#allocation2 + $0x3f8] sm:$0xff] %v701
    %v831 = vld [vmem:[#allocation3] sm:$0xff]
    %v832 = vld [vmem:[#allocation3 + $0x8] sm:$0xff]
    %v833 = vld [vmem:[#allocation3 + $0x10] sm:$0xff]
    %v834 = vld [vmem:[#allocation3 + $0x18] sm:$0xff]
    %v835 = vld [vmem:[#allocation4] sm:$0xff]
    %v836 = vld [vmem:[#allocation4 + $0x8] sm:$0xff]
    %v837 = vld [vmem:[#allocation4 + $0x10] sm:$0xff]
    %v838 = vld [vmem:[#allocation4 + $0x18] sm:$0xff]
    %s839 = smul.u32 0, 4
    %s840 = smul.addr %s839, 8
    %s841 = scalar_lea.vmem [#allocation2], %s840
    %v842 = vld [vmem:[%s841] sm:$0xff]
    %v843 = vld [vmem:[%s841 + $0x8] sm:$0xff]
    %v844 = vld [vmem:[%s841 + $0x10] sm:$0xff]
    %v845 = vld [vmem:[%s841 + $0x18] sm:$0xff]
    %v846 = vld [vmem:[%s841 + $0x20] sm:$0xff]
    %v847 = vld [vmem:[%s841 + $0x28] sm:$0xff]
    %v848 = vld [vmem:[%s841 + $0x30] sm:$0xff]
    %v849 = vld [vmem:[%s841 + $0x38] sm:$0xff]
    %v850 = vld [vmem:[%s841 + $0x40] sm:$0xff]
    %v851 = vld [vmem:[%s841 + $0x48] sm:$0xff]
    %v852 = vld [vmem:[%s841 + $0x50] sm:$0xff]
    %v853 = vld [vmem:[%s841 + $0x58] sm:$0xff]
    %v854 = vld [vmem:[%s841 + $0x60] sm:$0xff]
    %v855 = vld [vmem:[%s841 + $0x68] sm:$0xff]
    %v856 = vld [vmem:[%s841 + $0x70] sm:$0xff]
    %v857 = vld [vmem:[%s841 + $0x78] sm:$0xff]
    %v858 = vld [vmem:[#allocation10] sm:$0xff]
    %v859 = vld [vmem:[#allocation10 + $0x8] sm:$0xff]
    %v860 = vld [vmem:[#allocation10 + $0x10] sm:$0xff]
    %v861 = vld [vmem:[#allocation10 + $0x18] sm:$0xff]
    %v862 = vld [vmem:[#allocation10 + $0x20] sm:$0xff]
    %v863 = vld [vmem:[#allocation10 + $0x28] sm:$0xff]
    %v864 = vld [vmem:[#allocation10 + $0x30] sm:$0xff]
    %v865 = vld [vmem:[#allocation10 + $0x38] sm:$0xff]
    %v866 = vld [vmem:[#allocation10 + $0x40] sm:$0xff]
    %v867 = vld [vmem:[#allocation10 + $0x48] sm:$0xff]
    %v868 = vld [vmem:[#allocation10 + $0x50] sm:$0xff]
    %v869 = vld [vmem:[#allocation10 + $0x58] sm:$0xff]
    %v870 = vld [vmem:[#allocation10 + $0x60] sm:$0xff]
    %v871 = vld [vmem:[#allocation10 + $0x68] sm:$0xff]
    %v872 = vld [vmem:[#allocation10 + $0x70] sm:$0xff]
    %v873 = vld [vmem:[#allocation10 + $0x78] sm:$0xff]
    %v874 = vld [vmem:[#allocation10 + $0x80] sm:$0xff]
    %v875 = vld [vmem:[#allocation10 + $0x88] sm:$0xff]
    %v876 = vld [vmem:[#allocation10 + $0x90] sm:$0xff]
    %v877 = vld [vmem:[#allocation10 + $0x98] sm:$0xff]
    %v878 = vld [vmem:[#allocation10 + $0xa0] sm:$0xff]
    %v879 = vld [vmem:[#allocation10 + $0xa8] sm:$0xff]
    %v880 = vld [vmem:[#allocation10 + $0xb0] sm:$0xff]
    %v881 = vld [vmem:[#allocation10 + $0xb8] sm:$0xff]
    %v882 = vld [vmem:[#allocation10 + $0xc0] sm:$0xff]
    %v883 = vld [vmem:[#allocation10 + $0xc8] sm:$0xff]
    %v884 = vld [vmem:[#allocation10 + $0xd0] sm:$0xff]
    %v885 = vld [vmem:[#allocation10 + $0xd8] sm:$0xff]
    %v886 = vld [vmem:[#allocation10 + $0xe0] sm:$0xff]
    %v887 = vld [vmem:[#allocation10 + $0xe8] sm:$0xff]
    %v888 = vld [vmem:[#allocation10 + $0xf0] sm:$0xff]
    %v889 = vld [vmem:[#allocation10 + $0xf8] sm:$0xff]
    %v890 = vld [vmem:[#allocation10 + $0x100] sm:$0xff]
    %v891 = vld [vmem:[#allocation10 + $0x108] sm:$0xff]
    %v892 = vld [vmem:[#allocation10 + $0x110] sm:$0xff]
    %v893 = vld [vmem:[#allocation10 + $0x118] sm:$0xff]
    %v894 = vld [vmem:[#allocation10 + $0x120] sm:$0xff]
    %v895 = vld [vmem:[#allocation10 + $0x128] sm:$0xff]
    %v896 = vld [vmem:[#allocation10 + $0x130] sm:$0xff]
    %v897 = vld [vmem:[#allocation10 + $0x138] sm:$0xff]
    %v898 = vld [vmem:[#allocation10 + $0x140] sm:$0xff]
    %v899 = vld [vmem:[#allocation10 + $0x148] sm:$0xff]
    %v900 = vld [vmem:[#allocation10 + $0x150] sm:$0xff]
    %v901 = vld [vmem:[#allocation10 + $0x158] sm:$0xff]
    %v902 = vld [vmem:[#allocation10 + $0x160] sm:$0xff]
    %v903 = vld [vmem:[#allocation10 + $0x168] sm:$0xff]
    %v904 = vld [vmem:[#allocation10 + $0x170] sm:$0xff]
    %v905 = vld [vmem:[#allocation10 + $0x178] sm:$0xff]
    %v906 = vld [vmem:[#allocation10 + $0x180] sm:$0xff]
    %v907 = vld [vmem:[#allocation10 + $0x188] sm:$0xff]
    %v908 = vld [vmem:[#allocation10 + $0x190] sm:$0xff]
    %v909 = vld [vmem:[#allocation10 + $0x198] sm:$0xff]
    %v910 = vld [vmem:[#allocation10 + $0x1a0] sm:$0xff]
    %v911 = vld [vmem:[#allocation10 + $0x1a8] sm:$0xff]
    %v912 = vld [vmem:[#allocation10 + $0x1b0] sm:$0xff]
    %v913 = vld [vmem:[#allocation10 + $0x1b8] sm:$0xff]
    %v914 = vld [vmem:[#allocation10 + $0x1c0] sm:$0xff]
    %v915 = vld [vmem:[#allocation10 + $0x1c8] sm:$0xff]
    %v916 = vld [vmem:[#allocation10 + $0x1d0] sm:$0xff]
    %v917 = vld [vmem:[#allocation10 + $0x1d8] sm:$0xff]
    %v918 = vld [vmem:[#allocation10 + $0x1e0] sm:$0xff]
    %v919 = vld [vmem:[#allocation10 + $0x1e8] sm:$0xff]
    %v920 = vld [vmem:[#allocation10 + $0x1f0] sm:$0xff]
    %v921 = vld [vmem:[#allocation10 + $0x1f8] sm:$0xff]
    %922 = vmatprep.subr.mxu0 %v859
    %923 = vmatpush1.msra.mxu0 %v858
    %924 = vmatprep.subr.mxu0 %v863
    %925 = vmatpush1.msra.mxu0 %v862
    %926 = vmatprep.subr.mxu0 %v867
    %927 = vmatpush1.msra.mxu0 %v866
    %928 = vmatprep.subr.mxu0 %v871
    %929 = vmatpush1.msra.mxu0 %v870
    %930 = vmatprep.subr.mxu0 %v875
    %931 = vmatpush1.msra.mxu0 %v874
    %932 = vmatprep.subr.mxu0 %v879
    %933 = vmatpush1.msra.mxu0 %v878
    %934 = vmatprep.subr.mxu0 %v883
    %935 = vmatpush1.msra.mxu0 %v882
    %936 = vmatprep.subr.mxu0 %v887
    %937 = vmatpush1.msra.mxu0 %v886
    %938 = vmatprep.subr.mxu0 %v891
    %939 = vmatpush1.msra.mxu0 %v890
    %940 = vmatprep.subr.mxu0 %v895
    %941 = vmatpush1.msra.mxu0 %v894
    %942 = vmatprep.subr.mxu0 %v899
    %943 = vmatpush1.msra.mxu0 %v898
    %944 = vmatprep.subr.mxu0 %v903
    %945 = vmatpush1.msra.mxu0 %v902
    %946 = vmatprep.subr.mxu0 %v907
    %947 = vmatpush1.msra.mxu0 %v906
    %948 = vmatprep.subr.mxu0 %v911
    %949 = vmatpush1.msra.mxu0 %v910
    %950 = vmatprep.subr.mxu0 %v915
    %951 = vmatpush1.msra.mxu0 %v914
    %952 = vmatprep.subr.mxu0 %v919
    %953 = vmatpush1.msra.mxu0 %v918
    %954 = vmatprep.subr.mxu0 0.0
    %955 = vmatpush1.msra.mxu0 0.0
    %956 = vmatprep.subr.mxu0 0.0
    %957 = vmatpush1.msra.mxu0 0.0
    %958 = vmatprep.subr.mxu0 0.0
    %959 = vmatpush1.msra.mxu0 0.0
    %960 = vmatprep.subr.mxu0 0.0
    %961 = vmatpush1.msra.mxu0 0.0
    %962 = vmatprep.subr.mxu0 0.0
    %963 = vmatpush1.msra.mxu0 0.0
    %964 = vmatprep.subr.mxu0 0.0
    %965 = vmatpush1.msra.mxu0 0.0
    %966 = vmatprep.subr.mxu0 0.0
    %967 = vmatpush1.msra.mxu0 0.0
    %968 = vmatprep.subr.mxu0 0.0
    %969 = vmatpush1.msra.mxu0 0.0
    %970 = vmatprep.subr.mxu0 0.0
    %971 = vmatpush1.msra.mxu0 0.0
    %972 = vmatprep.subr.mxu0 0.0
    %973 = vmatpush1.msra.mxu0 0.0
    %974 = vmatprep.subr.mxu0 0.0
    %975 = vmatpush1.msra.mxu0 0.0
    %976 = vmatprep.subr.mxu0 0.0
    %977 = vmatpush1.msra.mxu0 0.0
    %978 = vmatprep.subr.mxu0 0.0
    %979 = vmatpush1.msra.mxu0 0.0
    %980 = vmatprep.subr.mxu0 0.0
    %981 = vmatpush1.msra.mxu0 0.0
    %982 = vmatprep.subr.mxu0 0.0
    %983 = vmatpush1.msra.mxu0 0.0
    %984 = vmatprep.subr.mxu0 0.0
    %985 = vmatpush1.msra.mxu0 0.0
    %986 = vmatprep.mubr.f32.mxu0 0.0
    %987 = vmatmul.mubr.f32.gmra.mrb[0].mxu0 %v831
    %v988 = vpop.f32.mrb[0].mxu0
    %v989 = vadd.f32 0.0, %v988
    %v990 = vpop.f32.mrb[0].mxu0
    %v991 = vadd.f32 0.0, %v990
    %992 = vmatprep.mubr.f32.mxu0 0.0
    %993 = vmatmul.mubr.f32.gmra.mrb[0].mxu0 %v832
    %v994 = vpop.f32.mrb[0].mxu0
    %v995 = vadd.f32 0.0, %v994
    %v996 = vpop.f32.mrb[0].mxu0
    %v997 = vadd.f32 0.0, %v996
    %998 = vmatprep.mubr.f32.mxu0 0.0
    %999 = vmatmul.mubr.f32.gmra.mrb[0].mxu0 %v833
    %v1000 = vpop.f32.mrb[0].mxu0
    %v1001 = vadd.f32 0.0, %v1000
    %v1002 = vpop.f32.mrb[0].mxu0
    %v1003 = vadd.f32 0.0, %v1002
    %1004 = vmatprep.mubr.f32.mxu0 0.0
    %1005 = vmatmul.mubr.f32.gmra.mrb[0].mxu0 %v834
    %v1006 = vpop.f32.mrb[0].mxu0
    %v1007 = vadd.f32 0.0, %v1006
    %v1008 = vpop.f32.mrb[0].mxu0
    %v1009 = vadd.f32 0.0, %v1008
    %1010 = vdwg.mxu0
    %1011 = vmatprep.subr.mxu0 %v861
    %1012 = vmatpush1.msra.mxu0 %v860
    %1013 = vmatprep.subr.mxu0 %v865
    %1014 = vmatpush1.msra.mxu0 %v864
    %1015 = vmatprep.subr.mxu0 %v869
    %1016 = vmatpush1.msra.mxu0 %v868
    %1017 = vmatprep.subr.mxu0 %v873
    %1018 = vmatpush1.msra.mxu0 %v872
    %1019 = vmatprep.subr.mxu0 %v877
    %1020 = vmatpush1.msra.mxu0 %v876
    %1021 = vmatprep.subr.mxu0 %v881
    %1022 = vmatpush1.msra.mxu0 %v880
    %1023 = vmatprep.subr.mxu0 %v885
    %1024 = vmatpush1.msra.mxu0 %v884
    %1025 = vmatprep.subr.mxu0 %v889
    %1026 = vmatpush1.msra.mxu0 %v888
    %1027 = vmatprep.subr.mxu0 %v893
    %1028 = vmatpush1.msra.mxu0 %v892
    %1029 = vmatprep.subr.mxu0 %v897
    %1030 = vmatpush1.msra.mxu0 %v896
    %1031 = vmatprep.subr.mxu0 %v901
    %1032 = vmatpush1.msra.mxu0 %v900
    %1033 = vmatprep.subr.mxu0 %v905
    %1034 = vmatpush1.msra.mxu0 %v904
    %1035 = vmatprep.subr.mxu0 %v909
    %1036 = vmatpush1.msra.mxu0 %v908
    %1037 = vmatprep.subr.mxu0 %v913
    %1038 = vmatpush1.msra.mxu0 %v912
    %1039 = vmatprep.subr.mxu0 %v917
    %1040 = vmatpush1.msra.mxu0 %v916
    %1041 = vmatprep.subr.mxu0 %v921
    %1042 = vmatpush1.msra.mxu0 %v920
    %1043 = vmatprep.subr.mxu0 0.0
    %1044 = vmatpush1.msra.mxu0 0.0
    %1045 = vmatprep.subr.mxu0 0.0
    %1046 = vmatpush1.msra.mxu0 0.0
    %1047 = vmatprep.subr.mxu0 0.0
    %1048 = vmatpush1.msra.mxu0 0.0
    %1049 = vmatprep.subr.mxu0 0.0
    %1050 = vmatpush1.msra.mxu0 0.0
    %1051 = vmatprep.subr.mxu0 0.0
    %1052 = vmatpush1.msra.mxu0 0.0
    %1053 = vmatprep.subr.mxu0 0.0
    %1054 = vmatpush1.msra.mxu0 0.0
    %1055 = vmatprep.subr.mxu0 0.0
    %1056 = vmatpush1.msra.mxu0 0.0
    %1057 = vmatprep.subr.mxu0 0.0
    %1058 = vmatpush1.msra.mxu0 0.0
    %1059 = vmatprep.subr.mxu0 0.0
    %1060 = vmatpush1.msra.mxu0 0.0
    %1061 = vmatprep.subr.mxu0 0.0
    %1062 = vmatpush1.msra.mxu0 0.0
    %1063 = vmatprep.subr.mxu0 0.0
    %1064 = vmatpush1.msra.mxu0 0.0
    %1065 = vmatprep.subr.mxu0 0.0
    %1066 = vmatpush1.msra.mxu0 0.0
    %1067 = vmatprep.subr.mxu0 0.0
    %1068 = vmatpush1.msra.mxu0 0.0
    %1069 = vmatprep.subr.mxu0 0.0
    %1070 = vmatpush1.msra.mxu0 0.0
    %1071 = vmatprep.subr.mxu0 0.0
    %1072 = vmatpush1.msra.mxu0 0.0
    %1073 = vmatprep.subr.mxu0 0.0
    %1074 = vmatpush1.msra.mxu0 0.0
    %1075 = vmatprep.mubr.f32.mxu0 0.0
    %1076 = vmatmul.mubr.f32.gmra.mrb[0].mxu0 %v831
    %v1077 = vpop.f32.mrb[0].mxu0
    %v1078 = vadd.f32 0.0, %v1077
    %v1079 = vpop.f32.mrb[0].mxu0
    %v1080 = vadd.f32 0.0, %v1079
    %1081 = vmatprep.mubr.f32.mxu0 0.0
    %1082 = vmatmul.mubr.f32.gmra.mrb[0].mxu0 %v832
    %v1083 = vpop.f32.mrb[0].mxu0
    %v1084 = vadd.f32 0.0, %v1083
    %v1085 = vpop.f32.mrb[0].mxu0
    %v1086 = vadd.f32 0.0, %v1085
    %1087 = vmatprep.mubr.f32.mxu0 0.0
    %1088 = vmatmul.mubr.f32.gmra.mrb[0].mxu0 %v833
    %v1089 = vpop.f32.mrb[0].mxu0
    %v1090 = vadd.f32 0.0, %v1089
    %v1091 = vpop.f32.mrb[0].mxu0
    %v1092 = vadd.f32 0.0, %v1091
    %1093 = vmatprep.mubr.f32.mxu0 0.0
    %1094 = vmatmul.mubr.f32.gmra.mrb[0].mxu0 %v834
    %v1095 = vpop.f32.mrb[0].mxu0
    %v1096 = vadd.f32 0.0, %v1095
    %v1097 = vpop.f32.mrb[0].mxu0
    %v1098 = vadd.f32 0.0, %v1097
    %1099 = vdwg.mxu0
    %v1100 = vadd.f32 %v842, %v989
    %v1101 = vadd.f32 %v843, %v991
    %v1102 = vadd.f32 %v844, %v1078
    %v1103 = vadd.f32 %v845, %v1080
    %v1104 = vadd.f32 %v846, %v995
    %v1105 = vadd.f32 %v847, %v997
    %v1106 = vadd.f32 %v848, %v1084
    %v1107 = vadd.f32 %v849, %v1086
    %v1108 = vadd.f32 %v850, %v1001
    %v1109 = vadd.f32 %v851, %v1003
    %v1110 = vadd.f32 %v852, %v1090
    %v1111 = vadd.f32 %v853, %v1092
    %v1112 = vadd.f32 %v854, %v1007
    %v1113 = vadd.f32 %v855, %v1009
    %v1114 = vadd.f32 %v856, %v1096
    %v1115 = vadd.f32 %v857, %v1098
    %v1116 = vxor.u32 %v1100, 2147483648
    %v1117 = vxor.u32 %v1101, 2147483648
    %v1118 = vxor.u32 %v1102, 2147483648
    %v1119 = vxor.u32 %v1104, 2147483648
    %v1120 = vxor.u32 %v1105, 2147483648
    %v1121 = vxor.u32 %v1106, 2147483648
    %v1122 = vxor.u32 %v1108, 2147483648
    %v1123 = vxor.u32 %v1109, 2147483648
    %v1124 = vxor.u32 %v1110, 2147483648
    %v1125 = vxor.u32 %v1112, 2147483648
    %v1126 = vxor.u32 %v1113, 2147483648
    %v1127 = vxor.u32 %v1114, 2147483648
    %v1128 = vmul.f32 %v1116, 1.442695
    %v1129 = vpow.pop %v1128
    %v1130 = vmul.f32 %v1117, 1.442695
    %v1131 = vpow.pop %v1130
    %v1132 = vmul.f32 %v1118, 1.442695
    %v1133 = vpow.pop %v1132
    %v1134 = vmul.f32 %v1119, 1.442695
    %v1135 = vpow.pop %v1134
    %v1136 = vmul.f32 %v1120, 1.442695
    %v1137 = vpow.pop %v1136
    %v1138 = vmul.f32 %v1121, 1.442695
    %v1139 = vpow.pop %v1138
    %v1140 = vmul.f32 %v1122, 1.442695
    %v1141 = vpow.pop %v1140
    %v1142 = vmul.f32 %v1123, 1.442695
    %v1143 = vpow.pop %v1142
    %v1144 = vmul.f32 %v1124, 1.442695
    %v1145 = vpow.pop %v1144
    %v1146 = vmul.f32 %v1125, 1.442695
    %v1147 = vpow.pop %v1146
    %v1148 = vmul.f32 %v1126, 1.442695
    %v1149 = vpow.pop %v1148
    %v1150 = vmul.f32 %v1127, 1.442695
    %v1151 = vpow.pop %v1150
    %v1152 = vadd.f32 %v1129, 1.0
    %v1153 = vadd.f32 %v1131, 1.0
    %v1154 = vadd.f32 %v1133, 1.0
    %v1155 = vadd.f32 %v1135, 1.0
    %v1156 = vadd.f32 %v1137, 1.0
    %v1157 = vadd.f32 %v1139, 1.0
    %v1158 = vadd.f32 %v1141, 1.0
    %v1159 = vadd.f32 %v1143, 1.0
    %v1160 = vadd.f32 %v1145, 1.0
    %v1161 = vadd.f32 %v1147, 1.0
    %v1162 = vadd.f32 %v1149, 1.0
    %v1163 = vadd.f32 %v1151, 1.0
    %v1164 = vrcp.pop %v1152
    %v1165 = vmul.f32 1.0, %v1164
    %v1166 = vrcp.pop %v1153
    %v1167 = vmul.f32 1.0, %v1166
    %v1168 = vrcp.pop %v1154
    %v1169 = vmul.f32 1.0, %v1168
    %v1170 = vrcp.pop %v1155
    %v1171 = vmul.f32 1.0, %v1170
    %v1172 = vrcp.pop %v1156
    %v1173 = vmul.f32 1.0, %v1172
    %v1174 = vrcp.pop %v1157
    %v1175 = vmul.f32 1.0, %v1174
    %v1176 = vrcp.pop %v1158
    %v1177 = vmul.f32 1.0, %v1176
    %v1178 = vrcp.pop %v1159
    %v1179 = vmul.f32 1.0, %v1178
    %v1180 = vrcp.pop %v1160
    %v1181 = vmul.f32 1.0, %v1180
    %v1182 = vrcp.pop %v1161
    %v1183 = vmul.f32 1.0, %v1182
    %v1184 = vrcp.pop %v1162
    %v1185 = vmul.f32 1.0, %v1184
    %v1186 = vrcp.pop %v1163
    %v1187 = vmul.f32 1.0, %v1186
    %v1188 = vtanh.pop %v1103
    %v1189 = vtanh.pop %v1107
    %v1190 = vtanh.pop %v1111
    %v1191 = vtanh.pop %v1115
    %v1192 = vmul.f32 %v1167, %v835
    %v1193 = vmul.f32 %v1173, %v836
    %v1194 = vmul.f32 %v1179, %v837
    %v1195 = vmul.f32 %v1185, %v838
    %v1196 = vmul.f32 %v1165, %v1188
    %v1197 = vmul.f32 %v1171, %v1189
    %v1198 = vmul.f32 %v1177, %v1190
    %v1199 = vmul.f32 %v1183, %v1191
    %v1200 = vadd.f32 %v1192, %v1196
    %v1201 = vadd.f32 %v1193, %v1197
    %v1202 = vadd.f32 %v1194, %v1198
    %v1203 = vadd.f32 %v1195, %v1199
    %v1204 = vtanh.pop %v1200
    %v1205 = vtanh.pop %v1201
    %v1206 = vtanh.pop %v1202
    %v1207 = vtanh.pop %v1203
    %v1208 = vmul.f32 %v1169, %v1204
    %v1209 = vmul.f32 %v1175, %v1205
    %v1210 = vmul.f32 %v1181, %v1206
    %v1211 = vmul.f32 %v1187, %v1207
    %s1212 = smul.u32 4, 4
    %s1213 = smul.addr %s1212, 8
    %s1214 = scalar_lea.vmem [#allocation2], %s1213
    %v1215 = vld [vmem:[%s1214] sm:$0xff]
    %v1216 = vld [vmem:[%s1214 + $0x8] sm:$0xff]
    %v1217 = vld [vmem:[%s1214 + $0x10] sm:$0xff]
    %v1218 = vld [vmem:[%s1214 + $0x18] sm:$0xff]
    %v1219 = vld [vmem:[%s1214 + $0x20] sm:$0xff]
    %v1220 = vld [vmem:[%s1214 + $0x28] sm:$0xff]
    %v1221 = vld [vmem:[%s1214 + $0x30] sm:$0xff]
    %v1222 = vld [vmem:[%s1214 + $0x38] sm:$0xff]
    %v1223 = vld [vmem:[%s1214 + $0x40] sm:$0xff]
    %v1224 = vld [vmem:[%s1214 + $0x48] sm:$0xff]
    %v1225 = vld [vmem:[%s1214 + $0x50] sm:$0xff]
    %v1226 = vld [vmem:[%s1214 + $0x58] sm:$0xff]
    %v1227 = vld [vmem:[%s1214 + $0x60] sm:$0xff]
    %v1228 = vld [vmem:[%s1214 + $0x68] sm:$0xff]
    %v1229 = vld [vmem:[%s1214 + $0x70] sm:$0xff]
    %v1230 = vld [vmem:[%s1214 + $0x78] sm:$0xff]
    %1231 = vmatprep.subr.mxu0 %v859
    %1232 = vmatpush1.msra.mxu0 %v858
    %1233 = vmatprep.subr.mxu0 %v863
    %1234 = vmatpush1.msra.mxu0 %v862
    %1235 = vmatprep.subr.mxu0 %v867
    %1236 = vmatpush1.msra.mxu0 %v866
    %1237 = vmatprep.subr.mxu0 %v871
    %1238 = vmatpush1.msra.mxu0 %v870
    %1239 = vmatprep.subr.mxu0 %v875
    %1240 = vmatpush1.msra.mxu0 %v874
    %1241 = vmatprep.subr.mxu0 %v879
    %1242 = vmatpush1.msra.mxu0 %v878
    %1243 = vmatprep.subr.mxu0 %v883
    %1244 = vmatpush1.msra.mxu0 %v882
    %1245 = vmatprep.subr.mxu0 %v887
    %1246 = vmatpush1.msra.mxu0 %v886
    %1247 = vmatprep.subr.mxu0 %v891
    %1248 = vmatpush1.msra.mxu0 %v890
    %1249 = vmatprep.subr.mxu0 %v895
    %1250 = vmatpush1.msra.mxu0 %v894
    %1251 = vmatprep.subr.mxu0 %v899
    %1252 = vmatpush1.msra.mxu0 %v898
    %1253 = vmatprep.subr.mxu0 %v903
    %1254 = vmatpush1.msra.mxu0 %v902
    %1255 = vmatprep.subr.mxu0 %v907
    %1256 = vmatpush1.msra.mxu0 %v906
    %1257 = vmatprep.subr.mxu0 %v911
    %1258 = vmatpush1.msra.mxu0 %v910
    %1259 = vmatprep.subr.mxu0 %v915
    %1260 = vmatpush1.msra.mxu0 %v914
    %1261 = vmatprep.subr.mxu0 %v919
    %1262 = vmatpush1.msra.mxu0 %v918
    %1263 = vmatprep.subr.mxu0 0.0
    %1264 = vmatpush1.msra.mxu0 0.0
    %1265 = vmatprep.subr.mxu0 0.0
    %1266 = vmatpush1.msra.mxu0 0.0
    %1267 = vmatprep.subr.mxu0 0.0
    %1268 = vmatpush1.msra.mxu0 0.0
    %1269 = vmatprep.subr.mxu0 0.0
    %1270 = vmatpush1.msra.mxu0 0.0
    %1271 = vmatprep.subr.mxu0 0.0
    %1272 = vmatpush1.msra.mxu0 0.0
    %1273 = vmatprep.subr.mxu0 0.0
    %1274 = vmatpush1.msra.mxu0 0.0
    %1275 = vmatprep.subr.mxu0 0.0
    %1276 = vmatpush1.msra.mxu0 0.0
    %1277 = vmatprep.subr.mxu0 0.0
    %1278 = vmatpush1.msra.mxu0 0.0
    %1279 = vmatprep.subr.mxu0 0.0
    %1280 = vmatpush1.msra.mxu0 0.0
    %1281 = vmatprep.subr.mxu0 0.0
    %1282 = vmatpush1.msra.mxu0 0.0
    %1283 = vmatprep.subr.mxu0 0.0
    %1284 = vmatpush1.msra.mxu0 0.0
    %1285 = vmatprep.subr.mxu0 0.0
    %1286 = vmatpush1.msra.mxu0 0.0
    %1287 = vmatprep.subr.mxu0 0.0
    %1288 = vmatpush1.msra.mxu0 0.0
    %1289 = vmatprep.subr.mxu0 0.0
    %1290 = vmatpush1.msra.mxu0 0.0
    %1291 = vmatprep.subr.mxu0 0.0
    %1292 = vmatpush1.msra.mxu0 0.0
    %1293 = vmatprep.subr.mxu0 0.0
    %1294 = vmatpush1.msra.mxu0 0.0
    %1295 = vmatprep.mubr.f32.mxu0 0.0
    %1296 = vmatmul.mubr.f32.gmra.mrb[0].mxu0 %v1208
    %v1297 = vpop.f32.mrb[0].mxu0
    %v1298 = vadd.f32 0.0, %v1297
    %v1299 = vpop.f32.mrb[0].mxu0
    %v1300 = vadd.f32 0.0, %v1299
    %1301 = vmatprep.mubr.f32.mxu0 0.0
    %1302 = vmatmul.mubr.f32.gmra.mrb[0].mxu0 %v1209
    %v1303 = vpop.f32.mrb[0].mxu0
    %v1304 = vadd.f32 0.0, %v1303
    %v1305 = vpop.f32.mrb[0].mxu0
    %v1306 = vadd.f32 0.0, %v1305
    %1307 = vmatprep.mubr.f32.mxu0 0.0
    %1308 = vmatmul.mubr.f32.gmra.mrb[0].mxu0 %v1210
    %v1309 = vpop.f32.mrb[0].mxu0
    %v1310 = vadd.f32 0.0, %v1309
    %v1311 = vpop.f32.mrb[0].mxu0
    %v1312 = vadd.f32 0.0, %v1311
    %1313 = vmatprep.mubr.f32.mxu0 0.0
    %1314 = vmatmul.mubr.f32.gmra.mrb[0].mxu0 %v1211
    %v1315 = vpop.f32.mrb[0].mxu0
    %v1316 = vadd.f32 0.0, %v1315
    %v1317 = vpop.f32.mrb[0].mxu0
    %v1318 = vadd.f32 0.0, %v1317
    %1319 = vdwg.mxu0
    %1320 = vmatprep.subr.mxu0 %v861
    %1321 = vmatpush1.msra.mxu0 %v860
    %1322 = vmatprep.subr.mxu0 %v865
    %1323 = vmatpush1.msra.mxu0 %v864
    %1324 = vmatprep.subr.mxu0 %v869
    %1325 = vmatpush1.msra.mxu0 %v868
    %1326 = vmatprep.subr.mxu0 %v873
    %1327 = vmatpush1.msra.mxu0 %v872
    %1328 = vmatprep.subr.mxu0 %v877
    %1329 = vmatpush1.msra.mxu0 %v876
    %1330 = vmatprep.subr.mxu0 %v881
    %1331 = vmatpush1.msra.mxu0 %v880
    %1332 = vmatprep.subr.mxu0 %v885
    %1333 = vmatpush1.msra.mxu0 %v884
    %1334 = vmatprep.subr.mxu0 %v889
    %1335 = vmatpush1.msra.mxu0 %v888
    %1336 = vmatprep.subr.mxu0 %v893
    %1337 = vmatpush1.msra.mxu0 %v892
    %1338 = vmatprep.subr.mxu0 %v897
    %1339 = vmatpush1.msra.mxu0 %v896
    %1340 = vmatprep.subr.mxu0 %v901
    %1341 = vmatpush1.msra.mxu0 %v900
    %1342 = vmatprep.subr.mxu0 %v905
    %1343 = vmatpush1.msra.mxu0 %v904
    %1344 = vmatprep.subr.mxu0 %v909
    %1345 = vmatpush1.msra.mxu0 %v908
    %1346 = vmatprep.subr.mxu0 %v913
    %1347 = vmatpush1.msra.mxu0 %v912
    %1348 = vmatprep.subr.mxu0 %v917
    %1349 = vmatpush1.msra.mxu0 %v916
    %1350 = vmatprep.subr.mxu0 %v921
    %1351 = vmatpush1.msra.mxu0 %v920
    %1352 = vmatprep.subr.mxu0 0.0
    %1353 = vmatpush1.msra.mxu0 0.0
    %1354 = vmatprep.subr.mxu0 0.0
    %1355 = vmatpush1.msra.mxu0 0.0
    %1356 = vmatprep.subr.mxu0 0.0
    %1357 = vmatpush1.msra.mxu0 0.0
    %1358 = vmatprep.subr.mxu0 0.0
    %1359 = vmatpush1.msra.mxu0 0.0
    %1360 = vmatprep.subr.mxu0 0.0
    %1361 = vmatpush1.msra.mxu0 0.0
    %1362 = vmatprep.subr.mxu0 0.0
    %1363 = vmatpush1.msra.mxu0 0.0
    %1364 = vmatprep.subr.mxu0 0.0
    %1365 = vmatpush1.msra.mxu0 0.0
    %1366 = vmatprep.subr.mxu0 0.0
    %1367 = vmatpush1.msra.mxu0 0.0
    %1368 = vmatprep.subr.mxu0 0.0
    %1369 = vmatpush1.msra.mxu0 0.0
    %1370 = vmatprep.subr.mxu0 0.0
    %1371 = vmatpush1.msra.mxu0 0.0
    %1372 = vmatprep.subr.mxu0 0.0
    %1373 = vmatpush1.msra.mxu0 0.0
    %1374 = vmatprep.subr.mxu0 0.0
    %1375 = vmatpush1.msra.mxu0 0.0
    %1376 = vmatprep.subr.mxu0 0.0
    %1377 = vmatpush1.msra.mxu0 0.0
    %1378 = vmatprep.subr.mxu0 0.0
    %1379 = vmatpush1.msra.mxu0 0.0
    %1380 = vmatprep.subr.mxu0 0.0
    %1381 = vmatpush1.msra.mxu0 0.0
    %1382 = vmatprep.subr.mxu0 0.0
    %1383 = vmatpush1.msra.mxu0 0.0
    %1384 = vmatprep.mubr.f32.mxu0 0.0
    %1385 = vmatmul.mubr.f32.gmra.mrb[0].mxu0 %v1208
    %v1386 = vpop.f32.mrb[0].mxu0
    %v1387 = vadd.f32 0.0, %v1386
    %v1388 = vpop.f32.mrb[0].mxu0
    %v1389 = vadd.f32 0.0, %v1388
    %1390 = vmatprep.mubr.f32.mxu0 0.0
    %1391 = vmatmul.mubr.f32.gmra.mrb[0].mxu0 %v1209
    %v1392 = vpop.f32.mrb[0].mxu0
    %v1393 = vadd.f32 0.0, %v1392
    %v1394 = vpop.f32.mrb[0].mxu0
    %v1395 = vadd.f32 0.0, %v1394
    %1396 = vmatprep.mubr.f32.mxu0 0.0
    %1397 = vmatmul.mubr.f32.gmra.mrb[0].mxu0 %v1210
    %v1398 = vpop.f32.mrb[0].mxu0
    %v1399 = vadd.f32 0.0, %v1398
    %v1400 = vpop.f32.mrb[0].mxu0
    %v1401 = vadd.f32 0.0, %v1400
    %1402 = vmatprep.mubr.f32.mxu0 0.0
    %1403 = vmatmul.mubr.f32.gmra.mrb[0].mxu0 %v1211
    %v1404 = vpop.f32.mrb[0].mxu0
    %v1405 = vadd.f32 0.0, %v1404
    %v1406 = vpop.f32.mrb[0].mxu0
    %v1407 = vadd.f32 0.0, %v1406
    %1408 = vdwg.mxu0
    %v1409 = vadd.f32 %v1215, %v1298
    %v1410 = vadd.f32 %v1216, %v1300
    %v1411 = vadd.f32 %v1217, %v1387
    %v1412 = vadd.f32 %v1218, %v1389
    %v1413 = vadd.f32 %v1219, %v1304
    %v1414 = vadd.f32 %v1220, %v1306
    %v1415 = vadd.f32 %v1221, %v1393
    %v1416 = vadd.f32 %v1222, %v1395
    %v1417 = vadd.f32 %v1223, %v1310
    %v1418 = vadd.f32 %v1224, %v1312
    %v1419 = vadd.f32 %v1225, %v1399
    %v1420 = vadd.f32 %v1226, %v1401
    %v1421 = vadd.f32 %v1227, %v1316
    %v1422 = vadd.f32 %v1228, %v1318
    %v1423 = vadd.f32 %v1229, %v1405
    %v1424 = vadd.f32 %v1230, %v1407
    %v1425 = vxor.u32 %v1409, 2147483648
    %v1426 = vxor.u32 %v1410, 2147483648
    %v1427 = vxor.u32 %v1411, 2147483648
    %v1428 = vxor.u32 %v1413, 2147483648
    %v1429 = vxor.u32 %v1414, 2147483648
    %v1430 = vxor.u32 %v1415, 2147483648
    %v1431 = vxor.u32 %v1417, 2147483648
    %v1432 = vxor.u32 %v1418, 2147483648
    %v1433 = vxor.u32 %v1419, 2147483648
    %v1434 = vxor.u32 %v1421, 2147483648
    %v1435 = vxor.u32 %v1422, 2147483648
    %v1436 = vxor.u32 %v1423, 2147483648
    %v1437 = vmul.f32 %v1425, 1.442695
    %v1438 = vpow.pop %v1437
    %v1439 = vmul.f32 %v1426, 1.442695
    %v1440 = vpow.pop %v1439
    %v1441 = vmul.f32 %v1427, 1.442695
    %v1442 = vpow.pop %v1441
    %v1443 = vmul.f32 %v1428, 1.442695
    %v1444 = vpow.pop %v1443
    %v1445 = vmul.f32 %v1429, 1.442695
    %v1446 = vpow.pop %v1445
    %v1447 = vmul.f32 %v1430, 1.442695
    %v1448 = vpow.pop %v1447
    %v1449 = vmul.f32 %v1431, 1.442695
    %v1450 = vpow.pop %v1449
    %v1451 = vmul.f32 %v1432, 1.442695
    %v1452 = vpow.pop %v1451
    %v1453 = vmul.f32 %v1433, 1.442695
    %v1454 = vpow.pop %v1453
    %v1455 = vmul.f32 %v1434, 1.442695
    %v1456 = vpow.pop %v1455
    %v1457 = vmul.f32 %v1435, 1.442695
    %v1458 = vpow.pop %v1457
    %v1459 = vmul.f32 %v1436, 1.442695
    %v1460 = vpow.pop %v1459
    %v1461 = vadd.f32 %v1438, 1.0
    %v1462 = vadd.f32 %v1440, 1.0
    %v1463 = vadd.f32 %v1442, 1.0
    %v1464 = vadd.f32 %v1444, 1.0
    %v1465 = vadd.f32 %v1446, 1.0
    %v1466 = vadd.f32 %v1448, 1.0
    %v1467 = vadd.f32 %v1450, 1.0
    %v1468 = vadd.f32 %v1452, 1.0
    %v1469 = vadd.f32 %v1454, 1.0
    %v1470 = vadd.f32 %v1456, 1.0
    %v1471 = vadd.f32 %v1458, 1.0
    %v1472 = vadd.f32 %v1460, 1.0
    %v1473 = vrcp.pop %v1461
    %v1474 = vmul.f32 1.0, %v1473
    %v1475 = vrcp.pop %v1462
    %v1476 = vmul.f32 1.0, %v1475
    %v1477 = vrcp.pop %v1463
    %v1478 = vmul.f32 1.0, %v1477
    %v1479 = vrcp.pop %v1464
    %v1480 = vmul.f32 1.0, %v1479
    %v1481 = vrcp.pop %v1465
    %v1482 = vmul.f32 1.0, %v1481
    %v1483 = vrcp.pop %v1466
    %v1484 = vmul.f32 1.0, %v1483
    %v1485 = vrcp.pop %v1467
    %v1486 = vmul.f32 1.0, %v1485
    %v1487 = vrcp.pop %v1468
    %v1488 = vmul.f32 1.0, %v1487
    %v1489 = vrcp.pop %v1469
    %v1490 = vmul.f32 1.0, %v1489
    %v1491 = vrcp.pop %v1470
    %v1492 = vmul.f32 1.0, %v1491
    %v1493 = vrcp.pop %v1471
    %v1494 = vmul.f32 1.0, %v1493
    %v1495 = vrcp.pop %v1472
    %v1496 = vmul.f32 1.0, %v1495
    %v1497 = vtanh.pop %v1412
    %v1498 = vtanh.pop %v1416
    %v1499 = vtanh.pop %v1420
    %v1500 = vtanh.pop %v1424
    %v1501 = vmul.f32 %v1476, %v1200
    %v1502 = vmul.f32 %v1482, %v1201
    %v1503 = vmul.f32 %v1488, %v1202
    %v1504 = vmul.f32 %v1494, %v1203
    %v1505 = vmul.f32 %v1474, %v1497
    %v1506 = vmul.f32 %v1480, %v1498
    %v1507 = vmul.f32 %v1486, %v1499
    %v1508 = vmul.f32 %v1492, %v1500
    %v1509 = vadd.f32 %v1501, %v1505
    %v1510 = vadd.f32 %v1502, %v1506
    %v1511 = vadd.f32 %v1503, %v1507
    %v1512 = vadd.f32 %v1504, %v1508
    %v1513 = vtanh.pop %v1509
    %v1514 = vtanh.pop %v1510
    %v1515 = vtanh.pop %v1511
    %v1516 = vtanh.pop %v1512
    %v1517 = vmul.f32 %v1478, %v1513
    %v1518 = vmul.f32 %v1484, %v1514
    %v1519 = vmul.f32 %v1490, %v1515
    %v1520 = vmul.f32 %v1496, %v1516
    %s1521 = smul.u32 8, 4
    %s1522 = smul.addr %s1521, 8
    %s1523 = scalar_lea.vmem [#allocation2], %s1522
    %v1524 = vld [vmem:[%s1523] sm:$0xff]
    %v1525 = vld [vmem:[%s1523 + $0x8] sm:$0xff]
    %v1526 = vld [vmem:[%s1523 + $0x10] sm:$0xff]
    %v1527 = vld [vmem:[%s1523 + $0x18] sm:$0xff]
    %v1528 = vld [vmem:[%s1523 + $0x20] sm:$0xff]
    %v1529 = vld [vmem:[%s1523 + $0x28] sm:$0xff]
    %v1530 = vld [vmem:[%s1523 + $0x30] sm:$0xff]
    %v1531 = vld [vmem:[%s1523 + $0x38] sm:$0xff]
    %v1532 = vld [vmem:[%s1523 + $0x40] sm:$0xff]
    %v1533 = vld [vmem:[%s1523 + $0x48] sm:$0xff]
    %v1534 = vld [vmem:[%s1523 + $0x50] sm:$0xff]
    %v1535 = vld [vmem:[%s1523 + $0x58] sm:$0xff]
    %v1536 = vld [vmem:[%s1523 + $0x60] sm:$0xff]
    %v1537 = vld [vmem:[%s1523 + $0x68] sm:$0xff]
    %v1538 = vld [vmem:[%s1523 + $0x70] sm:$0xff]
    %v1539 = vld [vmem:[%s1523 + $0x78] sm:$0xff]
    %1540 = vmatprep.subr.mxu0 %v859
    %1541 = vmatpush1.msra.mxu0 %v858
    %1542 = vmatprep.subr.mxu0 %v863
    %1543 = vmatpush1.msra.mxu0 %v862
    %1544 = vmatprep.subr.mxu0 %v867
    %1545 = vmatpush1.msra.mxu0 %v866
    %1546 = vmatprep.subr.mxu0 %v871
    %1547 = vmatpush1.msra.mxu0 %v870
    %1548 = vmatprep.subr.mxu0 %v875
    %1549 = vmatpush1.msra.mxu0 %v874
    %1550 = vmatprep.subr.mxu0 %v879
    %1551 = vmatpush1.msra.mxu0 %v878
    %1552 = vmatprep.subr.mxu0 %v883
    %1553 = vmatpush1.msra.mxu0 %v882
    %1554 = vmatprep.subr.mxu0 %v887
    %1555 = vmatpush1.msra.mxu0 %v886
    %1556 = vmatprep.subr.mxu0 %v891
    %1557 = vmatpush1.msra.mxu0 %v890
    %1558 = vmatprep.subr.mxu0 %v895
    %1559 = vmatpush1.msra.mxu0 %v894
    %1560 = vmatprep.subr.mxu0 %v899
    %1561 = vmatpush1.msra.mxu0 %v898
    %1562 = vmatprep.subr.mxu0 %v903
    %1563 = vmatpush1.msra.mxu0 %v902
    %1564 = vmatprep.subr.mxu0 %v907
    %1565 = vmatpush1.msra.mxu0 %v906
    %1566 = vmatprep.subr.mxu0 %v911
    %1567 = vmatpush1.msra.mxu0 %v910
    %1568 = vmatprep.subr.mxu0 %v915
    %1569 = vmatpush1.msra.mxu0 %v914
    %1570 = vmatprep.subr.mxu0 %v919
    %1571 = vmatpush1.msra.mxu0 %v918
    %1572 = vmatprep.subr.mxu0 0.0
    %1573 = vmatpush1.msra.mxu0 0.0
    %1574 = vmatprep.subr.mxu0 0.0
    %1575 = vmatpush1.msra.mxu0 0.0
    %1576 = vmatprep.subr.mxu0 0.0
    %1577 = vmatpush1.msra.mxu0 0.0
    %1578 = vmatprep.subr.mxu0 0.0
    %1579 = vmatpush1.msra.mxu0 0.0
    %1580 = vmatprep.subr.mxu0 0.0
    %1581 = vmatpush1.msra.mxu0 0.0
    %1582 = vmatprep.subr.mxu0 0.0
    %1583 = vmatpush1.msra.mxu0 0.0
    %1584 = vmatprep.subr.mxu0 0.0
    %1585 = vmatpush1.msra.mxu0 0.0
    %1586 = vmatprep.subr.mxu0 0.0
    %1587 = vmatpush1.msra.mxu0 0.0
    %1588 = vmatprep.subr.mxu0 0.0
    %1589 = vmatpush1.msra.mxu0 0.0
    %1590 = vmatprep.subr.mxu0 0.0
    %1591 = vmatpush1.msra.mxu0 0.0
    %1592 = vmatprep.subr.mxu0 0.0
    %1593 = vmatpush1.msra.mxu0 0.0
    %1594 = vmatprep.subr.mxu0 0.0
    %1595 = vmatpush1.msra.mxu0 0.0
    %1596 = vmatprep.subr.mxu0 0.0
    %1597 = vmatpush1.msra.mxu0 0.0
    %1598 = vmatprep.subr.mxu0 0.0
    %1599 = vmatpush1.msra.mxu0 0.0
    %1600 = vmatprep.subr.mxu0 0.0
    %1601 = vmatpush1.msra.mxu0 0.0
    %1602 = vmatprep.subr.mxu0 0.0
    %1603 = vmatpush1.msra.mxu0 0.0
    %1604 = vmatprep.mubr.f32.mxu0 0.0
    %1605 = vmatmul.mubr.f32.gmra.mrb[0].mxu0 %v1517
    %v1606 = vpop.f32.mrb[0].mxu0
    %v1607 = vadd.f32 0.0, %v1606
    %v1608 = vpop.f32.mrb[0].mxu0
    %v1609 = vadd.f32 0.0, %v1608
    %1610 = vmatprep.mubr.f32.mxu0 0.0
    %1611 = vmatmul.mubr.f32.gmra.mrb[0].mxu0 %v1518
    %v1612 = vpop.f32.mrb[0].mxu0
    %v1613 = vadd.f32 0.0, %v1612
    %v1614 = vpop.f32.mrb[0].mxu0
    %v1615 = vadd.f32 0.0, %v1614
    %1616 = vmatprep.mubr.f32.mxu0 0.0
    %1617 = vmatmul.mubr.f32.gmra.mrb[0].mxu0 %v1519
    %v1618 = vpop.f32.mrb[0].mxu0
    %v1619 = vadd.f32 0.0, %v1618
    %v1620 = vpop.f32.mrb[0].mxu0
    %v1621 = vadd.f32 0.0, %v1620
    %1622 = vmatprep.mubr.f32.mxu0 0.0
    %1623 = vmatmul.mubr.f32.gmra.mrb[0].mxu0 %v1520
    %v1624 = vpop.f32.mrb[0].mxu0
    %v1625 = vadd.f32 0.0, %v1624
    %v1626 = vpop.f32.mrb[0].mxu0
    %v1627 = vadd.f32 0.0, %v1626
    %1628 = vdwg.mxu0
    %1629 = vmatprep.subr.mxu0 %v861
    %1630 = vmatpush1.msra.mxu0 %v860
    %1631 = vmatprep.subr.mxu0 %v865
    %1632 = vmatpush1.msra.mxu0 %v864
    %1633 = vmatprep.subr.mxu0 %v869
    %1634 = vmatpush1.msra.mxu0 %v868
    %1635 = vmatprep.subr.mxu0 %v873
    %1636 = vmatpush1.msra.mxu0 %v872
    %1637 = vmatprep.subr.mxu0 %v877
    %1638 = vmatpush1.msra.mxu0 %v876
    %1639 = vmatprep.subr.mxu0 %v881
    %1640 = vmatpush1.msra.mxu0 %v880
    %1641 = vmatprep.subr.mxu0 %v885
    %1642 = vmatpush1.msra.mxu0 %v884
    %1643 = vmatprep.subr.mxu0 %v889
    %1644 = vmatpush1.msra.mxu0 %v888
    %1645 = vmatprep.subr.mxu0 %v893
    %1646 = vmatpush1.msra.mxu0 %v892
    %1647 = vmatprep.subr.mxu0 %v897
    %1648 = vmatpush1.msra.mxu0 %v896
    %1649 = vmatprep.subr.mxu0 %v901
    %1650 = vmatpush1.msra.mxu0 %v900
    %1651 = vmatprep.subr.mxu0 %v905
    %1652 = vmatpush1.msra.mxu0 %v904
    %1653 = vmatprep.subr.mxu0 %v909
    %1654 = vmatpush1.msra.mxu0 %v908
    %1655 = vmatprep.subr.mxu0 %v913
    %1656 = vmatpush1.msra.mxu0 %v912
    %1657 = vmatprep.subr.mxu0 %v917
    %1658 = vmatpush1.msra.mxu0 %v916
    %1659 = vmatprep.subr.mxu0 %v921
    %1660 = vmatpush1.msra.mxu0 %v920
    %1661 = vmatprep.subr.mxu0 0.0
    %1662 = vmatpush1.msra.mxu0 0.0
    %1663 = vmatprep.subr.mxu0 0.0
    %1664 = vmatpush1.msra.mxu0 0.0
    %1665 = vmatprep.subr.mxu0 0.0
    %1666 = vmatpush1.msra.mxu0 0.0
    %1667 = vmatprep.subr.mxu0 0.0
    %1668 = vmatpush1.msra.mxu0 0.0
    %1669 = vmatprep.subr.mxu0 0.0
    %1670 = vmatpush1.msra.mxu0 0.0
    %1671 = vmatprep.subr.mxu0 0.0
    %1672 = vmatpush1.msra.mxu0 0.0
    %1673 = vmatprep.subr.mxu0 0.0
    %1674 = vmatpush1.msra.mxu0 0.0
    %1675 = vmatprep.subr.mxu0 0.0
    %1676 = vmatpush1.msra.mxu0 0.0
    %1677 = vmatprep.subr.mxu0 0.0
    %1678 = vmatpush1.msra.mxu0 0.0
    %1679 = vmatprep.subr.mxu0 0.0
    %1680 = vmatpush1.msra.mxu0 0.0
    %1681 = vmatprep.subr.mxu0 0.0
    %1682 = vmatpush1.msra.mxu0 0.0
    %1683 = vmatprep.subr.mxu0 0.0
    %1684 = vmatpush1.msra.mxu0 0.0
    %1685 = vmatprep.subr.mxu0 0.0
    %1686 = vmatpush1.msra.mxu0 0.0
    %1687 = vmatprep.subr.mxu0 0.0
    %1688 = vmatpush1.msra.mxu0 0.0
    %1689 = vmatprep.subr.mxu0 0.0
    %1690 = vmatpush1.msra.mxu0 0.0
    %1691 = vmatprep.subr.mxu0 0.0
    %1692 = vmatpush1.msra.mxu0 0.0
    %1693 = vmatprep.mubr.f32.mxu0 0.0
    %1694 = vmatmul.mubr.f32.gmra.mrb[0].mxu0 %v1517
    %v1695 = vpop.f32.mrb[0].mxu0
    %v1696 = vadd.f32 0.0, %v1695
    %v1697 = vpop.f32.mrb[0].mxu0
    %v1698 = vadd.f32 0.0, %v1697
    %1699 = vmatprep.mubr.f32.mxu0 0.0
    %1700 = vmatmul.mubr.f32.gmra.mrb[0].mxu0 %v1518
    %v1701 = vpop.f32.mrb[0].mxu0
    %v1702 = vadd.f32 0.0, %v1701
    %v1703 = vpop.f32.mrb[0].mxu0
    %v1704 = vadd.f32 0.0, %v1703
    %1705 = vmatprep.mubr.f32.mxu0 0.0
    %1706 = vmatmul.mubr.f32.gmra.mrb[0].mxu0 %v1519
    %v1707 = vpop.f32.mrb[0].mxu0
    %v1708 = vadd.f32 0.0, %v1707
    %v1709 = vpop.f32.mrb[0].mxu0
    %v1710 = vadd.f32 0.0, %v1709
    %1711 = vmatprep.mubr.f32.mxu0 0.0
    %1712 = vmatmul.mubr.f32.gmra.mrb[0].mxu0 %v1520
    %v1713 = vpop.f32.mrb[0].mxu0
    %v1714 = vadd.f32 0.0, %v1713
    %v1715 = vpop.f32.mrb[0].mxu0
    %v1716 = vadd.f32 0.0, %v1715
    %1717 = vdwg.mxu0
    %v1718 = vadd.f32 %v1524, %v1607
    %v1719 = vadd.f32 %v1525, %v1609
    %v1720 = vadd.f32 %v1526, %v1696
    %v1721 = vadd.f32 %v1527, %v1698
    %v1722 = vadd.f32 %v1528, %v1613
    %v1723 = vadd.f32 %v1529, %v1615
    %v1724 = vadd.f32 %v1530, %v1702
    %v1725 = vadd.f32 %v1531, %v1704
    %v1726 = vadd.f32 %v1532, %v1619
    %v1727 = vadd.f32 %v1533, %v1621
    %v1728 = vadd.f32 %v1534, %v1708
    %v1729 = vadd.f32 %v1535, %v1710
    %v1730 = vadd.f32 %v1536, %v1625
    %v1731 = vadd.f32 %v1537, %v1627
    %v1732 = vadd.f32 %v1538, %v1714
    %v1733 = vadd.f32 %v1539, %v1716
    %v1734 = vxor.u32 %v1718, 2147483648
    %v1735 = vxor.u32 %v1719, 2147483648
    %v1736 = vxor.u32 %v1720, 2147483648
    %v1737 = vxor.u32 %v1722, 2147483648
    %v1738 = vxor.u32 %v1723, 2147483648
    %v1739 = vxor.u32 %v1724, 2147483648
    %v1740 = vxor.u32 %v1726, 2147483648
    %v1741 = vxor.u32 %v1727, 2147483648
    %v1742 = vxor.u32 %v1728, 2147483648
    %v1743 = vxor.u32 %v1730, 2147483648
    %v1744 = vxor.u32 %v1731, 2147483648
    %v1745 = vxor.u32 %v1732, 2147483648
    %v1746 = vmul.f32 %v1734, 1.442695
    %v1747 = vpow.pop %v1746
    %v1748 = vmul.f32 %v1735, 1.442695
    %v1749 = vpow.pop %v1748
    %v1750 = vmul.f32 %v1736, 1.442695
    %v1751 = vpow.pop %v1750
    %v1752 = vmul.f32 %v1737, 1.442695
    %v1753 = vpow.pop %v1752
    %v1754 = vmul.f32 %v1738, 1.442695
    %v1755 = vpow.pop %v1754
    %v1756 = vmul.f32 %v1739, 1.442695
    %v1757 = vpow.pop %v1756
    %v1758 = vmul.f32 %v1740, 1.442695
    %v1759 = vpow.pop %v1758
    %v1760 = vmul.f32 %v1741, 1.442695
    %v1761 = vpow.pop %v1760
    %v1762 = vmul.f32 %v1742, 1.442695
    %v1763 = vpow.pop %v1762
    %v1764 = vmul.f32 %v1743, 1.442695
    %v1765 = vpow.pop %v1764
    %v1766 = vmul.f32 %v1744, 1.442695
    %v1767 = vpow.pop %v1766
    %v1768 = vmul.f32 %v1745, 1.442695
    %v1769 = vpow.pop %v1768
    %v1770 = vadd.f32 %v1747, 1.0
    %v1771 = vadd.f32 %v1749, 1.0
    %v1772 = vadd.f32 %v1751, 1.0
    %v1773 = vadd.f32 %v1753, 1.0
    %v1774 = vadd.f32 %v1755, 1.0
    %v1775 = vadd.f32 %v1757, 1.0
    %v1776 = vadd.f32 %v1759, 1.0
    %v1777 = vadd.f32 %v1761, 1.0
    %v1778 = vadd.f32 %v1763, 1.0
    %v1779 = vadd.f32 %v1765, 1.0
    %v1780 = vadd.f32 %v1767, 1.0
    %v1781 = vadd.f32 %v1769, 1.0
    %v1782 = vrcp.pop %v1770
    %v1783 = vmul.f32 1.0, %v1782
    %v1784 = vrcp.pop %v1771
    %v1785 = vmul.f32 1.0, %v1784
    %v1786 = vrcp.pop %v1772
    %v1787 = vmul.f32 1.0, %v1786
    %v1788 = vrcp.pop %v1773
    %v1789 = vmul.f32 1.0, %v1788
    %v1790 = vrcp.pop %v1774
    %v1791 = vmul.f32 1.0, %v1790
    %v1792 = vrcp.pop %v1775
    %v1793 = vmul.f32 1.0, %v1792
    %v1794 = vrcp.pop %v1776
    %v1795 = vmul.f32 1.0, %v1794
    %v1796 = vrcp.pop %v1777
    %v1797 = vmul.f32 1.0, %v1796
    %v1798 = vrcp.pop %v1778
    %v1799 = vmul.f32 1.0, %v1798
    %v1800 = vrcp.pop %v1779
    %v1801 = vmul.f32 1.0, %v1800
    %v1802 = vrcp.pop %v1780
    %v1803 = vmul.f32 1.0, %v1802
    %v1804 = vrcp.pop %v1781
    %v1805 = vmul.f32 1.0, %v1804
    %v1806 = vtanh.pop %v1721
    %v1807 = vtanh.pop %v1725
    %v1808 = vtanh.pop %v1729
    %v1809 = vtanh.pop %v1733
    %v1810 = vmul.f32 %v1785, %v1509
    %v1811 = vmul.f32 %v1791, %v1510
    %v1812 = vmul.f32 %v1797, %v1511
    %v1813 = vmul.f32 %v1803, %v1512
    %v1814 = vmul.f32 %v1783, %v1806
    %v1815 = vmul.f32 %v1789, %v1807
    %v1816 = vmul.f32 %v1795, %v1808
    %v1817 = vmul.f32 %v1801, %v1809
    %v1818 = vadd.f32 %v1810, %v1814
    %v1819 = vadd.f32 %v1811, %v1815
    %v1820 = vadd.f32 %v1812, %v1816
    %v1821 = vadd.f32 %v1813, %v1817
    %v1822 = vtanh.pop %v1818
    %v1823 = vtanh.pop %v1819
    %v1824 = vtanh.pop %v1820
    %v1825 = vtanh.pop %v1821
    %v1826 = vmul.f32 %v1787, %v1822
    %v1827 = vmul.f32 %v1793, %v1823
    %v1828 = vmul.f32 %v1799, %v1824
    %v1829 = vmul.f32 %v1805, %v1825
    %s1830 = smul.u32 12, 4
    %s1831 = smul.addr %s1830, 8
    %s1832 = scalar_lea.vmem [#allocation2], %s1831
    %v1833 = vld [vmem:[%s1832] sm:$0xff]
    %v1834 = vld [vmem:[%s1832 + $0x8] sm:$0xff]
    %v1835 = vld [vmem:[%s1832 + $0x10] sm:$0xff]
    %v1836 = vld [vmem:[%s1832 + $0x18] sm:$0xff]
    %v1837 = vld [vmem:[%s1832 + $0x20] sm:$0xff]
    %v1838 = vld [vmem:[%s1832 + $0x28] sm:$0xff]
    %v1839 = vld [vmem:[%s1832 + $0x30] sm:$0xff]
    %v1840 = vld [vmem:[%s1832 + $0x38] sm:$0xff]
    %v1841 = vld [vmem:[%s1832 + $0x40] sm:$0xff]
    %v1842 = vld [vmem:[%s1832 + $0x48] sm:$0xff]
    %v1843 = vld [vmem:[%s1832 + $0x50] sm:$0xff]
    %v1844 = vld [vmem:[%s1832 + $0x58] sm:$0xff]
    %v1845 = vld [vmem:[%s1832 + $0x60] sm:$0xff]
    %v1846 = vld [vmem:[%s1832 + $0x68] sm:$0xff]
    %v1847 = vld [vmem:[%s1832 + $0x70] sm:$0xff]
    %v1848 = vld [vmem:[%s1832 + $0x78] sm:$0xff]
    %1849 = vmatprep.subr.mxu0 %v859
    %1850 = vmatpush1.msra.mxu0 %v858
    %1851 = vmatprep.subr.mxu0 %v863
    %1852 = vmatpush1.msra.mxu0 %v862
    %1853 = vmatprep.subr.mxu0 %v867
    %1854 = vmatpush1.msra.mxu0 %v866
    %1855 = vmatprep.subr.mxu0 %v871
    %1856 = vmatpush1.msra.mxu0 %v870
    %1857 = vmatprep.subr.mxu0 %v875
    %1858 = vmatpush1.msra.mxu0 %v874
    %1859 = vmatprep.subr.mxu0 %v879
    %1860 = vmatpush1.msra.mxu0 %v878
    %1861 = vmatprep.subr.mxu0 %v883
    %1862 = vmatpush1.msra.mxu0 %v882
    %1863 = vmatprep.subr.mxu0 %v887
    %1864 = vmatpush1.msra.mxu0 %v886
    %1865 = vmatprep.subr.mxu0 %v891
    %1866 = vmatpush1.msra.mxu0 %v890
    %1867 = vmatprep.subr.mxu0 %v895
    %1868 = vmatpush1.msra.mxu0 %v894
    %1869 = vmatprep.subr.mxu0 %v899
    %1870 = vmatpush1.msra.mxu0 %v898
    %1871 = vmatprep.subr.mxu0 %v903
    %1872 = vmatpush1.msra.mxu0 %v902
    %1873 = vmatprep.subr.mxu0 %v907
    %1874 = vmatpush1.msra.mxu0 %v906
    %1875 = vmatprep.subr.mxu0 %v911
    %1876 = vmatpush1.msra.mxu0 %v910
    %1877 = vmatprep.subr.mxu0 %v915
    %1878 = vmatpush1.msra.mxu0 %v914
    %1879 = vmatprep.subr.mxu0 %v919
    %1880 = vmatpush1.msra.mxu0 %v918
    %1881 = vmatprep.subr.mxu0 0.0
    %1882 = vmatpush1.msra.mxu0 0.0
    %1883 = vmatprep.subr.mxu0 0.0
    %1884 = vmatpush1.msra.mxu0 0.0
    %1885 = vmatprep.subr.mxu0 0.0
    %1886 = vmatpush1.msra.mxu0 0.0
    %1887 = vmatprep.subr.mxu0 0.0
    %1888 = vmatpush1.msra.mxu0 0.0
    %1889 = vmatprep.subr.mxu0 0.0
    %1890 = vmatpush1.msra.mxu0 0.0
    %1891 = vmatprep.subr.mxu0 0.0
    %1892 = vmatpush1.msra.mxu0 0.0
    %1893 = vmatprep.subr.mxu0 0.0
    %1894 = vmatpush1.msra.mxu0 0.0
    %1895 = vmatprep.subr.mxu0 0.0
    %1896 = vmatpush1.msra.mxu0 0.0
    %1897 = vmatprep.subr.mxu0 0.0
    %1898 = vmatpush1.msra.mxu0 0.0
    %1899 = vmatprep.subr.mxu0 0.0
    %1900 = vmatpush1.msra.mxu0 0.0
    %1901 = vmatprep.subr.mxu0 0.0
    %1902 = vmatpush1.msra.mxu0 0.0
    %1903 = vmatprep.subr.mxu0 0.0
    %1904 = vmatpush1.msra.mxu0 0.0
    %1905 = vmatprep.subr.mxu0 0.0
    %1906 = vmatpush1.msra.mxu0 0.0
    %1907 = vmatprep.subr.mxu0 0.0
    %1908 = vmatpush1.msra.mxu0 0.0
    %1909 = vmatprep.subr.mxu0 0.0
    %1910 = vmatpush1.msra.mxu0 0.0
    %1911 = vmatprep.subr.mxu0 0.0
    %1912 = vmatpush1.msra.mxu0 0.0
    %1913 = vmatprep.mubr.f32.mxu0 0.0
    %1914 = vmatmul.mubr.f32.gmra.mrb[0].mxu0 %v1826
    %v1915 = vpop.f32.mrb[0].mxu0
    %v1916 = vadd.f32 0.0, %v1915
    %v1917 = vpop.f32.mrb[0].mxu0
    %v1918 = vadd.f32 0.0, %v1917
    %1919 = vmatprep.mubr.f32.mxu0 0.0
    %1920 = vmatmul.mubr.f32.gmra.mrb[0].mxu0 %v1827
    %v1921 = vpop.f32.mrb[0].mxu0
    %v1922 = vadd.f32 0.0, %v1921
    %v1923 = vpop.f32.mrb[0].mxu0
    %v1924 = vadd.f32 0.0, %v1923
    %1925 = vmatprep.mubr.f32.mxu0 0.0
    %1926 = vmatmul.mubr.f32.gmra.mrb[0].mxu0 %v1828
    %v1927 = vpop.f32.mrb[0].mxu0
    %v1928 = vadd.f32 0.0, %v1927
    %v1929 = vpop.f32.mrb[0].mxu0
    %v1930 = vadd.f32 0.0, %v1929
    %1931 = vmatprep.mubr.f32.mxu0 0.0
    %1932 = vmatmul.mubr.f32.gmra.mrb[0].mxu0 %v1829
    %v1933 = vpop.f32.mrb[0].mxu0
    %v1934 = vadd.f32 0.0, %v1933
    %v1935 = vpop.f32.mrb[0].mxu0
    %v1936 = vadd.f32 0.0, %v1935
    %1937 = vdwg.mxu0
    %1938 = vmatprep.subr.mxu0 %v861
    %1939 = vmatpush1.msra.mxu0 %v860
    %1940 = vmatprep.subr.mxu0 %v865
    %1941 = vmatpush1.msra.mxu0 %v864
    %1942 = vmatprep.subr.mxu0 %v869
    %1943 = vmatpush1.msra.mxu0 %v868
    %1944 = vmatprep.subr.mxu0 %v873
    %1945 = vmatpush1.msra.mxu0 %v872
    %1946 = vmatprep.subr.mxu0 %v877
    %1947 = vmatpush1.msra.mxu0 %v876
    %1948 = vmatprep.subr.mxu0 %v881
    %1949 = vmatpush1.msra.mxu0 %v880
    %1950 = vmatprep.subr.mxu0 %v885
    %1951 = vmatpush1.msra.mxu0 %v884
    %1952 = vmatprep.subr.mxu0 %v889
    %1953 = vmatpush1.msra.mxu0 %v888
    %1954 = vmatprep.subr.mxu0 %v893
    %1955 = vmatpush1.msra.mxu0 %v892
    %1956 = vmatprep.subr.mxu0 %v897
    %1957 = vmatpush1.msra.mxu0 %v896
    %1958 = vmatprep.subr.mxu0 %v901
    %1959 = vmatpush1.msra.mxu0 %v900
    %1960 = vmatprep.subr.mxu0 %v905
    %1961 = vmatpush1.msra.mxu0 %v904
    %1962 = vmatprep.subr.mxu0 %v909
    %1963 = vmatpush1.msra.mxu0 %v908
    %1964 = vmatprep.subr.mxu0 %v913
    %1965 = vmatpush1.msra.mxu0 %v912
    %1966 = vmatprep.subr.mxu0 %v917
    %1967 = vmatpush1.msra.mxu0 %v916
    %1968 = vmatprep.subr.mxu0 %v921
    %1969 = vmatpush1.msra.mxu0 %v920
    %1970 = vmatprep.subr.mxu0 0.0
    %1971 = vmatpush1.msra.mxu0 0.0
    %1972 = vmatprep.subr.mxu0 0.0
    %1973 = vmatpush1.msra.mxu0 0.0
    %1974 = vmatprep.subr.mxu0 0.0
    %1975 = vmatpush1.msra.mxu0 0.0
    %1976 = vmatprep.subr.mxu0 0.0
    %1977 = vmatpush1.msra.mxu0 0.0
    %1978 = vmatprep.subr.mxu0 0.0
    %1979 = vmatpush1.msra.mxu0 0.0
    %1980 = vmatprep.subr.mxu0 0.0
    %1981 = vmatpush1.msra.mxu0 0.0
    %1982 = vmatprep.subr.mxu0 0.0
    %1983 = vmatpush1.msra.mxu0 0.0
    %1984 = vmatprep.subr.mxu0 0.0
    %1985 = vmatpush1.msra.mxu0 0.0
    %1986 = vmatprep.subr.mxu0 0.0
    %1987 = vmatpush1.msra.mxu0 0.0
    %1988 = vmatprep.subr.mxu0 0.0
    %1989 = vmatpush1.msra.mxu0 0.0
    %1990 = vmatprep.subr.mxu0 0.0
    %1991 = vmatpush1.msra.mxu0 0.0
    %1992 = vmatprep.subr.mxu0 0.0
    %1993 = vmatpush1.msra.mxu0 0.0
    %1994 = vmatprep.subr.mxu0 0.0
    %1995 = vmatpush1.msra.mxu0 0.0
    %1996 = vmatprep.subr.mxu0 0.0
    %1997 = vmatpush1.msra.mxu0 0.0
    %1998 = vmatprep.subr.mxu0 0.0
    %1999 = vmatpush1.msra.mxu0 0.0
    %2000 = vmatprep.subr.mxu0 0.0
    %2001 = vmatpush1.msra.mxu0 0.0
    %2002 = vmatprep.mubr.f32.mxu0 0.0
    %2003 = vmatmul.mubr.f32.gmra.mrb[0].mxu0 %v1826
    %v2004 = vpop.f32.mrb[0].mxu0
    %v2005 = vadd.f32 0.0, %v2004
    %v2006 = vpop.f32.mrb[0].mxu0
    %v2007 = vadd.f32 0.0, %v2006
    %2008 = vmatprep.mubr.f32.mxu0 0.0
    %2009 = vmatmul.mubr.f32.gmra.mrb[0].mxu0 %v1827
    %v2010 = vpop.f32.mrb[0].mxu0
    %v2011 = vadd.f32 0.0, %v2010
    %v2012 = vpop.f32.mrb[0].mxu0
    %v2013 = vadd.f32 0.0, %v2012
    %2014 = vmatprep.mubr.f32.mxu0 0.0
    %2015 = vmatmul.mubr.f32.gmra.mrb[0].mxu0 %v1828
    %v2016 = vpop.f32.mrb[0].mxu0
    %v2017 = vadd.f32 0.0, %v2016
    %v2018 = vpop.f32.mrb[0].mxu0
    %v2019 = vadd.f32 0.0, %v2018
    %2020 = vmatprep.mubr.f32.mxu0 0.0
    %2021 = vmatmul.mubr.f32.gmra.mrb[0].mxu0 %v1829
    %v2022 = vpop.f32.mrb[0].mxu0
    %v2023 = vadd.f32 0.0, %v2022
    %v2024 = vpop.f32.mrb[0].mxu0
    %v2025 = vadd.f32 0.0, %v2024
    %2026 = vdwg.mxu0
    %v2027 = vadd.f32 %v1833, %v1916
    %v2028 = vadd.f32 %v1834, %v1918
    %v2029 = vadd.f32 %v1835, %v2005
    %v2030 = vadd.f32 %v1836, %v2007
    %v2031 = vadd.f32 %v1837, %v1922
    %v2032 = vadd.f32 %v1838, %v1924
    %v2033 = vadd.f32 %v1839, %v2011
    %v2034 = vadd.f32 %v1840, %v2013
    %v2035 = vadd.f32 %v1841, %v1928
    %v2036 = vadd.f32 %v1842, %v1930
    %v2037 = vadd.f32 %v1843, %v2017
    %v2038 = vadd.f32 %v1844, %v2019
    %v2039 = vadd.f32 %v1845, %v1934
    %v2040 = vadd.f32 %v1846, %v1936
    %v2041 = vadd.f32 %v1847, %v2023
    %v2042 = vadd.f32 %v1848, %v2025
    %v2043 = vxor.u32 %v2027, 2147483648
    %v2044 = vxor.u32 %v2028, 2147483648
    %v2045 = vxor.u32 %v2029, 2147483648
    %v2046 = vxor.u32 %v2031, 2147483648
    %v2047 = vxor.u32 %v2032, 2147483648
    %v2048 = vxor.u32 %v2033, 2147483648
    %v2049 = vxor.u32 %v2035, 2147483648
    %v2050 = vxor.u32 %v2036, 2147483648
    %v2051 = vxor.u32 %v2037, 2147483648
    %v2052 = vxor.u32 %v2039, 2147483648
    %v2053 = vxor.u32 %v2040, 2147483648
    %v2054 = vxor.u32 %v2041, 2147483648
    %v2055 = vmul.f32 %v2043, 1.442695
    %v2056 = vpow.pop %v2055
    %v2057 = vmul.f32 %v2044, 1.442695
    %v2058 = vpow.pop %v2057
    %v2059 = vmul.f32 %v2045, 1.442695
    %v2060 = vpow.pop %v2059
    %v2061 = vmul.f32 %v2046, 1.442695
    %v2062 = vpow.pop %v2061
    %v2063 = vmul.f32 %v2047, 1.442695
    %v2064 = vpow.pop %v2063
    %v2065 = vmul.f32 %v2048, 1.442695
    %v2066 = vpow.pop %v2065
    %v2067 = vmul.f32 %v2049, 1.442695
    %v2068 = vpow.pop %v2067
    %v2069 = vmul.f32 %v2050, 1.442695
    %v2070 = vpow.pop %v2069
    %v2071 = vmul.f32 %v2051, 1.442695
    %v2072 = vpow.pop %v2071
    %v2073 = vmul.f32 %v2052, 1.442695
    %v2074 = vpow.pop %v2073
    %v2075 = vmul.f32 %v2053, 1.442695
    %v2076 = vpow.pop %v2075
    %v2077 = vmul.f32 %v2054, 1.442695
    %v2078 = vpow.pop %v2077
    %v2079 = vadd.f32 %v2056, 1.0
    %v2080 = vadd.f32 %v2058, 1.0
    %v2081 = vadd.f32 %v2060, 1.0
    %v2082 = vadd.f32 %v2062, 1.0
    %v2083 = vadd.f32 %v2064, 1.0
    %v2084 = vadd.f32 %v2066, 1.0
    %v2085 = vadd.f32 %v2068, 1.0
    %v2086 = vadd.f32 %v2070, 1.0
    %v2087 = vadd.f32 %v2072, 1.0
    %v2088 = vadd.f32 %v2074, 1.0
    %v2089 = vadd.f32 %v2076, 1.0
    %v2090 = vadd.f32 %v2078, 1.0
    %v2091 = vrcp.pop %v2079
    %v2092 = vmul.f32 1.0, %v2091
    %v2093 = vrcp.pop %v2080
    %v2094 = vmul.f32 1.0, %v2093
    %v2095 = vrcp.pop %v2081
    %v2096 = vmul.f32 1.0, %v2095
    %v2097 = vrcp.pop %v2082
    %v2098 = vmul.f32 1.0, %v2097
    %v2099 = vrcp.pop %v2083
    %v2100 = vmul.f32 1.0, %v2099
    %v2101 = vrcp.pop %v2084
    %v2102 = vmul.f32 1.0, %v2101
    %v2103 = vrcp.pop %v2085
    %v2104 = vmul.f32 1.0, %v2103
    %v2105 = vrcp.pop %v2086
    %v2106 = vmul.f32 1.0, %v2105
    %v2107 = vrcp.pop %v2087
    %v2108 = vmul.f32 1.0, %v2107
    %v2109 = vrcp.pop %v2088
    %v2110 = vmul.f32 1.0, %v2109
    %v2111 = vrcp.pop %v2089
    %v2112 = vmul.f32 1.0, %v2111
    %v2113 = vrcp.pop %v2090
    %v2114 = vmul.f32 1.0, %v2113
    %v2115 = vtanh.pop %v2030
    %v2116 = vtanh.pop %v2034
    %v2117 = vtanh.pop %v2038
    %v2118 = vtanh.pop %v2042
    %v2119 = vmul.f32 %v2094, %v1818
    %v2120 = vmul.f32 %v2100, %v1819
    %v2121 = vmul.f32 %v2106, %v1820
    %v2122 = vmul.f32 %v2112, %v1821
    %v2123 = vmul.f32 %v2092, %v2115
    %v2124 = vmul.f32 %v2098, %v2116
    %v2125 = vmul.f32 %v2104, %v2117
    %v2126 = vmul.f32 %v2110, %v2118
    %v2127 = vadd.f32 %v2119, %v2123
    %v2128 = vadd.f32 %v2120, %v2124
    %v2129 = vadd.f32 %v2121, %v2125
    %v2130 = vadd.f32 %v2122, %v2126
    %v2131 = vtanh.pop %v2127
    %v2132 = vtanh.pop %v2128
    %v2133 = vtanh.pop %v2129
    %v2134 = vtanh.pop %v2130
    %v2135 = vmul.f32 %v2096, %v2131
    %v2136 = vmul.f32 %v2102, %v2132
    %v2137 = vmul.f32 %v2108, %v2133
    %v2138 = vmul.f32 %v2114, %v2134
    %s2139 = smul.u32 16, 4
    %s2140 = smul.addr %s2139, 8
    %s2141 = scalar_lea.vmem [#allocation2], %s2140
    %v2142 = vld [vmem:[%s2141] sm:$0xff]
    %v2143 = vld [vmem:[%s2141 + $0x8] sm:$0xff]
    %v2144 = vld [vmem:[%s2141 + $0x10] sm:$0xff]
    %v2145 = vld [vmem:[%s2141 + $0x18] sm:$0xff]
    %v2146 = vld [vmem:[%s2141 + $0x20] sm:$0xff]
    %v2147 = vld [vmem:[%s2141 + $0x28] sm:$0xff]
    %v2148 = vld [vmem:[%s2141 + $0x30] sm:$0xff]
    %v2149 = vld [vmem:[%s2141 + $0x38] sm:$0xff]
    %v2150 = vld [vmem:[%s2141 + $0x40] sm:$0xff]
    %v2151 = vld [vmem:[%s2141 + $0x48] sm:$0xff]
    %v2152 = vld [vmem:[%s2141 + $0x50] sm:$0xff]
    %v2153 = vld [vmem:[%s2141 + $0x58] sm:$0xff]
    %v2154 = vld [vmem:[%s2141 + $0x60] sm:$0xff]
    %v2155 = vld [vmem:[%s2141 + $0x68] sm:$0xff]
    %v2156 = vld [vmem:[%s2141 + $0x70] sm:$0xff]
    %v2157 = vld [vmem:[%s2141 + $0x78] sm:$0xff]
    %2158 = vmatprep.subr.mxu0 %v859
    %2159 = vmatpush1.msra.mxu0 %v858
    %2160 = vmatprep.subr.mxu0 %v863
    %2161 = vmatpush1.msra.mxu0 %v862
    %2162 = vmatprep.subr.mxu0 %v867
    %2163 = vmatpush1.msra.mxu0 %v866
    %2164 = vmatprep.subr.mxu0 %v871
    %2165 = vmatpush1.msra.mxu0 %v870
    %2166 = vmatprep.subr.mxu0 %v875
    %2167 = vmatpush1.msra.mxu0 %v874
    %2168 = vmatprep.subr.mxu0 %v879
    %2169 = vmatpush1.msra.mxu0 %v878
    %2170 = vmatprep.subr.mxu0 %v883
    %2171 = vmatpush1.msra.mxu0 %v882
    %2172 = vmatprep.subr.mxu0 %v887
    %2173 = vmatpush1.msra.mxu0 %v886
    %2174 = vmatprep.subr.mxu0 %v891
    %2175 = vmatpush1.msra.mxu0 %v890
    %2176 = vmatprep.subr.mxu0 %v895
    %2177 = vmatpush1.msra.mxu0 %v894
    %2178 = vmatprep.subr.mxu0 %v899
    %2179 = vmatpush1.msra.mxu0 %v898
    %2180 = vmatprep.subr.mxu0 %v903
    %2181 = vmatpush1.msra.mxu0 %v902
    %2182 = vmatprep.subr.mxu0 %v907
    %2183 = vmatpush1.msra.mxu0 %v906
    %2184 = vmatprep.subr.mxu0 %v911
    %2185 = vmatpush1.msra.mxu0 %v910
    %2186 = vmatprep.subr.mxu0 %v915
    %2187 = vmatpush1.msra.mxu0 %v914
    %2188 = vmatprep.subr.mxu0 %v919
    %2189 = vmatpush1.msra.mxu0 %v918
    %2190 = vmatprep.subr.mxu0 0.0
    %2191 = vmatpush1.msra.mxu0 0.0
    %2192 = vmatprep.subr.mxu0 0.0
    %2193 = vmatpush1.msra.mxu0 0.0
    %2194 = vmatprep.subr.mxu0 0.0
    %2195 = vmatpush1.msra.mxu0 0.0
    %2196 = vmatprep.subr.mxu0 0.0
    %2197 = vmatpush1.msra.mxu0 0.0
    %2198 = vmatprep.subr.mxu0 0.0
    %2199 = vmatpush1.msra.mxu0 0.0
    %2200 = vmatprep.subr.mxu0 0.0
    %2201 = vmatpush1.msra.mxu0 0.0
    %2202 = vmatprep.subr.mxu0 0.0
    %2203 = vmatpush1.msra.mxu0 0.0
    %2204 = vmatprep.subr.mxu0 0.0
    %2205 = vmatpush1.msra.mxu0 0.0
    %2206 = vmatprep.subr.mxu0 0.0
    %2207 = vmatpush1.msra.mxu0 0.0
    %2208 = vmatprep.subr.mxu0 0.0
    %2209 = vmatpush1.msra.mxu0 0.0
    %2210 = vmatprep.subr.mxu0 0.0
    %2211 = vmatpush1.msra.mxu0 0.0
    %2212 = vmatprep.subr.mxu0 0.0
    %2213 = vmatpush1.msra.mxu0 0.0
    %2214 = vmatprep.subr.mxu0 0.0
    %2215 = vmatpush1.msra.mxu0 0.0
    %2216 = vmatprep.subr.mxu0 0.0
    %2217 = vmatpush1.msra.mxu0 0.0
    %2218 = vmatprep.subr.mxu0 0.0
    %2219 = vmatpush1.msra.mxu0 0.0
    %2220 = vmatprep.subr.mxu0 0.0
    %2221 = vmatpush1.msra.mxu0 0.0
    %2222 = vmatprep.mubr.f32.mxu0 0.0
    %2223 = vmatmul.mubr.f32.gmra.mrb[0].mxu0 %v2135
    %v2224 = vpop.f32.mrb[0].mxu0
    %v2225 = vadd.f32 0.0, %v2224
    %v2226 = vpop.f32.mrb[0].mxu0
    %v2227 = vadd.f32 0.0, %v2226
    %2228 = vmatprep.mubr.f32.mxu0 0.0
    %2229 = vmatmul.mubr.f32.gmra.mrb[0].mxu0 %v2136
    %v2230 = vpop.f32.mrb[0].mxu0
    %v2231 = vadd.f32 0.0, %v2230
    %v2232 = vpop.f32.mrb[0].mxu0
    %v2233 = vadd.f32 0.0, %v2232
    %2234 = vmatprep.mubr.f32.mxu0 0.0
    %2235 = vmatmul.mubr.f32.gmra.mrb[0].mxu0 %v2137
    %v2236 = vpop.f32.mrb[0].mxu0
    %v2237 = vadd.f32 0.0, %v2236
    %v2238 = vpop.f32.mrb[0].mxu0
    %v2239 = vadd.f32 0.0, %v2238
    %2240 = vmatprep.mubr.f32.mxu0 0.0
    %2241 = vmatmul.mubr.f32.gmra.mrb[0].mxu0 %v2138
    %v2242 = vpop.f32.mrb[0].mxu0
    %v2243 = vadd.f32 0.0, %v2242
    %v2244 = vpop.f32.mrb[0].mxu0
    %v2245 = vadd.f32 0.0, %v2244
    %2246 = vdwg.mxu0
    %2247 = vmatprep.subr.mxu0 %v861
    %2248 = vmatpush1.msra.mxu0 %v860
    %2249 = vmatprep.subr.mxu0 %v865
    %2250 = vmatpush1.msra.mxu0 %v864
    %2251 = vmatprep.subr.mxu0 %v869
    %2252 = vmatpush1.msra.mxu0 %v868
    %2253 = vmatprep.subr.mxu0 %v873
    %2254 = vmatpush1.msra.mxu0 %v872
    %2255 = vmatprep.subr.mxu0 %v877
    %2256 = vmatpush1.msra.mxu0 %v876
    %2257 = vmatprep.subr.mxu0 %v881
    %2258 = vmatpush1.msra.mxu0 %v880
    %2259 = vmatprep.subr.mxu0 %v885
    %2260 = vmatpush1.msra.mxu0 %v884
    %2261 = vmatprep.subr.mxu0 %v889
    %2262 = vmatpush1.msra.mxu0 %v888
    %2263 = vmatprep.subr.mxu0 %v893
    %2264 = vmatpush1.msra.mxu0 %v892
    %2265 = vmatprep.subr.mxu0 %v897
    %2266 = vmatpush1.msra.mxu0 %v896
    %2267 = vmatprep.subr.mxu0 %v901
    %2268 = vmatpush1.msra.mxu0 %v900
    %2269 = vmatprep.subr.mxu0 %v905
    %2270 = vmatpush1.msra.mxu0 %v904
    %2271 = vmatprep.subr.mxu0 %v909
    %2272 = vmatpush1.msra.mxu0 %v908
    %2273 = vmatprep.subr.mxu0 %v913
    %2274 = vmatpush1.msra.mxu0 %v912
    %2275 = vmatprep.subr.mxu0 %v917
    %2276 = vmatpush1.msra.mxu0 %v916
    %2277 = vmatprep.subr.mxu0 %v921
    %2278 = vmatpush1.msra.mxu0 %v920
    %2279 = vmatprep.subr.mxu0 0.0
    %2280 = vmatpush1.msra.mxu0 0.0
    %2281 = vmatprep.subr.mxu0 0.0
    %2282 = vmatpush1.msra.mxu0 0.0
    %2283 = vmatprep.subr.mxu0 0.0
    %2284 = vmatpush1.msra.mxu0 0.0
    %2285 = vmatprep.subr.mxu0 0.0
    %2286 = vmatpush1.msra.mxu0 0.0
    %2287 = vmatprep.subr.mxu0 0.0
    %2288 = vmatpush1.msra.mxu0 0.0
    %2289 = vmatprep.subr.mxu0 0.0
    %2290 = vmatpush1.msra.mxu0 0.0
    %2291 = vmatprep.subr.mxu0 0.0
    %2292 = vmatpush1.msra.mxu0 0.0
    %2293 = vmatprep.subr.mxu0 0.0
    %2294 = vmatpush1.msra.mxu0 0.0
    %2295 = vmatprep.subr.mxu0 0.0
    %2296 = vmatpush1.msra.mxu0 0.0
    %2297 = vmatprep.subr.mxu0 0.0
    %2298 = vmatpush1.msra.mxu0 0.0
    %2299 = vmatprep.subr.mxu0 0.0
    %2300 = vmatpush1.msra.mxu0 0.0
    %2301 = vmatprep.subr.mxu0 0.0
    %2302 = vmatpush1.msra.mxu0 0.0
    %2303 = vmatprep.subr.mxu0 0.0
    %2304 = vmatpush1.msra.mxu0 0.0
    %2305 = vmatprep.subr.mxu0 0.0
    %2306 = vmatpush1.msra.mxu0 0.0
    %2307 = vmatprep.subr.mxu0 0.0
    %2308 = vmatpush1.msra.mxu0 0.0
    %2309 = vmatprep.subr.mxu0 0.0
    %2310 = vmatpush1.msra.mxu0 0.0
    %2311 = vmatprep.mubr.f32.mxu0 0.0
    %2312 = vmatmul.mubr.f32.gmra.mrb[0].mxu0 %v2135
    %v2313 = vpop.f32.mrb[0].mxu0
    %v2314 = vadd.f32 0.0, %v2313
    %v2315 = vpop.f32.mrb[0].mxu0
    %v2316 = vadd.f32 0.0, %v2315
    %2317 = vmatprep.mubr.f32.mxu0 0.0
    %2318 = vmatmul.mubr.f32.gmra.mrb[0].mxu0 %v2136
    %v2319 = vpop.f32.mrb[0].mxu0
    %v2320 = vadd.f32 0.0, %v2319
    %v2321 = vpop.f32.mrb[0].mxu0
    %v2322 = vadd.f32 0.0, %v2321
    %2323 = vmatprep.mubr.f32.mxu0 0.0
    %2324 = vmatmul.mubr.f32.gmra.mrb[0].mxu0 %v2137
    %v2325 = vpop.f32.mrb[0].mxu0
    %v2326 = vadd.f32 0.0, %v2325
    %v2327 = vpop.f32.mrb[0].mxu0
    %v2328 = vadd.f32 0.0, %v2327
    %2329 = vmatprep.mubr.f32.mxu0 0.0
    %2330 = vmatmul.mubr.f32.gmra.mrb[0].mxu0 %v2138
    %v2331 = vpop.f32.mrb[0].mxu0
    %v2332 = vadd.f32 0.0, %v2331
    %v2333 = vpop.f32.mrb[0].mxu0
    %v2334 = vadd.f32 0.0, %v2333
    %2335 = vdwg.mxu0
    %v2336 = vadd.f32 %v2142, %v2225
    %v2337 = vadd.f32 %v2143, %v2227
    %v2338 = vadd.f32 %v2144, %v2314
    %v2339 = vadd.f32 %v2145, %v2316
    %v2340 = vadd.f32 %v2146, %v2231
    %v2341 = vadd.f32 %v2147, %v2233
    %v2342 = vadd.f32 %v2148, %v2320
    %v2343 = vadd.f32 %v2149, %v2322
    %v2344 = vadd.f32 %v2150, %v2237
    %v2345 = vadd.f32 %v2151, %v2239
    %v2346 = vadd.f32 %v2152, %v2326
    %v2347 = vadd.f32 %v2153, %v2328
    %v2348 = vadd.f32 %v2154, %v2243
    %v2349 = vadd.f32 %v2155, %v2245
    %v2350 = vadd.f32 %v2156, %v2332
    %v2351 = vadd.f32 %v2157, %v2334
    %v2352 = vxor.u32 %v2336, 2147483648
    %v2353 = vxor.u32 %v2337, 2147483648
    %v2354 = vxor.u32 %v2338, 2147483648
    %v2355 = vxor.u32 %v2340, 2147483648
    %v2356 = vxor.u32 %v2341, 2147483648
    %v2357 = vxor.u32 %v2342, 2147483648
    %v2358 = vxor.u32 %v2344, 2147483648
    %v2359 = vxor.u32 %v2345, 2147483648
    %v2360 = vxor.u32 %v2346, 2147483648
    %v2361 = vxor.u32 %v2348, 2147483648
    %v2362 = vxor.u32 %v2349, 2147483648
    %v2363 = vxor.u32 %v2350, 2147483648
    %v2364 = vmul.f32 %v2352, 1.442695
    %v2365 = vpow.pop %v2364
    %v2366 = vmul.f32 %v2353, 1.442695
    %v2367 = vpow.pop %v2366
    %v2368 = vmul.f32 %v2354, 1.442695
    %v2369 = vpow.pop %v2368
    %v2370 = vmul.f32 %v2355, 1.442695
    %v2371 = vpow.pop %v2370
    %v2372 = vmul.f32 %v2356, 1.442695
    %v2373 = vpow.pop %v2372
    %v2374 = vmul.f32 %v2357, 1.442695
    %v2375 = vpow.pop %v2374
    %v2376 = vmul.f32 %v2358, 1.442695
    %v2377 = vpow.pop %v2376
    %v2378 = vmul.f32 %v2359, 1.442695
    %v2379 = vpow.pop %v2378
    %v2380 = vmul.f32 %v2360, 1.442695
    %v2381 = vpow.pop %v2380
    %v2382 = vmul.f32 %v2361, 1.442695
    %v2383 = vpow.pop %v2382
    %v2384 = vmul.f32 %v2362, 1.442695
    %v2385 = vpow.pop %v2384
    %v2386 = vmul.f32 %v2363, 1.442695
    %v2387 = vpow.pop %v2386
    %v2388 = vadd.f32 %v2365, 1.0
    %v2389 = vadd.f32 %v2367, 1.0
    %v2390 = vadd.f32 %v2369, 1.0
    %v2391 = vadd.f32 %v2371, 1.0
    %v2392 = vadd.f32 %v2373, 1.0
    %v2393 = vadd.f32 %v2375, 1.0
    %v2394 = vadd.f32 %v2377, 1.0
    %v2395 = vadd.f32 %v2379, 1.0
    %v2396 = vadd.f32 %v2381, 1.0
    %v2397 = vadd.f32 %v2383, 1.0
    %v2398 = vadd.f32 %v2385, 1.0
    %v2399 = vadd.f32 %v2387, 1.0
    %v2400 = vrcp.pop %v2388
    %v2401 = vmul.f32 1.0, %v2400
    %v2402 = vrcp.pop %v2389
    %v2403 = vmul.f32 1.0, %v2402
    %v2404 = vrcp.pop %v2390
    %v2405 = vmul.f32 1.0, %v2404
    %v2406 = vrcp.pop %v2391
    %v2407 = vmul.f32 1.0, %v2406
    %v2408 = vrcp.pop %v2392
    %v2409 = vmul.f32 1.0, %v2408
    %v2410 = vrcp.pop %v2393
    %v2411 = vmul.f32 1.0, %v2410
    %v2412 = vrcp.pop %v2394
    %v2413 = vmul.f32 1.0, %v2412
    %v2414 = vrcp.pop %v2395
    %v2415 = vmul.f32 1.0, %v2414
    %v2416 = vrcp.pop %v2396
    %v2417 = vmul.f32 1.0, %v2416
    %v2418 = vrcp.pop %v2397
    %v2419 = vmul.f32 1.0, %v2418
    %v2420 = vrcp.pop %v2398
    %v2421 = vmul.f32 1.0, %v2420
    %v2422 = vrcp.pop %v2399
    %v2423 = vmul.f32 1.0, %v2422
    %v2424 = vtanh.pop %v2339
    %v2425 = vtanh.pop %v2343
    %v2426 = vtanh.pop %v2347
    %v2427 = vtanh.pop %v2351
    %v2428 = vmul.f32 %v2403, %v2127
    %v2429 = vmul.f32 %v2409, %v2128
    %v2430 = vmul.f32 %v2415, %v2129
    %v2431 = vmul.f32 %v2421, %v2130
    %v2432 = vmul.f32 %v2401, %v2424
    %v2433 = vmul.f32 %v2407, %v2425
    %v2434 = vmul.f32 %v2413, %v2426
    %v2435 = vmul.f32 %v2419, %v2427
    %v2436 = vadd.f32 %v2428, %v2432
    %v2437 = vadd.f32 %v2429, %v2433
    %v2438 = vadd.f32 %v2430, %v2434
    %v2439 = vadd.f32 %v2431, %v2435
    %v2440 = vtanh.pop %v2436
    %v2441 = vtanh.pop %v2437
    %v2442 = vtanh.pop %v2438
    %v2443 = vtanh.pop %v2439
    %v2444 = vmul.f32 %v2405, %v2440
    %v2445 = vmul.f32 %v2411, %v2441
    %v2446 = vmul.f32 %v2417, %v2442
    %v2447 = vmul.f32 %v2423, %v2443
    %s2448 = smul.u32 20, 4
    %s2449 = smul.addr %s2448, 8
    %s2450 = scalar_lea.vmem [#allocation2], %s2449
    %v2451 = vld [vmem:[%s2450] sm:$0xff]
    %v2452 = vld [vmem:[%s2450 + $0x8] sm:$0xff]
    %v2453 = vld [vmem:[%s2450 + $0x10] sm:$0xff]
    %v2454 = vld [vmem:[%s2450 + $0x18] sm:$0xff]
    %v2455 = vld [vmem:[%s2450 + $0x20] sm:$0xff]
    %v2456 = vld [vmem:[%s2450 + $0x28] sm:$0xff]
    %v2457 = vld [vmem:[%s2450 + $0x30] sm:$0xff]
    %v2458 = vld [vmem:[%s2450 + $0x38] sm:$0xff]
    %v2459 = vld [vmem:[%s2450 + $0x40] sm:$0xff]
    %v2460 = vld [vmem:[%s2450 + $0x48] sm:$0xff]
    %v2461 = vld [vmem:[%s2450 + $0x50] sm:$0xff]
    %v2462 = vld [vmem:[%s2450 + $0x58] sm:$0xff]
    %v2463 = vld [vmem:[%s2450 + $0x60] sm:$0xff]
    %v2464 = vld [vmem:[%s2450 + $0x68] sm:$0xff]
    %v2465 = vld [vmem:[%s2450 + $0x70] sm:$0xff]
    %v2466 = vld [vmem:[%s2450 + $0x78] sm:$0xff]
    %2467 = vmatprep.subr.mxu0 %v859
    %2468 = vmatpush1.msra.mxu0 %v858
    %2469 = vmatprep.subr.mxu0 %v863
    %2470 = vmatpush1.msra.mxu0 %v862
    %2471 = vmatprep.subr.mxu0 %v867
    %2472 = vmatpush1.msra.mxu0 %v866
    %2473 = vmatprep.subr.mxu0 %v871
    %2474 = vmatpush1.msra.mxu0 %v870
    %2475 = vmatprep.subr.mxu0 %v875
    %2476 = vmatpush1.msra.mxu0 %v874
    %2477 = vmatprep.subr.mxu0 %v879
    %2478 = vmatpush1.msra.mxu0 %v878
    %2479 = vmatprep.subr.mxu0 %v883
    %2480 = vmatpush1.msra.mxu0 %v882
    %2481 = vmatprep.subr.mxu0 %v887
    %2482 = vmatpush1.msra.mxu0 %v886
    %2483 = vmatprep.subr.mxu0 %v891
    %2484 = vmatpush1.msra.mxu0 %v890
    %2485 = vmatprep.subr.mxu0 %v895
    %2486 = vmatpush1.msra.mxu0 %v894
    %2487 = vmatprep.subr.mxu0 %v899
    %2488 = vmatpush1.msra.mxu0 %v898
    %2489 = vmatprep.subr.mxu0 %v903
    %2490 = vmatpush1.msra.mxu0 %v902
    %2491 = vmatprep.subr.mxu0 %v907
    %2492 = vmatpush1.msra.mxu0 %v906
    %2493 = vmatprep.subr.mxu0 %v911
    %2494 = vmatpush1.msra.mxu0 %v910
    %2495 = vmatprep.subr.mxu0 %v915
    %2496 = vmatpush1.msra.mxu0 %v914
    %2497 = vmatprep.subr.mxu0 %v919
    %2498 = vmatpush1.msra.mxu0 %v918
    %2499 = vmatprep.subr.mxu0 0.0
    %2500 = vmatpush1.msra.mxu0 0.0
    %2501 = vmatprep.subr.mxu0 0.0
    %2502 = vmatpush1.msra.mxu0 0.0
    %2503 = vmatprep.subr.mxu0 0.0
    %2504 = vmatpush1.msra.mxu0 0.0
    %2505 = vmatprep.subr.mxu0 0.0
    %2506 = vmatpush1.msra.mxu0 0.0
    %2507 = vmatprep.subr.mxu0 0.0
    %2508 = vmatpush1.msra.mxu0 0.0
    %2509 = vmatprep.subr.mxu0 0.0
    %2510 = vmatpush1.msra.mxu0 0.0
    %2511 = vmatprep.subr.mxu0 0.0
    %2512 = vmatpush1.msra.mxu0 0.0
    %2513 = vmatprep.subr.mxu0 0.0
    %2514 = vmatpush1.msra.mxu0 0.0
    %2515 = vmatprep.subr.mxu0 0.0
    %2516 = vmatpush1.msra.mxu0 0.0
    %2517 = vmatprep.subr.mxu0 0.0
    %2518 = vmatpush1.msra.mxu0 0.0
    %2519 = vmatprep.subr.mxu0 0.0
    %2520 = vmatpush1.msra.mxu0 0.0
    %2521 = vmatprep.subr.mxu0 0.0
    %2522 = vmatpush1.msra.mxu0 0.0
    %2523 = vmatprep.subr.mxu0 0.0
    %2524 = vmatpush1.msra.mxu0 0.0
    %2525 = vmatprep.subr.mxu0 0.0
    %2526 = vmatpush1.msra.mxu0 0.0
    %2527 = vmatprep.subr.mxu0 0.0
    %2528 = vmatpush1.msra.mxu0 0.0
    %2529 = vmatprep.subr.mxu0 0.0
    %2530 = vmatpush1.msra.mxu0 0.0
    %2531 = vmatprep.mubr.f32.mxu0 0.0
    %2532 = vmatmul.mubr.f32.gmra.mrb[0].mxu0 %v2444
    %v2533 = vpop.f32.mrb[0].mxu0
    %v2534 = vadd.f32 0.0, %v2533
    %v2535 = vpop.f32.mrb[0].mxu0
    %v2536 = vadd.f32 0.0, %v2535
    %2537 = vmatprep.mubr.f32.mxu0 0.0
    %2538 = vmatmul.mubr.f32.gmra.mrb[0].mxu0 %v2445
    %v2539 = vpop.f32.mrb[0].mxu0
    %v2540 = vadd.f32 0.0, %v2539
    %v2541 = vpop.f32.mrb[0].mxu0
    %v2542 = vadd.f32 0.0, %v2541
    %2543 = vmatprep.mubr.f32.mxu0 0.0
    %2544 = vmatmul.mubr.f32.gmra.mrb[0].mxu0 %v2446
    %v2545 = vpop.f32.mrb[0].mxu0
    %v2546 = vadd.f32 0.0, %v2545
    %v2547 = vpop.f32.mrb[0].mxu0
    %v2548 = vadd.f32 0.0, %v2547
    %2549 = vmatprep.mubr.f32.mxu0 0.0
    %2550 = vmatmul.mubr.f32.gmra.mrb[0].mxu0 %v2447
    %v2551 = vpop.f32.mrb[0].mxu0
    %v2552 = vadd.f32 0.0, %v2551
    %v2553 = vpop.f32.mrb[0].mxu0
    %v2554 = vadd.f32 0.0, %v2553
    %2555 = vdwg.mxu0
    %2556 = vmatprep.subr.mxu0 %v861
    %2557 = vmatpush1.msra.mxu0 %v860
    %2558 = vmatprep.subr.mxu0 %v865
    %2559 = vmatpush1.msra.mxu0 %v864
    %2560 = vmatprep.subr.mxu0 %v869
    %2561 = vmatpush1.msra.mxu0 %v868
    %2562 = vmatprep.subr.mxu0 %v873
    %2563 = vmatpush1.msra.mxu0 %v872
    %2564 = vmatprep.subr.mxu0 %v877
    %2565 = vmatpush1.msra.mxu0 %v876
    %2566 = vmatprep.subr.mxu0 %v881
    %2567 = vmatpush1.msra.mxu0 %v880
    %2568 = vmatprep.subr.mxu0 %v885
    %2569 = vmatpush1.msra.mxu0 %v884
    %2570 = vmatprep.subr.mxu0 %v889
    %2571 = vmatpush1.msra.mxu0 %v888
    %2572 = vmatprep.subr.mxu0 %v893
    %2573 = vmatpush1.msra.mxu0 %v892
    %2574 = vmatprep.subr.mxu0 %v897
    %2575 = vmatpush1.msra.mxu0 %v896
    %2576 = vmatprep.subr.mxu0 %v901
    %2577 = vmatpush1.msra.mxu0 %v900
    %2578 = vmatprep.subr.mxu0 %v905
    %2579 = vmatpush1.msra.mxu0 %v904
    %2580 = vmatprep.subr.mxu0 %v909
    %2581 = vmatpush1.msra.mxu0 %v908
    %2582 = vmatprep.subr.mxu0 %v913
    %2583 = vmatpush1.msra.mxu0 %v912
    %2584 = vmatprep.subr.mxu0 %v917
    %2585 = vmatpush1.msra.mxu0 %v916
    %2586 = vmatprep.subr.mxu0 %v921
    %2587 = vmatpush1.msra.mxu0 %v920
    %2588 = vmatprep.subr.mxu0 0.0
    %2589 = vmatpush1.msra.mxu0 0.0
    %2590 = vmatprep.subr.mxu0 0.0
    %2591 = vmatpush1.msra.mxu0 0.0
    %2592 = vmatprep.subr.mxu0 0.0
    %2593 = vmatpush1.msra.mxu0 0.0
    %2594 = vmatprep.subr.mxu0 0.0
    %2595 = vmatpush1.msra.mxu0 0.0
    %2596 = vmatprep.subr.mxu0 0.0
    %2597 = vmatpush1.msra.mxu0 0.0
    %2598 = vmatprep.subr.mxu0 0.0
    %2599 = vmatpush1.msra.mxu0 0.0
    %2600 = vmatprep.subr.mxu0 0.0
    %2601 = vmatpush1.msra.mxu0 0.0
    %2602 = vmatprep.subr.mxu0 0.0
    %2603 = vmatpush1.msra.mxu0 0.0
    %2604 = vmatprep.subr.mxu0 0.0
    %2605 = vmatpush1.msra.mxu0 0.0
    %2606 = vmatprep.subr.mxu0 0.0
    %2607 = vmatpush1.msra.mxu0 0.0
    %2608 = vmatprep.subr.mxu0 0.0
    %2609 = vmatpush1.msra.mxu0 0.0
    %2610 = vmatprep.subr.mxu0 0.0
    %2611 = vmatpush1.msra.mxu0 0.0
    %2612 = vmatprep.subr.mxu0 0.0
    %2613 = vmatpush1.msra.mxu0 0.0
    %2614 = vmatprep.subr.mxu0 0.0
    %2615 = vmatpush1.msra.mxu0 0.0
    %2616 = vmatprep.subr.mxu0 0.0
    %2617 = vmatpush1.msra.mxu0 0.0
    %2618 = vmatprep.subr.mxu0 0.0
    %2619 = vmatpush1.msra.mxu0 0.0
    %2620 = vmatprep.mubr.f32.mxu0 0.0
    %2621 = vmatmul.mubr.f32.gmra.mrb[0].mxu0 %v2444
    %v2622 = vpop.f32.mrb[0].mxu0
    %v2623 = vadd.f32 0.0, %v2622
    %v2624 = vpop.f32.mrb[0].mxu0
    %v2625 = vadd.f32 0.0, %v2624
    %2626 = vmatprep.mubr.f32.mxu0 0.0
    %2627 = vmatmul.mubr.f32.gmra.mrb[0].mxu0 %v2445
    %v2628 = vpop.f32.mrb[0].mxu0
    %v2629 = vadd.f32 0.0, %v2628
    %v2630 = vpop.f32.mrb[0].mxu0
    %v2631 = vadd.f32 0.0, %v2630
    %2632 = vmatprep.mubr.f32.mxu0 0.0
    %2633 = vmatmul.mubr.f32.gmra.mrb[0].mxu0 %v2446
    %v2634 = vpop.f32.mrb[0].mxu0
    %v2635 = vadd.f32 0.0, %v2634
    %v2636 = vpop.f32.mrb[0].mxu0
    %v2637 = vadd.f32 0.0, %v2636
    %2638 = vmatprep.mubr.f32.mxu0 0.0
    %2639 = vmatmul.mubr.f32.gmra.mrb[0].mxu0 %v2447
    %v2640 = vpop.f32.mrb[0].mxu0
    %v2641 = vadd.f32 0.0, %v2640
    %v2642 = vpop.f32.mrb[0].mxu0
    %v2643 = vadd.f32 0.0, %v2642
    %2644 = vdwg.mxu0
    %v2645 = vadd.f32 %v2451, %v2534
    %v2646 = vadd.f32 %v2452, %v2536
    %v2647 = vadd.f32 %v2453, %v2623
    %v2648 = vadd.f32 %v2454, %v2625
    %v2649 = vadd.f32 %v2455, %v2540
    %v2650 = vadd.f32 %v2456, %v2542
    %v2651 = vadd.f32 %v2457, %v2629
    %v2652 = vadd.f32 %v2458, %v2631
    %v2653 = vadd.f32 %v2459, %v2546
    %v2654 = vadd.f32 %v2460, %v2548
    %v2655 = vadd.f32 %v2461, %v2635
    %v2656 = vadd.f32 %v2462, %v2637
    %v2657 = vadd.f32 %v2463, %v2552
    %v2658 = vadd.f32 %v2464, %v2554
    %v2659 = vadd.f32 %v2465, %v2641
    %v2660 = vadd.f32 %v2466, %v2643
    %v2661 = vxor.u32 %v2645, 2147483648
    %v2662 = vxor.u32 %v2646, 2147483648
    %v2663 = vxor.u32 %v2647, 2147483648
    %v2664 = vxor.u32 %v2649, 2147483648
    %v2665 = vxor.u32 %v2650, 2147483648
    %v2666 = vxor.u32 %v2651, 2147483648
    %v2667 = vxor.u32 %v2653, 2147483648
    %v2668 = vxor.u32 %v2654, 2147483648
    %v2669 = vxor.u32 %v2655, 2147483648
    %v2670 = vxor.u32 %v2657, 2147483648
    %v2671 = vxor.u32 %v2658, 2147483648
    %v2672 = vxor.u32 %v2659, 2147483648
    %v2673 = vmul.f32 %v2661, 1.442695
    %v2674 = vpow.pop %v2673
    %v2675 = vmul.f32 %v2662, 1.442695
    %v2676 = vpow.pop %v2675
    %v2677 = vmul.f32 %v2663, 1.442695
    %v2678 = vpow.pop %v2677
    %v2679 = vmul.f32 %v2664, 1.442695
    %v2680 = vpow.pop %v2679
    %v2681 = vmul.f32 %v2665, 1.442695
    %v2682 = vpow.pop %v2681
    %v2683 = vmul.f32 %v2666, 1.442695
    %v2684 = vpow.pop %v2683
    %v2685 = vmul.f32 %v2667, 1.442695
    %v2686 = vpow.pop %v2685
    %v2687 = vmul.f32 %v2668, 1.442695
    %v2688 = vpow.pop %v2687
    %v2689 = vmul.f32 %v2669, 1.442695
    %v2690 = vpow.pop %v2689
    %v2691 = vmul.f32 %v2670, 1.442695
    %v2692 = vpow.pop %v2691
    %v2693 = vmul.f32 %v2671, 1.442695
    %v2694 = vpow.pop %v2693
    %v2695 = vmul.f32 %v2672, 1.442695
    %v2696 = vpow.pop %v2695
    %v2697 = vadd.f32 %v2674, 1.0
    %v2698 = vadd.f32 %v2676, 1.0
    %v2699 = vadd.f32 %v2678, 1.0
    %v2700 = vadd.f32 %v2680, 1.0
    %v2701 = vadd.f32 %v2682, 1.0
    %v2702 = vadd.f32 %v2684, 1.0
    %v2703 = vadd.f32 %v2686, 1.0
    %v2704 = vadd.f32 %v2688, 1.0
    %v2705 = vadd.f32 %v2690, 1.0
    %v2706 = vadd.f32 %v2692, 1.0
    %v2707 = vadd.f32 %v2694, 1.0
    %v2708 = vadd.f32 %v2696, 1.0
    %v2709 = vrcp.pop %v2697
    %v2710 = vmul.f32 1.0, %v2709
    %v2711 = vrcp.pop %v2698
    %v2712 = vmul.f32 1.0, %v2711
    %v2713 = vrcp.pop %v2699
    %v2714 = vmul.f32 1.0, %v2713
    %v2715 = vrcp.pop %v2700
    %v2716 = vmul.f32 1.0, %v2715
    %v2717 = vrcp.pop %v2701
    %v2718 = vmul.f32 1.0, %v2717
    %v2719 = vrcp.pop %v2702
    %v2720 = vmul.f32 1.0, %v2719
    %v2721 = vrcp.pop %v2703
    %v2722 = vmul.f32 1.0, %v2721
    %v2723 = vrcp.pop %v2704
    %v2724 = vmul.f32 1.0, %v2723
    %v2725 = vrcp.pop %v2705
    %v2726 = vmul.f32 1.0, %v2725
    %v2727 = vrcp.pop %v2706
    %v2728 = vmul.f32 1.0, %v2727
    %v2729 = vrcp.pop %v2707
    %v2730 = vmul.f32 1.0, %v2729
    %v2731 = vrcp.pop %v2708
    %v2732 = vmul.f32 1.0, %v2731
    %v2733 = vtanh.pop %v2648
    %v2734 = vtanh.pop %v2652
    %v2735 = vtanh.pop %v2656
    %v2736 = vtanh.pop %v2660
    %v2737 = vmul.f32 %v2712, %v2436
    %v2738 = vmul.f32 %v2718, %v2437
    %v2739 = vmul.f32 %v2724, %v2438
    %v2740 = vmul.f32 %v2730, %v2439
    %v2741 = vmul.f32 %v2710, %v2733
    %v2742 = vmul.f32 %v2716, %v2734
    %v2743 = vmul.f32 %v2722, %v2735
    %v2744 = vmul.f32 %v2728, %v2736
    %v2745 = vadd.f32 %v2737, %v2741
    %v2746 = vadd.f32 %v2738, %v2742
    %v2747 = vadd.f32 %v2739, %v2743
    %v2748 = vadd.f32 %v2740, %v2744
    %v2749 = vtanh.pop %v2745
    %v2750 = vtanh.pop %v2746
    %v2751 = vtanh.pop %v2747
    %v2752 = vtanh.pop %v2748
    %v2753 = vmul.f32 %v2714, %v2749
    %v2754 = vmul.f32 %v2720, %v2750
    %v2755 = vmul.f32 %v2726, %v2751
    %v2756 = vmul.f32 %v2732, %v2752
    %s2757 = smul.u32 24, 4
    %s2758 = smul.addr %s2757, 8
    %s2759 = scalar_lea.vmem [#allocation2], %s2758
    %v2760 = vld [vmem:[%s2759] sm:$0xff]
    %v2761 = vld [vmem:[%s2759 + $0x8] sm:$0xff]
    %v2762 = vld [vmem:[%s2759 + $0x10] sm:$0xff]
    %v2763 = vld [vmem:[%s2759 + $0x18] sm:$0xff]
    %v2764 = vld [vmem:[%s2759 + $0x20] sm:$0xff]
    %v2765 = vld [vmem:[%s2759 + $0x28] sm:$0xff]
    %v2766 = vld [vmem:[%s2759 + $0x30] sm:$0xff]
    %v2767 = vld [vmem:[%s2759 + $0x38] sm:$0xff]
    %v2768 = vld [vmem:[%s2759 + $0x40] sm:$0xff]
    %v2769 = vld [vmem:[%s2759 + $0x48] sm:$0xff]
    %v2770 = vld [vmem:[%s2759 + $0x50] sm:$0xff]
    %v2771 = vld [vmem:[%s2759 + $0x58] sm:$0xff]
    %v2772 = vld [vmem:[%s2759 + $0x60] sm:$0xff]
    %v2773 = vld [vmem:[%s2759 + $0x68] sm:$0xff]
    %v2774 = vld [vmem:[%s2759 + $0x70] sm:$0xff]
    %v2775 = vld [vmem:[%s2759 + $0x78] sm:$0xff]
    %2776 = vmatprep.subr.mxu0 %v859
    %2777 = vmatpush1.msra.mxu0 %v858
    %2778 = vmatprep.subr.mxu0 %v863
    %2779 = vmatpush1.msra.mxu0 %v862
    %2780 = vmatprep.subr.mxu0 %v867
    %2781 = vmatpush1.msra.mxu0 %v866
    %2782 = vmatprep.subr.mxu0 %v871
    %2783 = vmatpush1.msra.mxu0 %v870
    %2784 = vmatprep.subr.mxu0 %v875
    %2785 = vmatpush1.msra.mxu0 %v874
    %2786 = vmatprep.subr.mxu0 %v879
    %2787 = vmatpush1.msra.mxu0 %v878
    %2788 = vmatprep.subr.mxu0 %v883
    %2789 = vmatpush1.msra.mxu0 %v882
    %2790 = vmatprep.subr.mxu0 %v887
    %2791 = vmatpush1.msra.mxu0 %v886
    %2792 = vmatprep.subr.mxu0 %v891
    %2793 = vmatpush1.msra.mxu0 %v890
    %2794 = vmatprep.subr.mxu0 %v895
    %2795 = vmatpush1.msra.mxu0 %v894
    %2796 = vmatprep.subr.mxu0 %v899
    %2797 = vmatpush1.msra.mxu0 %v898
    %2798 = vmatprep.subr.mxu0 %v903
    %2799 = vmatpush1.msra.mxu0 %v902
    %2800 = vmatprep.subr.mxu0 %v907
    %2801 = vmatpush1.msra.mxu0 %v906
    %2802 = vmatprep.subr.mxu0 %v911
    %2803 = vmatpush1.msra.mxu0 %v910
    %2804 = vmatprep.subr.mxu0 %v915
    %2805 = vmatpush1.msra.mxu0 %v914
    %2806 = vmatprep.subr.mxu0 %v919
    %2807 = vmatpush1.msra.mxu0 %v918
    %2808 = vmatprep.subr.mxu0 0.0
    %2809 = vmatpush1.msra.mxu0 0.0
    %2810 = vmatprep.subr.mxu0 0.0
    %2811 = vmatpush1.msra.mxu0 0.0
    %2812 = vmatprep.subr.mxu0 0.0
    %2813 = vmatpush1.msra.mxu0 0.0
    %2814 = vmatprep.subr.mxu0 0.0
    %2815 = vmatpush1.msra.mxu0 0.0
    %2816 = vmatprep.subr.mxu0 0.0
    %2817 = vmatpush1.msra.mxu0 0.0
    %2818 = vmatprep.subr.mxu0 0.0
    %2819 = vmatpush1.msra.mxu0 0.0
    %2820 = vmatprep.subr.mxu0 0.0
    %2821 = vmatpush1.msra.mxu0 0.0
    %2822 = vmatprep.subr.mxu0 0.0
    %2823 = vmatpush1.msra.mxu0 0.0
    %2824 = vmatprep.subr.mxu0 0.0
    %2825 = vmatpush1.msra.mxu0 0.0
    %2826 = vmatprep.subr.mxu0 0.0
    %2827 = vmatpush1.msra.mxu0 0.0
    %2828 = vmatprep.subr.mxu0 0.0
    %2829 = vmatpush1.msra.mxu0 0.0
    %2830 = vmatprep.subr.mxu0 0.0
    %2831 = vmatpush1.msra.mxu0 0.0
    %2832 = vmatprep.subr.mxu0 0.0
    %2833 = vmatpush1.msra.mxu0 0.0
    %2834 = vmatprep.subr.mxu0 0.0
    %2835 = vmatpush1.msra.mxu0 0.0
    %2836 = vmatprep.subr.mxu0 0.0
    %2837 = vmatpush1.msra.mxu0 0.0
    %2838 = vmatprep.subr.mxu0 0.0
    %2839 = vmatpush1.msra.mxu0 0.0
    %2840 = vmatprep.mubr.f32.mxu0 0.0
    %2841 = vmatmul.mubr.f32.gmra.mrb[0].mxu0 %v2753
    %v2842 = vpop.f32.mrb[0].mxu0
    %v2843 = vadd.f32 0.0, %v2842
    %v2844 = vpop.f32.mrb[0].mxu0
    %v2845 = vadd.f32 0.0, %v2844
    %2846 = vmatprep.mubr.f32.mxu0 0.0
    %2847 = vmatmul.mubr.f32.gmra.mrb[0].mxu0 %v2754
    %v2848 = vpop.f32.mrb[0].mxu0
    %v2849 = vadd.f32 0.0, %v2848
    %v2850 = vpop.f32.mrb[0].mxu0
    %v2851 = vadd.f32 0.0, %v2850
    %2852 = vmatprep.mubr.f32.mxu0 0.0
    %2853 = vmatmul.mubr.f32.gmra.mrb[0].mxu0 %v2755
    %v2854 = vpop.f32.mrb[0].mxu0
    %v2855 = vadd.f32 0.0, %v2854
    %v2856 = vpop.f32.mrb[0].mxu0
    %v2857 = vadd.f32 0.0, %v2856
    %2858 = vmatprep.mubr.f32.mxu0 0.0
    %2859 = vmatmul.mubr.f32.gmra.mrb[0].mxu0 %v2756
    %v2860 = vpop.f32.mrb[0].mxu0
    %v2861 = vadd.f32 0.0, %v2860
    %v2862 = vpop.f32.mrb[0].mxu0
    %v2863 = vadd.f32 0.0, %v2862
    %2864 = vdwg.mxu0
    %2865 = vmatprep.subr.mxu0 %v861
    %2866 = vmatpush1.msra.mxu0 %v860
    %2867 = vmatprep.subr.mxu0 %v865
    %2868 = vmatpush1.msra.mxu0 %v864
    %2869 = vmatprep.subr.mxu0 %v869
    %2870 = vmatpush1.msra.mxu0 %v868
    %2871 = vmatprep.subr.mxu0 %v873
    %2872 = vmatpush1.msra.mxu0 %v872
    %2873 = vmatprep.subr.mxu0 %v877
    %2874 = vmatpush1.msra.mxu0 %v876
    %2875 = vmatprep.subr.mxu0 %v881
    %2876 = vmatpush1.msra.mxu0 %v880
    %2877 = vmatprep.subr.mxu0 %v885
    %2878 = vmatpush1.msra.mxu0 %v884
    %2879 = vmatprep.subr.mxu0 %v889
    %2880 = vmatpush1.msra.mxu0 %v888
    %2881 = vmatprep.subr.mxu0 %v893
    %2882 = vmatpush1.msra.mxu0 %v892
    %2883 = vmatprep.subr.mxu0 %v897
    %2884 = vmatpush1.msra.mxu0 %v896
    %2885 = vmatprep.subr.mxu0 %v901
    %2886 = vmatpush1.msra.mxu0 %v900
    %2887 = vmatprep.subr.mxu0 %v905
    %2888 = vmatpush1.msra.mxu0 %v904
    %2889 = vmatprep.subr.mxu0 %v909
    %2890 = vmatpush1.msra.mxu0 %v908
    %2891 = vmatprep.subr.mxu0 %v913
    %2892 = vmatpush1.msra.mxu0 %v912
    %2893 = vmatprep.subr.mxu0 %v917
    %2894 = vmatpush1.msra.mxu0 %v916
    %2895 = vmatprep.subr.mxu0 %v921
    %2896 = vmatpush1.msra.mxu0 %v920
    %2897 = vmatprep.subr.mxu0 0.0
    %2898 = vmatpush1.msra.mxu0 0.0
    %2899 = vmatprep.subr.mxu0 0.0
    %2900 = vmatpush1.msra.mxu0 0.0
    %2901 = vmatprep.subr.mxu0 0.0
    %2902 = vmatpush1.msra.mxu0 0.0
    %2903 = vmatprep.subr.mxu0 0.0
    %2904 = vmatpush1.msra.mxu0 0.0
    %2905 = vmatprep.subr.mxu0 0.0
    %2906 = vmatpush1.msra.mxu0 0.0
    %2907 = vmatprep.subr.mxu0 0.0
    %2908 = vmatpush1.msra.mxu0 0.0
    %2909 = vmatprep.subr.mxu0 0.0
    %2910 = vmatpush1.msra.mxu0 0.0
    %2911 = vmatprep.subr.mxu0 0.0
    %2912 = vmatpush1.msra.mxu0 0.0
    %2913 = vmatprep.subr.mxu0 0.0
    %2914 = vmatpush1.msra.mxu0 0.0
    %2915 = vmatprep.subr.mxu0 0.0
    %2916 = vmatpush1.msra.mxu0 0.0
    %2917 = vmatprep.subr.mxu0 0.0
    %2918 = vmatpush1.msra.mxu0 0.0
    %2919 = vmatprep.subr.mxu0 0.0
    %2920 = vmatpush1.msra.mxu0 0.0
    %2921 = vmatprep.subr.mxu0 0.0
    %2922 = vmatpush1.msra.mxu0 0.0
    %2923 = vmatprep.subr.mxu0 0.0
    %2924 = vmatpush1.msra.mxu0 0.0
    %2925 = vmatprep.subr.mxu0 0.0
    %2926 = vmatpush1.msra.mxu0 0.0
    %2927 = vmatprep.subr.mxu0 0.0
    %2928 = vmatpush1.msra.mxu0 0.0
    %2929 = vmatprep.mubr.f32.mxu0 0.0
    %2930 = vmatmul.mubr.f32.gmra.mrb[0].mxu0 %v2753
    %v2931 = vpop.f32.mrb[0].mxu0
    %v2932 = vadd.f32 0.0, %v2931
    %v2933 = vpop.f32.mrb[0].mxu0
    %v2934 = vadd.f32 0.0, %v2933
    %2935 = vmatprep.mubr.f32.mxu0 0.0
    %2936 = vmatmul.mubr.f32.gmra.mrb[0].mxu0 %v2754
    %v2937 = vpop.f32.mrb[0].mxu0
    %v2938 = vadd.f32 0.0, %v2937
    %v2939 = vpop.f32.mrb[0].mxu0
    %v2940 = vadd.f32 0.0, %v2939
    %2941 = vmatprep.mubr.f32.mxu0 0.0
    %2942 = vmatmul.mubr.f32.gmra.mrb[0].mxu0 %v2755
    %v2943 = vpop.f32.mrb[0].mxu0
    %v2944 = vadd.f32 0.0, %v2943
    %v2945 = vpop.f32.mrb[0].mxu0
    %v2946 = vadd.f32 0.0, %v2945
    %2947 = vmatprep.mubr.f32.mxu0 0.0
    %2948 = vmatmul.mubr.f32.gmra.mrb[0].mxu0 %v2756
    %v2949 = vpop.f32.mrb[0].mxu0
    %v2950 = vadd.f32 0.0, %v2949
    %v2951 = vpop.f32.mrb[0].mxu0
    %v2952 = vadd.f32 0.0, %v2951
    %2953 = vdwg.mxu0
    %v2954 = vadd.f32 %v2760, %v2843
    %v2955 = vadd.f32 %v2761, %v2845
    %v2956 = vadd.f32 %v2762, %v2932
    %v2957 = vadd.f32 %v2763, %v2934
    %v2958 = vadd.f32 %v2764, %v2849
    %v2959 = vadd.f32 %v2765, %v2851
    %v2960 = vadd.f32 %v2766, %v2938
    %v2961 = vadd.f32 %v2767, %v2940
    %v2962 = vadd.f32 %v2768, %v2855
    %v2963 = vadd.f32 %v2769, %v2857
    %v2964 = vadd.f32 %v2770, %v2944
    %v2965 = vadd.f32 %v2771, %v2946
    %v2966 = vadd.f32 %v2772, %v2861
    %v2967 = vadd.f32 %v2773, %v2863
    %v2968 = vadd.f32 %v2774, %v2950
    %v2969 = vadd.f32 %v2775, %v2952
    %v2970 = vxor.u32 %v2954, 2147483648
    %v2971 = vxor.u32 %v2955, 2147483648
    %v2972 = vxor.u32 %v2956, 2147483648
    %v2973 = vxor.u32 %v2958, 2147483648
    %v2974 = vxor.u32 %v2959, 2147483648
    %v2975 = vxor.u32 %v2960, 2147483648
    %v2976 = vxor.u32 %v2962, 2147483648
    %v2977 = vxor.u32 %v2963, 2147483648
    %v2978 = vxor.u32 %v2964, 2147483648
    %v2979 = vxor.u32 %v2966, 2147483648
    %v2980 = vxor.u32 %v2967, 2147483648
    %v2981 = vxor.u32 %v2968, 2147483648
    %v2982 = vmul.f32 %v2970, 1.442695
    %v2983 = vpow.pop %v2982
    %v2984 = vmul.f32 %v2971, 1.442695
    %v2985 = vpow.pop %v2984
    %v2986 = vmul.f32 %v2972, 1.442695
    %v2987 = vpow.pop %v2986
    %v2988 = vmul.f32 %v2973, 1.442695
    %v2989 = vpow.pop %v2988
    %v2990 = vmul.f32 %v2974, 1.442695
    %v2991 = vpow.pop %v2990
    %v2992 = vmul.f32 %v2975, 1.442695
    %v2993 = vpow.pop %v2992
    %v2994 = vmul.f32 %v2976, 1.442695
    %v2995 = vpow.pop %v2994
    %v2996 = vmul.f32 %v2977, 1.442695
    %v2997 = vpow.pop %v2996
    %v2998 = vmul.f32 %v2978, 1.442695
    %v2999 = vpow.pop %v2998
    %v3000 = vmul.f32 %v2979, 1.442695
    %v3001 = vpow.pop %v3000
    %v3002 = vmul.f32 %v2980, 1.442695
    %v3003 = vpow.pop %v3002
    %v3004 = vmul.f32 %v2981, 1.442695
    %v3005 = vpow.pop %v3004
    %v3006 = vadd.f32 %v2983, 1.0
    %v3007 = vadd.f32 %v2985, 1.0
    %v3008 = vadd.f32 %v2987, 1.0
    %v3009 = vadd.f32 %v2989, 1.0
    %v3010 = vadd.f32 %v2991, 1.0
    %v3011 = vadd.f32 %v2993, 1.0
    %v3012 = vadd.f32 %v2995, 1.0
    %v3013 = vadd.f32 %v2997, 1.0
    %v3014 = vadd.f32 %v2999, 1.0
    %v3015 = vadd.f32 %v3001, 1.0
    %v3016 = vadd.f32 %v3003, 1.0
    %v3017 = vadd.f32 %v3005, 1.0
    %v3018 = vrcp.pop %v3006
    %v3019 = vmul.f32 1.0, %v3018
    %v3020 = vrcp.pop %v3007
    %v3021 = vmul.f32 1.0, %v3020
    %v3022 = vrcp.pop %v3008
    %v3023 = vmul.f32 1.0, %v3022
    %v3024 = vrcp.pop %v3009
    %v3025 = vmul.f32 1.0, %v3024
    %v3026 = vrcp.pop %v3010
    %v3027 = vmul.f32 1.0, %v3026
    %v3028 = vrcp.pop %v3011
    %v3029 = vmul.f32 1.0, %v3028
    %v3030 = vrcp.pop %v3012
    %v3031 = vmul.f32 1.0, %v3030
    %v3032 = vrcp.pop %v3013
    %v3033 = vmul.f32 1.0, %v3032
    %v3034 = vrcp.pop %v3014
    %v3035 = vmul.f32 1.0, %v3034
    %v3036 = vrcp.pop %v3015
    %v3037 = vmul.f32 1.0, %v3036
    %v3038 = vrcp.pop %v3016
    %v3039 = vmul.f32 1.0, %v3038
    %v3040 = vrcp.pop %v3017
    %v3041 = vmul.f32 1.0, %v3040
    %v3042 = vtanh.pop %v2957
    %v3043 = vtanh.pop %v2961
    %v3044 = vtanh.pop %v2965
    %v3045 = vtanh.pop %v2969
    %v3046 = vmul.f32 %v3021, %v2745
    %v3047 = vmul.f32 %v3027, %v2746
    %v3048 = vmul.f32 %v3033, %v2747
    %v3049 = vmul.f32 %v3039, %v2748
    %v3050 = vmul.f32 %v3019, %v3042
    %v3051 = vmul.f32 %v3025, %v3043
    %v3052 = vmul.f32 %v3031, %v3044
    %v3053 = vmul.f32 %v3037, %v3045
    %v3054 = vadd.f32 %v3046, %v3050
    %v3055 = vadd.f32 %v3047, %v3051
    %v3056 = vadd.f32 %v3048, %v3052
    %v3057 = vadd.f32 %v3049, %v3053
    %v3058 = vtanh.pop %v3054
    %v3059 = vtanh.pop %v3055
    %v3060 = vtanh.pop %v3056
    %v3061 = vtanh.pop %v3057
    %v3062 = vmul.f32 %v3023, %v3058
    %v3063 = vmul.f32 %v3029, %v3059
    %v3064 = vmul.f32 %v3035, %v3060
    %v3065 = vmul.f32 %v3041, %v3061
    %s3066 = smul.u32 28, 4
    %s3067 = smul.addr %s3066, 8
    %s3068 = scalar_lea.vmem [#allocation2], %s3067
    %v3069 = vld [vmem:[%s3068] sm:$0xff]
    %v3070 = vld [vmem:[%s3068 + $0x8] sm:$0xff]
    %v3071 = vld [vmem:[%s3068 + $0x10] sm:$0xff]
    %v3072 = vld [vmem:[%s3068 + $0x18] sm:$0xff]
    %v3073 = vld [vmem:[%s3068 + $0x20] sm:$0xff]
    %v3074 = vld [vmem:[%s3068 + $0x28] sm:$0xff]
    %v3075 = vld [vmem:[%s3068 + $0x30] sm:$0xff]
    %v3076 = vld [vmem:[%s3068 + $0x38] sm:$0xff]
    %v3077 = vld [vmem:[%s3068 + $0x40] sm:$0xff]
    %v3078 = vld [vmem:[%s3068 + $0x48] sm:$0xff]
    %v3079 = vld [vmem:[%s3068 + $0x50] sm:$0xff]
    %v3080 = vld [vmem:[%s3068 + $0x58] sm:$0xff]
    %v3081 = vld [vmem:[%s3068 + $0x60] sm:$0xff]
    %v3082 = vld [vmem:[%s3068 + $0x68] sm:$0xff]
    %v3083 = vld [vmem:[%s3068 + $0x70] sm:$0xff]
    %v3084 = vld [vmem:[%s3068 + $0x78] sm:$0xff]
    %3085 = vmatprep.subr.mxu0 %v859
    %3086 = vmatpush1.msra.mxu0 %v858
    %3087 = vmatprep.subr.mxu0 %v863
    %3088 = vmatpush1.msra.mxu0 %v862
    %3089 = vmatprep.subr.mxu0 %v867
    %3090 = vmatpush1.msra.mxu0 %v866
    %3091 = vmatprep.subr.mxu0 %v871
    %3092 = vmatpush1.msra.mxu0 %v870
    %3093 = vmatprep.subr.mxu0 %v875
    %3094 = vmatpush1.msra.mxu0 %v874
    %3095 = vmatprep.subr.mxu0 %v879
    %3096 = vmatpush1.msra.mxu0 %v878
    %3097 = vmatprep.subr.mxu0 %v883
    %3098 = vmatpush1.msra.mxu0 %v882
    %3099 = vmatprep.subr.mxu0 %v887
    %3100 = vmatpush1.msra.mxu0 %v886
    %3101 = vmatprep.subr.mxu0 %v891
    %3102 = vmatpush1.msra.mxu0 %v890
    %3103 = vmatprep.subr.mxu0 %v895
    %3104 = vmatpush1.msra.mxu0 %v894
    %3105 = vmatprep.subr.mxu0 %v899
    %3106 = vmatpush1.msra.mxu0 %v898
    %3107 = vmatprep.subr.mxu0 %v903
    %3108 = vmatpush1.msra.mxu0 %v902
    %3109 = vmatprep.subr.mxu0 %v907
    %3110 = vmatpush1.msra.mxu0 %v906
    %3111 = vmatprep.subr.mxu0 %v911
    %3112 = vmatpush1.msra.mxu0 %v910
    %3113 = vmatprep.subr.mxu0 %v915
    %3114 = vmatpush1.msra.mxu0 %v914
    %3115 = vmatprep.subr.mxu0 %v919
    %3116 = vmatpush1.msra.mxu0 %v918
    %3117 = vmatprep.subr.mxu0 0.0
    %3118 = vmatpush1.msra.mxu0 0.0
    %3119 = vmatprep.subr.mxu0 0.0
    %3120 = vmatpush1.msra.mxu0 0.0
    %3121 = vmatprep.subr.mxu0 0.0
    %3122 = vmatpush1.msra.mxu0 0.0
    %3123 = vmatprep.subr.mxu0 0.0
    %3124 = vmatpush1.msra.mxu0 0.0
    %3125 = vmatprep.subr.mxu0 0.0
    %3126 = vmatpush1.msra.mxu0 0.0
    %3127 = vmatprep.subr.mxu0 0.0
    %3128 = vmatpush1.msra.mxu0 0.0
    %3129 = vmatprep.subr.mxu0 0.0
    %3130 = vmatpush1.msra.mxu0 0.0
    %3131 = vmatprep.subr.mxu0 0.0
    %3132 = vmatpush1.msra.mxu0 0.0
    %3133 = vmatprep.subr.mxu0 0.0
    %3134 = vmatpush1.msra.mxu0 0.0
    %3135 = vmatprep.subr.mxu0 0.0
    %3136 = vmatpush1.msra.mxu0 0.0
    %3137 = vmatprep.subr.mxu0 0.0
    %3138 = vmatpush1.msra.mxu0 0.0
    %3139 = vmatprep.subr.mxu0 0.0
    %3140 = vmatpush1.msra.mxu0 0.0
    %3141 = vmatprep.subr.mxu0 0.0
    %3142 = vmatpush1.msra.mxu0 0.0
    %3143 = vmatprep.subr.mxu0 0.0
    %3144 = vmatpush1.msra.mxu0 0.0
    %3145 = vmatprep.subr.mxu0 0.0
    %3146 = vmatpush1.msra.mxu0 0.0
    %3147 = vmatprep.subr.mxu0 0.0
    %3148 = vmatpush1.msra.mxu0 0.0
    %3149 = vmatprep.mubr.f32.mxu0 0.0
    %3150 = vmatmul.mubr.f32.gmra.mrb[0].mxu0 %v3062
    %v3151 = vpop.f32.mrb[0].mxu0
    %v3152 = vadd.f32 0.0, %v3151
    %v3153 = vpop.f32.mrb[0].mxu0
    %v3154 = vadd.f32 0.0, %v3153
    %3155 = vmatprep.mubr.f32.mxu0 0.0
    %3156 = vmatmul.mubr.f32.gmra.mrb[0].mxu0 %v3063
    %v3157 = vpop.f32.mrb[0].mxu0
    %v3158 = vadd.f32 0.0, %v3157
    %v3159 = vpop.f32.mrb[0].mxu0
    %v3160 = vadd.f32 0.0, %v3159
    %3161 = vmatprep.mubr.f32.mxu0 0.0
    %3162 = vmatmul.mubr.f32.gmra.mrb[0].mxu0 %v3064
    %v3163 = vpop.f32.mrb[0].mxu0
    %v3164 = vadd.f32 0.0, %v3163
    %v3165 = vpop.f32.mrb[0].mxu0
    %v3166 = vadd.f32 0.0, %v3165
    %3167 = vmatprep.mubr.f32.mxu0 0.0
    %3168 = vmatmul.mubr.f32.gmra.mrb[0].mxu0 %v3065
    %v3169 = vpop.f32.mrb[0].mxu0
    %v3170 = vadd.f32 0.0, %v3169
    %v3171 = vpop.f32.mrb[0].mxu0
    %v3172 = vadd.f32 0.0, %v3171
    %3173 = vdwg.mxu0
    %3174 = vmatprep.subr.mxu0 %v861
    %3175 = vmatpush1.msra.mxu0 %v860
    %3176 = vmatprep.subr.mxu0 %v865
    %3177 = vmatpush1.msra.mxu0 %v864
    %3178 = vmatprep.subr.mxu0 %v869
    %3179 = vmatpush1.msra.mxu0 %v868
    %3180 = vmatprep.subr.mxu0 %v873
    %3181 = vmatpush1.msra.mxu0 %v872
    %3182 = vmatprep.subr.mxu0 %v877
    %3183 = vmatpush1.msra.mxu0 %v876
    %3184 = vmatprep.subr.mxu0 %v881
    %3185 = vmatpush1.msra.mxu0 %v880
    %3186 = vmatprep.subr.mxu0 %v885
    %3187 = vmatpush1.msra.mxu0 %v884
    %3188 = vmatprep.subr.mxu0 %v889
    %3189 = vmatpush1.msra.mxu0 %v888
    %3190 = vmatprep.subr.mxu0 %v893
    %3191 = vmatpush1.msra.mxu0 %v892
    %3192 = vmatprep.subr.mxu0 %v897
    %3193 = vmatpush1.msra.mxu0 %v896
    %3194 = vmatprep.subr.mxu0 %v901
    %3195 = vmatpush1.msra.mxu0 %v900
    %3196 = vmatprep.subr.mxu0 %v905
    %3197 = vmatpush1.msra.mxu0 %v904
    %3198 = vmatprep.subr.mxu0 %v909
    %3199 = vmatpush1.msra.mxu0 %v908
    %3200 = vmatprep.subr.mxu0 %v913
    %3201 = vmatpush1.msra.mxu0 %v912
    %3202 = vmatprep.subr.mxu0 %v917
    %3203 = vmatpush1.msra.mxu0 %v916
    %3204 = vmatprep.subr.mxu0 %v921
    %3205 = vmatpush1.msra.mxu0 %v920
    %3206 = vmatprep.subr.mxu0 0.0
    %3207 = vmatpush1.msra.mxu0 0.0
    %3208 = vmatprep.subr.mxu0 0.0
    %3209 = vmatpush1.msra.mxu0 0.0
    %3210 = vmatprep.subr.mxu0 0.0
    %3211 = vmatpush1.msra.mxu0 0.0
    %3212 = vmatprep.subr.mxu0 0.0
    %3213 = vmatpush1.msra.mxu0 0.0
    %3214 = vmatprep.subr.mxu0 0.0
    %3215 = vmatpush1.msra.mxu0 0.0
    %3216 = vmatprep.subr.mxu0 0.0
    %3217 = vmatpush1.msra.mxu0 0.0
    %3218 = vmatprep.subr.mxu0 0.0
    %3219 = vmatpush1.msra.mxu0 0.0
    %3220 = vmatprep.subr.mxu0 0.0
    %3221 = vmatpush1.msra.mxu0 0.0
    %3222 = vmatprep.subr.mxu0 0.0
    %3223 = vmatpush1.msra.mxu0 0.0
    %3224 = vmatprep.subr.mxu0 0.0
    %3225 = vmatpush1.msra.mxu0 0.0
    %3226 = vmatprep.subr.mxu0 0.0
    %3227 = vmatpush1.msra.mxu0 0.0
    %3228 = vmatprep.subr.mxu0 0.0
    %3229 = vmatpush1.msra.mxu0 0.0
    %3230 = vmatprep.subr.mxu0 0.0
    %3231 = vmatpush1.msra.mxu0 0.0
    %3232 = vmatprep.subr.mxu0 0.0
    %3233 = vmatpush1.msra.mxu0 0.0
    %3234 = vmatprep.subr.mxu0 0.0
    %3235 = vmatpush1.msra.mxu0 0.0
    %3236 = vmatprep.subr.mxu0 0.0
    %3237 = vmatpush1.msra.mxu0 0.0
    %3238 = vmatprep.mubr.f32.mxu0 0.0
    %3239 = vmatmul.mubr.f32.gmra.mrb[0].mxu0 %v3062
    %v3240 = vpop.f32.mrb[0].mxu0
    %v3241 = vadd.f32 0.0, %v3240
    %v3242 = vpop.f32.mrb[0].mxu0
    %v3243 = vadd.f32 0.0, %v3242
    %3244 = vmatprep.mubr.f32.mxu0 0.0
    %3245 = vmatmul.mubr.f32.gmra.mrb[0].mxu0 %v3063
    %v3246 = vpop.f32.mrb[0].mxu0
    %v3247 = vadd.f32 0.0, %v3246
    %v3248 = vpop.f32.mrb[0].mxu0
    %v3249 = vadd.f32 0.0, %v3248
    %3250 = vmatprep.mubr.f32.mxu0 0.0
    %3251 = vmatmul.mubr.f32.gmra.mrb[0].mxu0 %v3064
    %v3252 = vpop.f32.mrb[0].mxu0
    %v3253 = vadd.f32 0.0, %v3252
    %v3254 = vpop.f32.mrb[0].mxu0
    %v3255 = vadd.f32 0.0, %v3254
    %3256 = vmatprep.mubr.f32.mxu0 0.0
    %3257 = vmatmul.mubr.f32.gmra.mrb[0].mxu0 %v3065
    %v3258 = vpop.f32.mrb[0].mxu0
    %v3259 = vadd.f32 0.0, %v3258
    %v3260 = vpop.f32.mrb[0].mxu0
    %v3261 = vadd.f32 0.0, %v3260
    %3262 = vdwg.mxu0
    %v3263 = vadd.f32 %v3069, %v3152
    %v3264 = vadd.f32 %v3070, %v3154
    %v3265 = vadd.f32 %v3071, %v3241
    %v3266 = vadd.f32 %v3072, %v3243
    %v3267 = vadd.f32 %v3073, %v3158
    %v3268 = vadd.f32 %v3074, %v3160
    %v3269 = vadd.f32 %v3075, %v3247
    %v3270 = vadd.f32 %v3076, %v3249
    %v3271 = vadd.f32 %v3077, %v3164
    %v3272 = vadd.f32 %v3078, %v3166
    %v3273 = vadd.f32 %v3079, %v3253
    %v3274 = vadd.f32 %v3080, %v3255
    %v3275 = vadd.f32 %v3081, %v3170
    %v3276 = vadd.f32 %v3082, %v3172
    %v3277 = vadd.f32 %v3083, %v3259
    %v3278 = vadd.f32 %v3084, %v3261
    %v3279 = vxor.u32 %v3263, 2147483648
    %v3280 = vxor.u32 %v3264, 2147483648
    %v3281 = vxor.u32 %v3265, 2147483648
    %v3282 = vxor.u32 %v3267, 2147483648
    %v3283 = vxor.u32 %v3268, 2147483648
    %v3284 = vxor.u32 %v3269, 2147483648
    %v3285 = vxor.u32 %v3271, 2147483648
    %v3286 = vxor.u32 %v3272, 2147483648
    %v3287 = vxor.u32 %v3273, 2147483648
    %v3288 = vxor.u32 %v3275, 2147483648
    %v3289 = vxor.u32 %v3276, 2147483648
    %v3290 = vxor.u32 %v3277, 2147483648
    %v3291 = vmul.f32 %v3279, 1.442695
    %v3292 = vpow.pop %v3291
    %v3293 = vmul.f32 %v3280, 1.442695
    %v3294 = vpow.pop %v3293
    %v3295 = vmul.f32 %v3281, 1.442695
    %v3296 = vpow.pop %v3295
    %v3297 = vmul.f32 %v3282, 1.442695
    %v3298 = vpow.pop %v3297
    %v3299 = vmul.f32 %v3283, 1.442695
    %v3300 = vpow.pop %v3299
    %v3301 = vmul.f32 %v3284, 1.442695
    %v3302 = vpow.pop %v3301
    %v3303 = vmul.f32 %v3285, 1.442695
    %v3304 = vpow.pop %v3303
    %v3305 = vmul.f32 %v3286, 1.442695
    %v3306 = vpow.pop %v3305
    %v3307 = vmul.f32 %v3287, 1.442695
    %v3308 = vpow.pop %v3307
    %v3309 = vmul.f32 %v3288, 1.442695
    %v3310 = vpow.pop %v3309
    %v3311 = vmul.f32 %v3289, 1.442695
    %v3312 = vpow.pop %v3311
    %v3313 = vmul.f32 %v3290, 1.442695
    %v3314 = vpow.pop %v3313
    %v3315 = vadd.f32 %v3292, 1.0
    %v3316 = vadd.f32 %v3294, 1.0
    %v3317 = vadd.f32 %v3296, 1.0
    %v3318 = vadd.f32 %v3298, 1.0
    %v3319 = vadd.f32 %v3300, 1.0
    %v3320 = vadd.f32 %v3302, 1.0
    %v3321 = vadd.f32 %v3304, 1.0
    %v3322 = vadd.f32 %v3306, 1.0
    %v3323 = vadd.f32 %v3308, 1.0
    %v3324 = vadd.f32 %v3310, 1.0
    %v3325 = vadd.f32 %v3312, 1.0
    %v3326 = vadd.f32 %v3314, 1.0
    %v3327 = vrcp.pop %v3315
    %v3328 = vmul.f32 1.0, %v3327
    %v3329 = vrcp.pop %v3316
    %v3330 = vmul.f32 1.0, %v3329
    %v3331 = vrcp.pop %v3317
    %v3332 = vmul.f32 1.0, %v3331
    %v3333 = vrcp.pop %v3318
    %v3334 = vmul.f32 1.0, %v3333
    %v3335 = vrcp.pop %v3319
    %v3336 = vmul.f32 1.0, %v3335
    %v3337 = vrcp.pop %v3320
    %v3338 = vmul.f32 1.0, %v3337
    %v3339 = vrcp.pop %v3321
    %v3340 = vmul.f32 1.0, %v3339
    %v3341 = vrcp.pop %v3322
    %v3342 = vmul.f32 1.0, %v3341
    %v3343 = vrcp.pop %v3323
    %v3344 = vmul.f32 1.0, %v3343
    %v3345 = vrcp.pop %v3324
    %v3346 = vmul.f32 1.0, %v3345
    %v3347 = vrcp.pop %v3325
    %v3348 = vmul.f32 1.0, %v3347
    %v3349 = vrcp.pop %v3326
    %v3350 = vmul.f32 1.0, %v3349
    %v3351 = vtanh.pop %v3266
    %v3352 = vtanh.pop %v3270
    %v3353 = vtanh.pop %v3274
    %v3354 = vtanh.pop %v3278
    %v3355 = vmul.f32 %v3330, %v3054
    %v3356 = vmul.f32 %v3336, %v3055
    %v3357 = vmul.f32 %v3342, %v3056
    %v3358 = vmul.f32 %v3348, %v3057
    %v3359 = vmul.f32 %v3328, %v3351
    %v3360 = vmul.f32 %v3334, %v3352
    %v3361 = vmul.f32 %v3340, %v3353
    %v3362 = vmul.f32 %v3346, %v3354
    %v3363 = vadd.f32 %v3355, %v3359
    %v3364 = vadd.f32 %v3356, %v3360
    %v3365 = vadd.f32 %v3357, %v3361
    %v3366 = vadd.f32 %v3358, %v3362
    %v3367 = vtanh.pop %v3363
    %v3368 = vtanh.pop %v3364
    %v3369 = vtanh.pop %v3365
    %v3370 = vtanh.pop %v3366
    %v3371 = vmul.f32 %v3332, %v3367
    %v3372 = vmul.f32 %v3338, %v3368
    %v3373 = vmul.f32 %v3344, %v3369
    %v3374 = vmul.f32 %v3350, %v3370
    %3375 = vst [vmem:[#allocation3] sm:$0xff] %v3371
    %3376 = vst [vmem:[#allocation3 + $0x8] sm:$0xff] %v3372
    %3377 = vst [vmem:[#allocation3 + $0x10] sm:$0xff] %v3373
    %3378 = vst [vmem:[#allocation3 + $0x18] sm:$0xff] %v3374
    %3379 = vst [vmem:[#allocation4] sm:$0xff] %v3363
    %3380 = vst [vmem:[#allocation4 + $0x8] sm:$0xff] %v3364
    %3381 = vst [vmem:[#allocation4 + $0x10] sm:$0xff] %v3365
    %3382 = vst [vmem:[#allocation4 + $0x18] sm:$0xff] %v3366
    // Predicated region
    $region34: #{tpu_custom_call.1} parent=1 // pred_check
      %p3383 = pneg %p59
    $region35: #{tpu_custom_call.1} parent=1 // pred_check_branch
      %3385 = sbr.rel (%p3383) target = $region37
    $region36: #{tpu_custom_call.1} parent=1 // pred_region
      %3386 = vst [vmem:[#allocation11] sm:$0xff] %v3371
      %3387 = vst [vmem:[#allocation11 + $0x8] sm:$0xff] %v3372
      %3388 = vst [vmem:[#allocation11 + $0x10] sm:$0xff] %v3373
      %3389 = vst [vmem:[#allocation11 + $0x18] sm:$0xff] %v3374
    $region37: #{tpu_custom_call.1} parent=1 // pred_fallthru
      _
    // Predicated region
    $region38: #{tpu_custom_call.1} parent=1 // pred_check
      _
    $region39: #{tpu_custom_call.1} parent=1 // pred_check_branch
      %3391 = sbr.rel (0) target = $region41
    $region40: #{tpu_custom_call.1} parent=1 // pred_region
      %s3393 = ssub.s32 512, 512
      %3394 = vsyncadd [#allocation7], %s3393
      %s3395 = sshll.u32 [#allocation11], 4
      %s3396 = int_to_ptr.vmem [resolvable:$true] %s3395
      %3401 = dma.vmem_to_hbm [thread:$0]  %s3396, 512, %s4, [#allocation7], 128, 128, 8
    $region41: #{tpu_custom_call.1} parent=1 // pred_fallthru
      _
    // Predicated region
    $region42: #{tpu_custom_call.1} parent=1 // pred_check
      _
    $region43: #{tpu_custom_call.1} parent=1 // pred_check_branch
      %3403 = sbr.rel (0) target = $region45
    $region44: #{tpu_custom_call.1} parent=1 // pred_region
      %3404 = dma.done [#allocation7], 512
    $region45: #{tpu_custom_call.1} parent=1 // pred_fallthru
      _
    %3405 = vsyncpa [#allocation6], 1
    %3406 = vsyncpa [#allocation9], 1
    %3407 = vsyncpa [#allocation7], 1

</llo_original>
